<compile_context>
chip_gen: v7x
topology: tpu7x:2x2x1
jax: 0.10.0
libtpu: 0.0.40
codegen_flags: <defaults>
</compile_context>

<pallas_src>
import numpy as np

import jax
import jax.numpy as jnp
from jax.experimental import pallas as pl
from jax.experimental.pallas import tpu as pltpu


# --------------------------------------------------------------------------
# Hyper-parameters (chosen so every hot feature axis is 128-lane dense).
# --------------------------------------------------------------------------
IMG_H, IMG_W = 16, 16                      # hyparams.image_size (freq, time)
IMG_PIX      = IMG_H * IMG_W               # 256 (flattened, lane dense)
PADF         = 64                          # flat zero halo; 256 + 2*64 = 384 = 3*128
CNN_CH       = 8                           # surrogate conv channels
TFCNN_OUT    = 32                          # hyparams.tfcnn.out_size
TFCAP_OUT    = 32                          # hyparams.tfcap.out_size
PRETRAIN     = 64                          # hyparams.pretrain_size
D_FEAT       = TFCNN_OUT + TFCAP_OUT + PRETRAIN     # 128 (lane dense)
TCN_KERNEL   = 3
TCN_CH       = 128                         # hyparams.tcn.num_channels[-1] (== num_inputs)
ADAPT        = 4                           # hyparams.tcn.adaptive_size
GCN_HIDDEN   = 128                         # hyparams.diagcn hidden size
N_CLASSES    = 4                           # len(hyparams.classes_name)
LANE         = 128
MAX_SEG_TILE = 128                         # segments per grid step (cap)

# Column-wrap masks for the flat-shift conv: row 0 = "left neighbor exists"
# (c != 0), row 1 = "right neighbor exists" (c != IMG_W-1).  Constant under jit.
_COL = np.arange(IMG_PIX) % IMG_W
_COL_MASKS = np.stack([(_COL != 0), (_COL != IMG_W - 1)]).astype(np.float32)


# --------------------------------------------------------------------------
# Kernel 1: per-segment features (TFCNN + TFCAP + gate fusion), fully fused.
# --------------------------------------------------------------------------
def _segment_kernel(cnn_wb_ref, cmask_ref, xpadf_ref, pre_ref,
                    fc_w_ref, fc_b_ref, cap_w_ref, cap_b_ref,
                    gate_w_ref, gate_b_ref, o_ref):
    xpadf = xpadf_ref[...]                               # (TN, 384) zero-halo flat image
    mask_l = cmask_ref[0:1, :]                           # (1, 256) valid left neighbor
    mask_r = cmask_ref[1:2, :]                           # (1, 256) valid right neighbor

    # ---- TFCNN surrogate: 3x3 'same' conv as 9 lane-dense masked flat shifts.
    shifts = []
    for di in (-1, 0, 1):
        for dj in (-1, 0, 1):
            off = di * IMG_W + dj
            sh = xpadf[:, PADF + off:PADF + off + IMG_PIX]   # (TN, 256)
            if dj == -1:
                sh = sh * mask_l
            elif dj == 1:
                sh = sh * mask_r
            shifts.append(sh)
    center = shifts[4]                                   # (di,dj)=(0,0) == flat image

    gaps = []
    for c in range(CNN_CH):
        acc = cnn_wb_ref[9, c] + cnn_wb_ref[0, c] * shifts[0]
        for t in range(1, 9):
            acc = acc + cnn_wb_ref[t, c] * shifts[t]
        acc = jnp.maximum(acc, 0.0)                      # ReLU, (TN, 256)
        gaps.append(jnp.mean(acc, axis=-1, keepdims=True))   # global avg pool (TN, 1)
    gap = jnp.concatenate(gaps, axis=-1)                 # (TN, CNN_CH)
    cnn_feats = (jnp.dot(gap, fc_w_ref[...], preferred_element_type=jnp.float32)
                 + fc_b_ref[...])                        # (TN, 32)

    # ---- TFCAP surrogate: flatten -> linear -> tanh (squash-like)
    cap_feats = jnp.tanh(
        jnp.dot(center, cap_w_ref[...], preferred_element_type=jnp.float32)
        + cap_b_ref[...])                                # (TN, 32)

    # ---- gate fusion of [tfcnn | tfcap | layer-normed pretrain]  (128 lanes)
    concat = jnp.concatenate([cnn_feats, cap_feats, pre_ref[...]], axis=-1)
    gate = jax.nn.sigmoid(
        jnp.dot(concat, gate_w_ref[...], preferred_element_type=jnp.float32)
        + gate_b_ref[...])
    o_ref[...] = (gate * concat).astype(o_ref.dtype)     # (TN, 128) lane-dense


def _segment_features(params, xpadf, pre, seg_tile):
    n_seg_p, wpad = xpadf.shape
    assert n_seg_p % seg_tile == 0
    grid = (n_seg_p // seg_tile,)
    flops = int(n_seg_p * (CNN_CH * 9 * IMG_PIX * 2
                           + CNN_CH * TFCNN_OUT * 2
                           + IMG_PIX * TFCAP_OUT * 2
                           + D_FEAT * D_FEAT * 2))
    bytes_acc = int(4 * (xpadf.size + pre.size + n_seg_p * D_FEAT
                         + 10 * CNN_CH + CNN_CH * TFCNN_OUT + TFCNN_OUT
                         + IMG_PIX * TFCAP_OUT + TFCAP_OUT
                         + D_FEAT * D_FEAT + D_FEAT + 2 * IMG_PIX))
    return pl.pallas_call(
        _segment_kernel,
        out_shape=jax.ShapeDtypeStruct((n_seg_p, D_FEAT), jnp.float32),
        grid_spec=pl.GridSpec(
            grid=grid,
            in_specs=[
                pl.BlockSpec(memory_space=pltpu.MemorySpace.SMEM),     # conv taps + bias
                pl.BlockSpec((2, IMG_PIX), lambda i: (0, 0)),          # column-wrap masks
                pl.BlockSpec((seg_tile, wpad), lambda i: (i, 0)),      # flat halo image
                pl.BlockSpec((seg_tile, PRETRAIN), lambda i: (i, 0)),  # layer-normed pretrain
                pl.BlockSpec((CNN_CH, TFCNN_OUT), lambda i: (0, 0)),
                pl.BlockSpec((1, TFCNN_OUT), lambda i: (0, 0)),
                pl.BlockSpec((IMG_PIX, TFCAP_OUT), lambda i: (0, 0)),
                pl.BlockSpec((1, TFCAP_OUT), lambda i: (0, 0)),
                pl.BlockSpec((D_FEAT, D_FEAT), lambda i: (0, 0)),
                pl.BlockSpec((1, D_FEAT), lambda i: (0, 0)),
            ],
            out_specs=pl.BlockSpec((seg_tile, D_FEAT), lambda i: (i, 0)),
        ),
        compiler_params=pltpu.CompilerParams(dimension_semantics=("parallel",)),
        cost_estimate=pl.CostEstimate(
            flops=flops,
            transcendentals=int(n_seg_p * (TFCAP_OUT + D_FEAT)),
            bytes_accessed=bytes_acc),
    )(params["cnn_wb"], jnp.asarray(_COL_MASKS), xpadf, pre,
      params["fc_w"], params["fc_b"], params["cap_w"], params["cap_b"],
      params["gate_w"], params["gate_b"])


# --------------------------------------------------------------------------
# Kernel 2: TCN + adaptive pool + DIAGCN + classifier, fully fused.
# --------------------------------------------------------------------------
def _dialog_kernel(xp_ref, a_all_ref, a_spk_ref, tcn_w_ref, tcn_b_ref,
                   gws_ref, g_b_ref, cls_w_ref, cls_b_ref, o_ref):
    B = o_ref.shape[0]
    BTp = xp_ref.shape[0]
    Tp = BTp // B
    T = Tp - (TCN_KERNEL - 1)

    x2 = xp_ref[...]                                     # (B*Tp, 128) causal-padded
    tb = tcn_b_ref[...]

    # 3 causal-TCN tap matmuls on the whole slab at once (MXU), combined per
    # utterance with static row slices (no unfold, no per-b matmul loop).
    taps = [jnp.dot(x2, tcn_w_ref[k], preferred_element_type=jnp.float32)
            for k in range(TCN_KERNEL)]                  # each (B*Tp, 128)

    ys = []
    for b in range(B):                                   # B is tiny & static
        base = b * Tp
        yb = (taps[0][base:base + T, :]
              + taps[1][base + 1:base + 1 + T, :]
              + taps[2][base + 2:base + 2 + T, :] + tb)
        # ReLU + identity residual
        yb = jnp.maximum(yb, 0.0) + x2[base + TCN_KERNEL - 1:base + TCN_KERNEL - 1 + T, :]
        ys.append(yb)                                    # (T, 128)

    # Adaptive average pool (PyTorch AdaptiveAvgPool1d binning) fused with the
    # DIAGCN input matmul: out.view(B,-1) @ W == sum_s pooled_s @ W_s where
    # W_s = W[c*ADAPT + s, :] (channel-major), pre-split in init into gws_ref.
    xw = jnp.zeros((B, 3 * GCN_HIDDEN), jnp.float32)
    for s in range(ADAPT):
        s0 = (s * T) // ADAPT
        s1 = -((-(s + 1) * T) // ADAPT)
        pooled = jnp.concatenate(
            [jnp.mean(ys[b][s0:s1, :], axis=0, keepdims=True) for b in range(B)],
            axis=0)                                      # (B, 128) lane-dense
        xw = xw + jnp.dot(pooled, gws_ref[s], preferred_element_type=jnp.float32)

    # DIAGCN surrogate: two-relation propagation + self term, ReLU, classifier
    # (padded to 128 lanes so the final store is lane-dense).
    h = (jnp.dot(a_all_ref[...], xw[:, 0:GCN_HIDDEN],
                 preferred_element_type=jnp.float32)
         + jnp.dot(a_spk_ref[...], xw[:, GCN_HIDDEN:2 * GCN_HIDDEN],
                   preferred_element_type=jnp.float32)
         + xw[:, 2 * GCN_HIDDEN:3 * GCN_HIDDEN]
         + g_b_ref[...])
    h = jnp.maximum(h, 0.0)
    o_ref[...] = (jnp.dot(h, cls_w_ref[...], preferred_element_type=jnp.float32)
                  + cls_b_ref[...]).astype(o_ref.dtype)  # (B, 128) lane-dense


def _dialog_forward(xp2, a_all, a_spk, tcn_w, tcn_b, gws, g_b, cls_w, cls_b, B):
    BTp, D = xp2.shape
    flops = int(2 * (BTp * D * TCN_CH * TCN_KERNEL
                     + ADAPT * B * TCN_CH * 3 * GCN_HIDDEN
                     + 2 * B * B * GCN_HIDDEN
                     + B * GCN_HIDDEN * LANE))
    bytes_acc = int(4 * (xp2.size + 2 * a_all.size + tcn_w.size + tcn_b.size
                         + gws.size + g_b.size + cls_w.size + cls_b.size + B * LANE))
    return pl.pallas_call(
        _dialog_kernel,
        out_shape=jax.ShapeDtypeStruct((B, LANE), jnp.float32),
        grid_spec=pl.GridSpec(
            grid=(1,),
            in_specs=[
                pl.BlockSpec((BTp, D), lambda i: (0, 0)),
                pl.BlockSpec((B, B), lambda i: (0, 0)),
                pl.BlockSpec((B, B), lambda i: (0, 0)),
                pl.BlockSpec((TCN_KERNEL, D_FEAT, TCN_CH), lambda i: (0, 0, 0)),
                pl.BlockSpec((1, TCN_CH), lambda i: (0, 0)),
                pl.BlockSpec((ADAPT, TCN_CH, 3 * GCN_HIDDEN), lambda i: (0, 0, 0)),
                pl.BlockSpec((1, GCN_HIDDEN), lambda i: (0, 0)),
                pl.BlockSpec((GCN_HIDDEN, LANE), lambda i: (0, 0)),
                pl.BlockSpec((1, LANE), lambda i: (0, 0)),
            ],
            out_specs=pl.BlockSpec((B, LANE), lambda i: (0, 0)),
        ),
        compiler_params=pltpu.CompilerParams(dimension_semantics=("arbitrary",)),
        cost_estimate=pl.CostEstimate(flops=flops, transcendentals=0,
                                      bytes_accessed=bytes_acc),
    )(xp2, a_all, a_spk, tcn_w, tcn_b, gws, g_b, cls_w, cls_b)


# --------------------------------------------------------------------------
# Host/XLA glue (no hot-path compute; the array part is a single jit).
# --------------------------------------------------------------------------
def _dialog_adjacencies(dialog_lengths, speakers):
    """Row-normalized block-diagonal dialog graph + same-speaker graph."""
    did = np.repeat(np.arange(len(dialog_lengths)), np.asarray(dialog_lengths))
    spk = np.asarray(speakers)
    a_all = (did[:, None] == did[None, :]).astype(np.float32)
    a_spk = a_all * (spk[:, None] == spk[None, :]).astype(np.float32)
    a_all = a_all / np.maximum(a_all.sum(-1, keepdims=True), 1.0)
    a_spk = a_spk / np.maximum(a_spk.sum(-1, keepdims=True), 1.0)
    return a_all, a_spk


def init_params(key):
    ks = jax.random.split(key, 7)
    s = 0.05
    g_w = jax.random.normal(ks[5], (TCN_CH * ADAPT, 3 * GCN_HIDDEN)) * s
    cls_w = jax.random.normal(ks[6], (GCN_HIDDEN, N_CLASSES)) * s
    p = {
        # conv: rows 0..8 = 3x3 taps, row 9 = bias (kept in SMEM inside the kernel)
        "cnn_wb": jnp.concatenate(
            [jax.random.normal(ks[0], (9, CNN_CH)) * s, jnp.zeros((1, CNN_CH))], axis=0),
        "fc_w":   jax.random.normal(ks[1], (CNN_CH, TFCNN_OUT)) * s,
        "fc_b":   jnp.zeros((1, TFCNN_OUT)),
        "cap_w":  jax.random.normal(ks[2], (IMG_PIX, TFCAP_OUT)) * s,
        "cap_b":  jnp.zeros((1, TFCAP_OUT)),
        "gate_w": jax.random.normal(ks[3], (D_FEAT, D_FEAT)) * s,
        "gate_b": jnp.zeros((1, D_FEAT)),
        "tcn_w":  jax.random.normal(ks[4], (TCN_KERNEL, D_FEAT, TCN_CH)) * s,
        "tcn_b":  jnp.zeros((1, TCN_CH)),
        # fused DIAGCN slab [W_all | W_spk | W_self], rows channel-major
        # (rnn_out.view(B,-1) layout), pre-split per adaptive-pool bin:
        # g_w_slab[s, c, :] = g_w[c*ADAPT + s, :]
        "g_w_slab": g_w.reshape(TCN_CH, ADAPT, 3 * GCN_HIDDEN).transpose(1, 0, 2),
        "g_b":    jnp.zeros((1, GCN_HIDDEN)),
        # classifier padded to 128 output lanes so the final store is lane-dense
        "cls_w":  jnp.zeros((GCN_HIDDEN, LANE)).at[:, :N_CLASSES].set(cls_w),
        "cls_b":  jnp.zeros((1, LANE)),
    }
    return jax.tree_util.tree_map(lambda x: jnp.asarray(x, jnp.float32), p)


@jax.jit
def _forward_jit(params, spectrograms, pretrain_embedding, idx, mask, a_all, a_spk):
    N = spectrograms.shape[0]
    B, max_len = idx.shape

    # F.layer_norm(pretrain_embedding, pretrain_embedding.shape): global mean/var.
    pe = pretrain_embedding.astype(jnp.float32)
    pe = (pe - jnp.mean(pe)) * jax.lax.rsqrt(jnp.var(pe) + 1e-5)

    # flatten the spectrogram and add a flat zero halo for the in-kernel conv shifts
    x = spectrograms.astype(jnp.float32).reshape(N, IMG_PIX)
    xpadf = jnp.pad(x, ((0, 0), (PADF, PADF)))            # (N, 384)

    # adaptive segment tile: one grid step when small, 128-wide tiles when large
    n8 = -(-N // 8) * 8
    seg_tile = min(n8, MAX_SEG_TILE)
    n_seg_p = -(-N // seg_tile) * seg_tile
    if n_seg_p != N:
        xpadf = jnp.pad(xpadf, ((0, n_seg_p - N), (0, 0)))
        pe = jnp.pad(pe, ((0, n_seg_p - N), (0, 0)))

    seg_feats = _segment_features(params, xpadf, pe, seg_tile)[:N]    # (N, 128)

    # pad_sequence as a single gather + mask (constant indices under jit)
    padded = seg_feats[idx] * mask[:, :, None]            # (B, maxL, 128)
    # TODO(synk): padded timesteps still contribute to the adaptive pool (same as
    #             pooling a pad_sequence output); the reference TCN's exact
    #             masking is unknown.
    xp = jnp.pad(padded, ((0, 0), (TCN_KERNEL - 1, 0), (0, 0)))       # causal pad
    xp2 = xp.reshape(B * (max_len + TCN_KERNEL - 1), D_FEAT)

    out = _dialog_forward(xp2, a_all, a_spk, params["tcn_w"], params["tcn_b"],
                          params["g_w_slab"], params["g_b"],
                          params["cls_w"], params["cls_b"], B)
    return out[:, :N_CLASSES]


def tf_tagcn_buttle_forward(params, spectrograms, pretrain_embedding,
                            lengths, dialog_lengths, speakers):
    log = {}
    N = int(spectrograms.shape[0])
    lengths_np = np.asarray(lengths, np.int64)
    max_len = int(lengths_np.max())
    offsets = np.concatenate([[0], np.cumsum(lengths_np)[:-1]]).astype(np.int32)
    idx = np.minimum(offsets[:, None] + np.arange(max_len, dtype=np.int32)[None, :],
                     N - 1).astype(np.int32)
    msk = (np.arange(max_len)[None, :] < lengths_np[:, None]).astype(np.float32)
    a_all, a_spk = _dialog_adjacencies(dialog_lengths, speakers)

    out = _forward_jit(params, spectrograms, pretrain_embedding,
                       jnp.asarray(idx), jnp.asarray(msk),
                       jnp.asarray(a_all), jnp.asarray(a_spk))
    return out, log


# --------------------------------------------------------------------------
if __name__ == "__main__":
    key = jax.random.PRNGKey(0)
    k_param, k_x, k_p = jax.random.split(key, 3)

    # 4 utterances made of [3, 5, 4, 4] spectrogram segments; 2 dialogs of 2 utterances.
    lengths = [3, 5, 4, 4]
    dialog_lengths = [2, 2]
    speakers = [0, 1, 0, 1]
    n_segments = sum(lengths)

    spectrograms = jax.random.normal(
        k_x, (n_segments, 1, IMG_H, IMG_W), dtype=jnp.float32)
    pretrain_embedding = jax.random.normal(
        k_p, (n_segments, PRETRAIN), dtype=jnp.float32)

    params = init_params(k_param)

    out, log = tf_tagcn_buttle_forward(params, spectrograms, pretrain_embedding,
                                       lengths, dialog_lengths, speakers)
    out = jax.block_until_ready(out)
    assert out.shape == (len(lengths), N_CLASSES), out.shape
    assert bool(jnp.all(jnp.isfinite(out)))
    print("KERNEL_OK")
</pallas_src>

<mosaic_0001>
module attributes {stable_mosaic.version = 11 : i64} {
  func.func @_segment_kernel(%arg0: i32, %arg1: memref<10x8xf32, #tpu.memory_space<smem>>, %arg2: memref<2x256xf32, #tpu.memory_space<vmem>>, %arg3: memref<16x384xf32, #tpu.memory_space<vmem>>, %arg4: memref<16x64xf32, #tpu.memory_space<vmem>>, %arg5: memref<8x32xf32, #tpu.memory_space<vmem>>, %arg6: memref<1x32xf32, #tpu.memory_space<vmem>>, %arg7: memref<256x32xf32, #tpu.memory_space<vmem>>, %arg8: memref<1x32xf32, #tpu.memory_space<vmem>>, %arg9: memref<128x128xf32, #tpu.memory_space<vmem>>, %arg10: memref<1x128xf32, #tpu.memory_space<vmem>>, %arg11: memref<16x128xf32, #tpu.memory_space<vmem>>) attributes {dimension_semantics = [#tpu.dimension_semantics<parallel>], iteration_bounds = array<i64: 1>, scalar_prefetch = 0 : i64, scratch_operands = 0 : i64, tpu.core_type = #tpu.core_type<tc>, window_params = [{transform_indices = @transform_0, window_bounds = array<i64: 10, 8>}, {pipeline_mode = #tpu.pipeline_mode<synchronous>, transform_indices = @transform_1, window_bounds = array<i64: 2, 256>}, {transform_indices = @transform_2, window_bounds = array<i64: 16, 384>}, {transform_indices = @transform_3, window_bounds = array<i64: 16, 64>}, {pipeline_mode = #tpu.pipeline_mode<synchronous>, transform_indices = @transform_4, window_bounds = array<i64: 8, 32>}, {pipeline_mode = #tpu.pipeline_mode<synchronous>, transform_indices = @transform_5, window_bounds = array<i64: 1, 32>}, {pipeline_mode = #tpu.pipeline_mode<synchronous>, transform_indices = @transform_6, window_bounds = array<i64: 256, 32>}, {pipeline_mode = #tpu.pipeline_mode<synchronous>, transform_indices = @transform_7, window_bounds = array<i64: 1, 32>}, {pipeline_mode = #tpu.pipeline_mode<synchronous>, transform_indices = @transform_8, window_bounds = array<i64: 128, 128>}, {pipeline_mode = #tpu.pipeline_mode<synchronous>, transform_indices = @transform_9, window_bounds = array<i64: 1, 128>}, {transform_indices = @transform_10, window_bounds = array<i64: 16, 128>}]} {
    %c0 = arith.constant 0 : index
    %c0_0 = arith.constant 0 : index
    %0 = vector.load %arg3[%c0, %c0_0] : memref<16x384xf32, #tpu.memory_space<vmem>>, vector<16x384xf32>
    %c0_1 = arith.constant 0 : index
    %c0_2 = arith.constant 0 : index
    %1 = vector.load %arg2[%c0_1, %c0_2] : memref<2x256xf32, #tpu.memory_space<vmem>>, vector<1x256xf32>
    %c1 = arith.constant 1 : index
    %c0_3 = arith.constant 0 : index
    %2 = vector.load %arg2[%c1, %c0_3] : memref<2x256xf32, #tpu.memory_space<vmem>>, vector<1x256xf32>
    %3 = vector.extract_strided_slice %0 {offsets = [0, 47], sizes = [16, 256], strides = [1, 1]} : vector<16x384xf32> to vector<16x256xf32>
    %4 = vector.broadcast %1 : vector<1x256xf32> to vector<16x256xf32>
    %5 = arith.mulf %3, %4 : vector<16x256xf32>
    %6 = vector.extract_strided_slice %0 {offsets = [0, 48], sizes = [16, 256], strides = [1, 1]} : vector<16x384xf32> to vector<16x256xf32>
    %7 = vector.extract_strided_slice %0 {offsets = [0, 49], sizes = [16, 256], strides = [1, 1]} : vector<16x384xf32> to vector<16x256xf32>
    %8 = vector.broadcast %2 : vector<1x256xf32> to vector<16x256xf32>
    %9 = arith.mulf %7, %8 : vector<16x256xf32>
    %10 = vector.extract_strided_slice %0 {offsets = [0, 63], sizes = [16, 256], strides = [1, 1]} : vector<16x384xf32> to vector<16x256xf32>
    %11 = vector.broadcast %1 : vector<1x256xf32> to vector<16x256xf32>
    %12 = arith.mulf %10, %11 : vector<16x256xf32>
    %13 = vector.extract_strided_slice %0 {offsets = [0, 64], sizes = [16, 256], strides = [1, 1]} : vector<16x384xf32> to vector<16x256xf32>
    %14 = vector.extract_strided_slice %0 {offsets = [0, 65], sizes = [16, 256], strides = [1, 1]} : vector<16x384xf32> to vector<16x256xf32>
    %15 = vector.broadcast %2 : vector<1x256xf32> to vector<16x256xf32>
    %16 = arith.mulf %14, %15 : vector<16x256xf32>
    %17 = vector.extract_strided_slice %0 {offsets = [0, 79], sizes = [16, 256], strides = [1, 1]} : vector<16x384xf32> to vector<16x256xf32>
    %18 = vector.broadcast %1 : vector<1x256xf32> to vector<16x256xf32>
    %19 = arith.mulf %17, %18 : vector<16x256xf32>
    %20 = vector.extract_strided_slice %0 {offsets = [0, 80], sizes = [16, 256], strides = [1, 1]} : vector<16x384xf32> to vector<16x256xf32>
    %21 = vector.extract_strided_slice %0 {offsets = [0, 81], sizes = [16, 256], strides = [1, 1]} : vector<16x384xf32> to vector<16x256xf32>
    %22 = vector.broadcast %2 : vector<1x256xf32> to vector<16x256xf32>
    %23 = arith.mulf %21, %22 : vector<16x256xf32>
    %c9 = arith.constant 9 : index
    %c0_4 = arith.constant 0 : index
    %24 = memref.load %arg1[%c9, %c0_4] : memref<10x8xf32, #tpu.memory_space<smem>>
    %c0_5 = arith.constant 0 : index
    %c0_6 = arith.constant 0 : index
    %25 = memref.load %arg1[%c0_5, %c0_6] : memref<10x8xf32, #tpu.memory_space<smem>>
    %26 = vector.broadcast %25 : f32 to vector<16x256xf32>
    %27 = arith.mulf %26, %5 : vector<16x256xf32>
    %28 = vector.broadcast %24 : f32 to vector<16x256xf32>
    %29 = arith.addf %28, %27 : vector<16x256xf32>
    %c1_7 = arith.constant 1 : index
    %c0_8 = arith.constant 0 : index
    %30 = memref.load %arg1[%c1_7, %c0_8] : memref<10x8xf32, #tpu.memory_space<smem>>
    %31 = vector.broadcast %30 : f32 to vector<16x256xf32>
    %32 = arith.mulf %31, %6 : vector<16x256xf32>
    %33 = arith.addf %29, %32 : vector<16x256xf32>
    %c2 = arith.constant 2 : index
    %c0_9 = arith.constant 0 : index
    %34 = memref.load %arg1[%c2, %c0_9] : memref<10x8xf32, #tpu.memory_space<smem>>
    %35 = vector.broadcast %34 : f32 to vector<16x256xf32>
    %36 = arith.mulf %35, %9 : vector<16x256xf32>
    %37 = arith.addf %33, %36 : vector<16x256xf32>
    %c3 = arith.constant 3 : index
    %c0_10 = arith.constant 0 : index
    %38 = memref.load %arg1[%c3, %c0_10] : memref<10x8xf32, #tpu.memory_space<smem>>
    %39 = vector.broadcast %38 : f32 to vector<16x256xf32>
    %40 = arith.mulf %39, %12 : vector<16x256xf32>
    %41 = arith.addf %37, %40 : vector<16x256xf32>
    %c4 = arith.constant 4 : index
    %c0_11 = arith.constant 0 : index
    %42 = memref.load %arg1[%c4, %c0_11] : memref<10x8xf32, #tpu.memory_space<smem>>
    %43 = vector.broadcast %42 : f32 to vector<16x256xf32>
    %44 = arith.mulf %43, %13 : vector<16x256xf32>
    %45 = arith.addf %41, %44 : vector<16x256xf32>
    %c5 = arith.constant 5 : index
    %c0_12 = arith.constant 0 : index
    %46 = memref.load %arg1[%c5, %c0_12] : memref<10x8xf32, #tpu.memory_space<smem>>
    %47 = vector.broadcast %46 : f32 to vector<16x256xf32>
    %48 = arith.mulf %47, %16 : vector<16x256xf32>
    %49 = arith.addf %45, %48 : vector<16x256xf32>
    %c6 = arith.constant 6 : index
    %c0_13 = arith.constant 0 : index
    %50 = memref.load %arg1[%c6, %c0_13] : memref<10x8xf32, #tpu.memory_space<smem>>
    %51 = vector.broadcast %50 : f32 to vector<16x256xf32>
    %52 = arith.mulf %51, %19 : vector<16x256xf32>
    %53 = arith.addf %49, %52 : vector<16x256xf32>
    %c7 = arith.constant 7 : index
    %c0_14 = arith.constant 0 : index
    %54 = memref.load %arg1[%c7, %c0_14] : memref<10x8xf32, #tpu.memory_space<smem>>
    %55 = vector.broadcast %54 : f32 to vector<16x256xf32>
    %56 = arith.mulf %55, %20 : vector<16x256xf32>
    %57 = arith.addf %53, %56 : vector<16x256xf32>
    %c8 = arith.constant 8 : index
    %c0_15 = arith.constant 0 : index
    %58 = memref.load %arg1[%c8, %c0_15] : memref<10x8xf32, #tpu.memory_space<smem>>
    %59 = vector.broadcast %58 : f32 to vector<16x256xf32>
    %60 = arith.mulf %59, %23 : vector<16x256xf32>
    %61 = arith.addf %57, %60 : vector<16x256xf32>
    %cst = arith.constant 0.000000e+00 : f32
    %62 = vector.broadcast %cst : f32 to vector<16x256xf32>
    %63 = arith.maximumf %61, %62 : vector<16x256xf32>
    %cst_16 = arith.constant dense<0.000000e+00> : vector<16xf32>
    %64 = vector.multi_reduction <add>, %63, %cst_16 [1] : vector<16x256xf32> to vector<16xf32>
    %65 = vector.shape_cast %64 : vector<16xf32> to vector<16x1xf32>
    %cst_17 = arith.constant 2.560000e+02 : f32
    %66 = vector.broadcast %cst_17 : f32 to vector<16x1xf32>
    %67 = arith.divf %65, %66 : vector<16x1xf32>
    %c9_18 = arith.constant 9 : index
    %c1_19 = arith.constant 1 : index
    %68 = memref.load %arg1[%c9_18, %c1_19] : memref<10x8xf32, #tpu.memory_space<smem>>
    %c0_20 = arith.constant 0 : index
    %c1_21 = arith.constant 1 : index
    %69 = memref.load %arg1[%c0_20, %c1_21] : memref<10x8xf32, #tpu.memory_space<smem>>
    %70 = vector.broadcast %69 : f32 to vector<16x256xf32>
    %71 = arith.mulf %70, %5 : vector<16x256xf32>
    %72 = vector.broadcast %68 : f32 to vector<16x256xf32>
    %73 = arith.addf %72, %71 : vector<16x256xf32>
    %c1_22 = arith.constant 1 : index
    %c1_23 = arith.constant 1 : index
    %74 = memref.load %arg1[%c1_22, %c1_23] : memref<10x8xf32, #tpu.memory_space<smem>>
    %75 = vector.broadcast %74 : f32 to vector<16x256xf32>
    %76 = arith.mulf %75, %6 : vector<16x256xf32>
    %77 = arith.addf %73, %76 : vector<16x256xf32>
    %c2_24 = arith.constant 2 : index
    %c1_25 = arith.constant 1 : index
    %78 = memref.load %arg1[%c2_24, %c1_25] : memref<10x8xf32, #tpu.memory_space<smem>>
    %79 = vector.broadcast %78 : f32 to vector<16x256xf32>
    %80 = arith.mulf %79, %9 : vector<16x256xf32>
    %81 = arith.addf %77, %80 : vector<16x256xf32>
    %c3_26 = arith.constant 3 : index
    %c1_27 = arith.constant 1 : index
    %82 = memref.load %arg1[%c3_26, %c1_27] : memref<10x8xf32, #tpu.memory_space<smem>>
    %83 = vector.broadcast %82 : f32 to vector<16x256xf32>
    %84 = arith.mulf %83, %12 : vector<16x256xf32>
    %85 = arith.addf %81, %84 : vector<16x256xf32>
    %c4_28 = arith.constant 4 : index
    %c1_29 = arith.constant 1 : index
    %86 = memref.load %arg1[%c4_28, %c1_29] : memref<10x8xf32, #tpu.memory_space<smem>>
    %87 = vector.broadcast %86 : f32 to vector<16x256xf32>
    %88 = arith.mulf %87, %13 : vector<16x256xf32>
    %89 = arith.addf %85, %88 : vector<16x256xf32>
    %c5_30 = arith.constant 5 : index
    %c1_31 = arith.constant 1 : index
    %90 = memref.load %arg1[%c5_30, %c1_31] : memref<10x8xf32, #tpu.memory_space<smem>>
    %91 = vector.broadcast %90 : f32 to vector<16x256xf32>
    %92 = arith.mulf %91, %16 : vector<16x256xf32>
    %93 = arith.addf %89, %92 : vector<16x256xf32>
    %c6_32 = arith.constant 6 : index
    %c1_33 = arith.constant 1 : index
    %94 = memref.load %arg1[%c6_32, %c1_33] : memref<10x8xf32, #tpu.memory_space<smem>>
    %95 = vector.broadcast %94 : f32 to vector<16x256xf32>
    %96 = arith.mulf %95, %19 : vector<16x256xf32>
    %97 = arith.addf %93, %96 : vector<16x256xf32>
    %c7_34 = arith.constant 7 : index
    %c1_35 = arith.constant 1 : index
    %98 = memref.load %arg1[%c7_34, %c1_35] : memref<10x8xf32, #tpu.memory_space<smem>>
    %99 = vector.broadcast %98 : f32 to vector<16x256xf32>
    %100 = arith.mulf %99, %20 : vector<16x256xf32>
    %101 = arith.addf %97, %100 : vector<16x256xf32>
    %c8_36 = arith.constant 8 : index
    %c1_37 = arith.constant 1 : index
    %102 = memref.load %arg1[%c8_36, %c1_37] : memref<10x8xf32, #tpu.memory_space<smem>>
    %103 = vector.broadcast %102 : f32 to vector<16x256xf32>
    %104 = arith.mulf %103, %23 : vector<16x256xf32>
    %105 = arith.addf %101, %104 : vector<16x256xf32>
    %cst_38 = arith.constant 0.000000e+00 : f32
    %106 = vector.broadcast %cst_38 : f32 to vector<16x256xf32>
    %107 = arith.maximumf %105, %106 : vector<16x256xf32>
    %cst_39 = arith.constant dense<0.000000e+00> : vector<16xf32>
    %108 = vector.multi_reduction <add>, %107, %cst_39 [1] : vector<16x256xf32> to vector<16xf32>
    %109 = vector.shape_cast %108 : vector<16xf32> to vector<16x1xf32>
    %cst_40 = arith.constant 2.560000e+02 : f32
    %110 = vector.broadcast %cst_40 : f32 to vector<16x1xf32>
    %111 = arith.divf %109, %110 : vector<16x1xf32>
    %c9_41 = arith.constant 9 : index
    %c2_42 = arith.constant 2 : index
    %112 = memref.load %arg1[%c9_41, %c2_42] : memref<10x8xf32, #tpu.memory_space<smem>>
    %c0_43 = arith.constant 0 : index
    %c2_44 = arith.constant 2 : index
    %113 = memref.load %arg1[%c0_43, %c2_44] : memref<10x8xf32, #tpu.memory_space<smem>>
    %114 = vector.broadcast %113 : f32 to vector<16x256xf32>
    %115 = arith.mulf %114, %5 : vector<16x256xf32>
    %116 = vector.broadcast %112 : f32 to vector<16x256xf32>
    %117 = arith.addf %116, %115 : vector<16x256xf32>
    %c1_45 = arith.constant 1 : index
    %c2_46 = arith.constant 2 : index
    %118 = memref.load %arg1[%c1_45, %c2_46] : memref<10x8xf32, #tpu.memory_space<smem>>
    %119 = vector.broadcast %118 : f32 to vector<16x256xf32>
    %120 = arith.mulf %119, %6 : vector<16x256xf32>
    %121 = arith.addf %117, %120 : vector<16x256xf32>
    %c2_47 = arith.constant 2 : index
    %c2_48 = arith.constant 2 : index
    %122 = memref.load %arg1[%c2_47, %c2_48] : memref<10x8xf32, #tpu.memory_space<smem>>
    %123 = vector.broadcast %122 : f32 to vector<16x256xf32>
    %124 = arith.mulf %123, %9 : vector<16x256xf32>
    %125 = arith.addf %121, %124 : vector<16x256xf32>
    %c3_49 = arith.constant 3 : index
    %c2_50 = arith.constant 2 : index
    %126 = memref.load %arg1[%c3_49, %c2_50] : memref<10x8xf32, #tpu.memory_space<smem>>
    %127 = vector.broadcast %126 : f32 to vector<16x256xf32>
    %128 = arith.mulf %127, %12 : vector<16x256xf32>
    %129 = arith.addf %125, %128 : vector<16x256xf32>
    %c4_51 = arith.constant 4 : index
    %c2_52 = arith.constant 2 : index
    %130 = memref.load %arg1[%c4_51, %c2_52] : memref<10x8xf32, #tpu.memory_space<smem>>
    %131 = vector.broadcast %130 : f32 to vector<16x256xf32>
    %132 = arith.mulf %131, %13 : vector<16x256xf32>
    %133 = arith.addf %129, %132 : vector<16x256xf32>
    %c5_53 = arith.constant 5 : index
    %c2_54 = arith.constant 2 : index
    %134 = memref.load %arg1[%c5_53, %c2_54] : memref<10x8xf32, #tpu.memory_space<smem>>
    %135 = vector.broadcast %134 : f32 to vector<16x256xf32>
    %136 = arith.mulf %135, %16 : vector<16x256xf32>
    %137 = arith.addf %133, %136 : vector<16x256xf32>
    %c6_55 = arith.constant 6 : index
    %c2_56 = arith.constant 2 : index
    %138 = memref.load %arg1[%c6_55, %c2_56] : memref<10x8xf32, #tpu.memory_space<smem>>
    %139 = vector.broadcast %138 : f32 to vector<16x256xf32>
    %140 = arith.mulf %139, %19 : vector<16x256xf32>
    %141 = arith.addf %137, %140 : vector<16x256xf32>
    %c7_57 = arith.constant 7 : index
    %c2_58 = arith.constant 2 : index
    %142 = memref.load %arg1[%c7_57, %c2_58] : memref<10x8xf32, #tpu.memory_space<smem>>
    %143 = vector.broadcast %142 : f32 to vector<16x256xf32>
    %144 = arith.mulf %143, %20 : vector<16x256xf32>
    %145 = arith.addf %141, %144 : vector<16x256xf32>
    %c8_59 = arith.constant 8 : index
    %c2_60 = arith.constant 2 : index
    %146 = memref.load %arg1[%c8_59, %c2_60] : memref<10x8xf32, #tpu.memory_space<smem>>
    %147 = vector.broadcast %146 : f32 to vector<16x256xf32>
    %148 = arith.mulf %147, %23 : vector<16x256xf32>
    %149 = arith.addf %145, %148 : vector<16x256xf32>
    %cst_61 = arith.constant 0.000000e+00 : f32
    %150 = vector.broadcast %cst_61 : f32 to vector<16x256xf32>
    %151 = arith.maximumf %149, %150 : vector<16x256xf32>
    %cst_62 = arith.constant dense<0.000000e+00> : vector<16xf32>
    %152 = vector.multi_reduction <add>, %151, %cst_62 [1] : vector<16x256xf32> to vector<16xf32>
    %153 = vector.shape_cast %152 : vector<16xf32> to vector<16x1xf32>
    %cst_63 = arith.constant 2.560000e+02 : f32
    %154 = vector.broadcast %cst_63 : f32 to vector<16x1xf32>
    %155 = arith.divf %153, %154 : vector<16x1xf32>
    %c9_64 = arith.constant 9 : index
    %c3_65 = arith.constant 3 : index
    %156 = memref.load %arg1[%c9_64, %c3_65] : memref<10x8xf32, #tpu.memory_space<smem>>
    %c0_66 = arith.constant 0 : index
    %c3_67 = arith.constant 3 : index
    %157 = memref.load %arg1[%c0_66, %c3_67] : memref<10x8xf32, #tpu.memory_space<smem>>
    %158 = vector.broadcast %157 : f32 to vector<16x256xf32>
    %159 = arith.mulf %158, %5 : vector<16x256xf32>
    %160 = vector.broadcast %156 : f32 to vector<16x256xf32>
    %161 = arith.addf %160, %159 : vector<16x256xf32>
    %c1_68 = arith.constant 1 : index
    %c3_69 = arith.constant 3 : index
    %162 = memref.load %arg1[%c1_68, %c3_69] : memref<10x8xf32, #tpu.memory_space<smem>>
    %163 = vector.broadcast %162 : f32 to vector<16x256xf32>
    %164 = arith.mulf %163, %6 : vector<16x256xf32>
    %165 = arith.addf %161, %164 : vector<16x256xf32>
    %c2_70 = arith.constant 2 : index
    %c3_71 = arith.constant 3 : index
    %166 = memref.load %arg1[%c2_70, %c3_71] : memref<10x8xf32, #tpu.memory_space<smem>>
    %167 = vector.broadcast %166 : f32 to vector<16x256xf32>
    %168 = arith.mulf %167, %9 : vector<16x256xf32>
    %169 = arith.addf %165, %168 : vector<16x256xf32>
    %c3_72 = arith.constant 3 : index
    %c3_73 = arith.constant 3 : index
    %170 = memref.load %arg1[%c3_72, %c3_73] : memref<10x8xf32, #tpu.memory_space<smem>>
    %171 = vector.broadcast %170 : f32 to vector<16x256xf32>
    %172 = arith.mulf %171, %12 : vector<16x256xf32>
    %173 = arith.addf %169, %172 : vector<16x256xf32>
    %c4_74 = arith.constant 4 : index
    %c3_75 = arith.constant 3 : index
    %174 = memref.load %arg1[%c4_74, %c3_75] : memref<10x8xf32, #tpu.memory_space<smem>>
    %175 = vector.broadcast %174 : f32 to vector<16x256xf32>
    %176 = arith.mulf %175, %13 : vector<16x256xf32>
    %177 = arith.addf %173, %176 : vector<16x256xf32>
    %c5_76 = arith.constant 5 : index
    %c3_77 = arith.constant 3 : index
    %178 = memref.load %arg1[%c5_76, %c3_77] : memref<10x8xf32, #tpu.memory_space<smem>>
    %179 = vector.broadcast %178 : f32 to vector<16x256xf32>
    %180 = arith.mulf %179, %16 : vector<16x256xf32>
    %181 = arith.addf %177, %180 : vector<16x256xf32>
    %c6_78 = arith.constant 6 : index
    %c3_79 = arith.constant 3 : index
    %182 = memref.load %arg1[%c6_78, %c3_79] : memref<10x8xf32, #tpu.memory_space<smem>>
    %183 = vector.broadcast %182 : f32 to vector<16x256xf32>
    %184 = arith.mulf %183, %19 : vector<16x256xf32>
    %185 = arith.addf %181, %184 : vector<16x256xf32>
    %c7_80 = arith.constant 7 : index
    %c3_81 = arith.constant 3 : index
    %186 = memref.load %arg1[%c7_80, %c3_81] : memref<10x8xf32, #tpu.memory_space<smem>>
    %187 = vector.broadcast %186 : f32 to vector<16x256xf32>
    %188 = arith.mulf %187, %20 : vector<16x256xf32>
    %189 = arith.addf %185, %188 : vector<16x256xf32>
    %c8_82 = arith.constant 8 : index
    %c3_83 = arith.constant 3 : index
    %190 = memref.load %arg1[%c8_82, %c3_83] : memref<10x8xf32, #tpu.memory_space<smem>>
    %191 = vector.broadcast %190 : f32 to vector<16x256xf32>
    %192 = arith.mulf %191, %23 : vector<16x256xf32>
    %193 = arith.addf %189, %192 : vector<16x256xf32>
    %cst_84 = arith.constant 0.000000e+00 : f32
    %194 = vector.broadcast %cst_84 : f32 to vector<16x256xf32>
    %195 = arith.maximumf %193, %194 : vector<16x256xf32>
    %cst_85 = arith.constant dense<0.000000e+00> : vector<16xf32>
    %196 = vector.multi_reduction <add>, %195, %cst_85 [1] : vector<16x256xf32> to vector<16xf32>
    %197 = vector.shape_cast %196 : vector<16xf32> to vector<16x1xf32>
    %cst_86 = arith.constant 2.560000e+02 : f32
    %198 = vector.broadcast %cst_86 : f32 to vector<16x1xf32>
    %199 = arith.divf %197, %198 : vector<16x1xf32>
    %c9_87 = arith.constant 9 : index
    %c4_88 = arith.constant 4 : index
    %200 = memref.load %arg1[%c9_87, %c4_88] : memref<10x8xf32, #tpu.memory_space<smem>>
    %c0_89 = arith.constant 0 : index
    %c4_90 = arith.constant 4 : index
    %201 = memref.load %arg1[%c0_89, %c4_90] : memref<10x8xf32, #tpu.memory_space<smem>>
    %202 = vector.broadcast %201 : f32 to vector<16x256xf32>
    %203 = arith.mulf %202, %5 : vector<16x256xf32>
    %204 = vector.broadcast %200 : f32 to vector<16x256xf32>
    %205 = arith.addf %204, %203 : vector<16x256xf32>
    %c1_91 = arith.constant 1 : index
    %c4_92 = arith.constant 4 : index
    %206 = memref.load %arg1[%c1_91, %c4_92] : memref<10x8xf32, #tpu.memory_space<smem>>
    %207 = vector.broadcast %206 : f32 to vector<16x256xf32>
    %208 = arith.mulf %207, %6 : vector<16x256xf32>
    %209 = arith.addf %205, %208 : vector<16x256xf32>
    %c2_93 = arith.constant 2 : index
    %c4_94 = arith.constant 4 : index
    %210 = memref.load %arg1[%c2_93, %c4_94] : memref<10x8xf32, #tpu.memory_space<smem>>
    %211 = vector.broadcast %210 : f32 to vector<16x256xf32>
    %212 = arith.mulf %211, %9 : vector<16x256xf32>
    %213 = arith.addf %209, %212 : vector<16x256xf32>
    %c3_95 = arith.constant 3 : index
    %c4_96 = arith.constant 4 : index
    %214 = memref.load %arg1[%c3_95, %c4_96] : memref<10x8xf32, #tpu.memory_space<smem>>
    %215 = vector.broadcast %214 : f32 to vector<16x256xf32>
    %216 = arith.mulf %215, %12 : vector<16x256xf32>
    %217 = arith.addf %213, %216 : vector<16x256xf32>
    %c4_97 = arith.constant 4 : index
    %c4_98 = arith.constant 4 : index
    %218 = memref.load %arg1[%c4_97, %c4_98] : memref<10x8xf32, #tpu.memory_space<smem>>
    %219 = vector.broadcast %218 : f32 to vector<16x256xf32>
    %220 = arith.mulf %219, %13 : vector<16x256xf32>
    %221 = arith.addf %217, %220 : vector<16x256xf32>
    %c5_99 = arith.constant 5 : index
    %c4_100 = arith.constant 4 : index
    %222 = memref.load %arg1[%c5_99, %c4_100] : memref<10x8xf32, #tpu.memory_space<smem>>
    %223 = vector.broadcast %222 : f32 to vector<16x256xf32>
    %224 = arith.mulf %223, %16 : vector<16x256xf32>
    %225 = arith.addf %221, %224 : vector<16x256xf32>
    %c6_101 = arith.constant 6 : index
    %c4_102 = arith.constant 4 : index
    %226 = memref.load %arg1[%c6_101, %c4_102] : memref<10x8xf32, #tpu.memory_space<smem>>
    %227 = vector.broadcast %226 : f32 to vector<16x256xf32>
    %228 = arith.mulf %227, %19 : vector<16x256xf32>
    %229 = arith.addf %225, %228 : vector<16x256xf32>
    %c7_103 = arith.constant 7 : index
    %c4_104 = arith.constant 4 : index
    %230 = memref.load %arg1[%c7_103, %c4_104] : memref<10x8xf32, #tpu.memory_space<smem>>
    %231 = vector.broadcast %230 : f32 to vector<16x256xf32>
    %232 = arith.mulf %231, %20 : vector<16x256xf32>
    %233 = arith.addf %229, %232 : vector<16x256xf32>
    %c8_105 = arith.constant 8 : index
    %c4_106 = arith.constant 4 : index
    %234 = memref.load %arg1[%c8_105, %c4_106] : memref<10x8xf32, #tpu.memory_space<smem>>
    %235 = vector.broadcast %234 : f32 to vector<16x256xf32>
    %236 = arith.mulf %235, %23 : vector<16x256xf32>
    %237 = arith.addf %233, %236 : vector<16x256xf32>
    %cst_107 = arith.constant 0.000000e+00 : f32
    %238 = vector.broadcast %cst_107 : f32 to vector<16x256xf32>
    %239 = arith.maximumf %237, %238 : vector<16x256xf32>
    %cst_108 = arith.constant dense<0.000000e+00> : vector<16xf32>
    %240 = vector.multi_reduction <add>, %239, %cst_108 [1] : vector<16x256xf32> to vector<16xf32>
    %241 = vector.shape_cast %240 : vector<16xf32> to vector<16x1xf32>
    %cst_109 = arith.constant 2.560000e+02 : f32
    %242 = vector.broadcast %cst_109 : f32 to vector<16x1xf32>
    %243 = arith.divf %241, %242 : vector<16x1xf32>
    %c9_110 = arith.constant 9 : index
    %c5_111 = arith.constant 5 : index
    %244 = memref.load %arg1[%c9_110, %c5_111] : memref<10x8xf32, #tpu.memory_space<smem>>
    %c0_112 = arith.constant 0 : index
    %c5_113 = arith.constant 5 : index
    %245 = memref.load %arg1[%c0_112, %c5_113] : memref<10x8xf32, #tpu.memory_space<smem>>
    %246 = vector.broadcast %245 : f32 to vector<16x256xf32>
    %247 = arith.mulf %246, %5 : vector<16x256xf32>
    %248 = vector.broadcast %244 : f32 to vector<16x256xf32>
    %249 = arith.addf %248, %247 : vector<16x256xf32>
    %c1_114 = arith.constant 1 : index
    %c5_115 = arith.constant 5 : index
    %250 = memref.load %arg1[%c1_114, %c5_115] : memref<10x8xf32, #tpu.memory_space<smem>>
    %251 = vector.broadcast %250 : f32 to vector<16x256xf32>
    %252 = arith.mulf %251, %6 : vector<16x256xf32>
    %253 = arith.addf %249, %252 : vector<16x256xf32>
    %c2_116 = arith.constant 2 : index
    %c5_117 = arith.constant 5 : index
    %254 = memref.load %arg1[%c2_116, %c5_117] : memref<10x8xf32, #tpu.memory_space<smem>>
    %255 = vector.broadcast %254 : f32 to vector<16x256xf32>
    %256 = arith.mulf %255, %9 : vector<16x256xf32>
    %257 = arith.addf %253, %256 : vector<16x256xf32>
    %c3_118 = arith.constant 3 : index
    %c5_119 = arith.constant 5 : index
    %258 = memref.load %arg1[%c3_118, %c5_119] : memref<10x8xf32, #tpu.memory_space<smem>>
    %259 = vector.broadcast %258 : f32 to vector<16x256xf32>
    %260 = arith.mulf %259, %12 : vector<16x256xf32>
    %261 = arith.addf %257, %260 : vector<16x256xf32>
    %c4_120 = arith.constant 4 : index
    %c5_121 = arith.constant 5 : index
    %262 = memref.load %arg1[%c4_120, %c5_121] : memref<10x8xf32, #tpu.memory_space<smem>>
    %263 = vector.broadcast %262 : f32 to vector<16x256xf32>
    %264 = arith.mulf %263, %13 : vector<16x256xf32>
    %265 = arith.addf %261, %264 : vector<16x256xf32>
    %c5_122 = arith.constant 5 : index
    %c5_123 = arith.constant 5 : index
    %266 = memref.load %arg1[%c5_122, %c5_123] : memref<10x8xf32, #tpu.memory_space<smem>>
    %267 = vector.broadcast %266 : f32 to vector<16x256xf32>
    %268 = arith.mulf %267, %16 : vector<16x256xf32>
    %269 = arith.addf %265, %268 : vector<16x256xf32>
    %c6_124 = arith.constant 6 : index
    %c5_125 = arith.constant 5 : index
    %270 = memref.load %arg1[%c6_124, %c5_125] : memref<10x8xf32, #tpu.memory_space<smem>>
    %271 = vector.broadcast %270 : f32 to vector<16x256xf32>
    %272 = arith.mulf %271, %19 : vector<16x256xf32>
    %273 = arith.addf %269, %272 : vector<16x256xf32>
    %c7_126 = arith.constant 7 : index
    %c5_127 = arith.constant 5 : index
    %274 = memref.load %arg1[%c7_126, %c5_127] : memref<10x8xf32, #tpu.memory_space<smem>>
    %275 = vector.broadcast %274 : f32 to vector<16x256xf32>
    %276 = arith.mulf %275, %20 : vector<16x256xf32>
    %277 = arith.addf %273, %276 : vector<16x256xf32>
    %c8_128 = arith.constant 8 : index
    %c5_129 = arith.constant 5 : index
    %278 = memref.load %arg1[%c8_128, %c5_129] : memref<10x8xf32, #tpu.memory_space<smem>>
    %279 = vector.broadcast %278 : f32 to vector<16x256xf32>
    %280 = arith.mulf %279, %23 : vector<16x256xf32>
    %281 = arith.addf %277, %280 : vector<16x256xf32>
    %cst_130 = arith.constant 0.000000e+00 : f32
    %282 = vector.broadcast %cst_130 : f32 to vector<16x256xf32>
    %283 = arith.maximumf %281, %282 : vector<16x256xf32>
    %cst_131 = arith.constant dense<0.000000e+00> : vector<16xf32>
    %284 = vector.multi_reduction <add>, %283, %cst_131 [1] : vector<16x256xf32> to vector<16xf32>
    %285 = vector.shape_cast %284 : vector<16xf32> to vector<16x1xf32>
    %cst_132 = arith.constant 2.560000e+02 : f32
    %286 = vector.broadcast %cst_132 : f32 to vector<16x1xf32>
    %287 = arith.divf %285, %286 : vector<16x1xf32>
    %c9_133 = arith.constant 9 : index
    %c6_134 = arith.constant 6 : index
    %288 = memref.load %arg1[%c9_133, %c6_134] : memref<10x8xf32, #tpu.memory_space<smem>>
    %c0_135 = arith.constant 0 : index
    %c6_136 = arith.constant 6 : index
    %289 = memref.load %arg1[%c0_135, %c6_136] : memref<10x8xf32, #tpu.memory_space<smem>>
    %290 = vector.broadcast %289 : f32 to vector<16x256xf32>
    %291 = arith.mulf %290, %5 : vector<16x256xf32>
    %292 = vector.broadcast %288 : f32 to vector<16x256xf32>
    %293 = arith.addf %292, %291 : vector<16x256xf32>
    %c1_137 = arith.constant 1 : index
    %c6_138 = arith.constant 6 : index
    %294 = memref.load %arg1[%c1_137, %c6_138] : memref<10x8xf32, #tpu.memory_space<smem>>
    %295 = vector.broadcast %294 : f32 to vector<16x256xf32>
    %296 = arith.mulf %295, %6 : vector<16x256xf32>
    %297 = arith.addf %293, %296 : vector<16x256xf32>
    %c2_139 = arith.constant 2 : index
    %c6_140 = arith.constant 6 : index
    %298 = memref.load %arg1[%c2_139, %c6_140] : memref<10x8xf32, #tpu.memory_space<smem>>
    %299 = vector.broadcast %298 : f32 to vector<16x256xf32>
    %300 = arith.mulf %299, %9 : vector<16x256xf32>
    %301 = arith.addf %297, %300 : vector<16x256xf32>
    %c3_141 = arith.constant 3 : index
    %c6_142 = arith.constant 6 : index
    %302 = memref.load %arg1[%c3_141, %c6_142] : memref<10x8xf32, #tpu.memory_space<smem>>
    %303 = vector.broadcast %302 : f32 to vector<16x256xf32>
    %304 = arith.mulf %303, %12 : vector<16x256xf32>
    %305 = arith.addf %301, %304 : vector<16x256xf32>
    %c4_143 = arith.constant 4 : index
    %c6_144 = arith.constant 6 : index
    %306 = memref.load %arg1[%c4_143, %c6_144] : memref<10x8xf32, #tpu.memory_space<smem>>
    %307 = vector.broadcast %306 : f32 to vector<16x256xf32>
    %308 = arith.mulf %307, %13 : vector<16x256xf32>
    %309 = arith.addf %305, %308 : vector<16x256xf32>
    %c5_145 = arith.constant 5 : index
    %c6_146 = arith.constant 6 : index
    %310 = memref.load %arg1[%c5_145, %c6_146] : memref<10x8xf32, #tpu.memory_space<smem>>
    %311 = vector.broadcast %310 : f32 to vector<16x256xf32>
    %312 = arith.mulf %311, %16 : vector<16x256xf32>
    %313 = arith.addf %309, %312 : vector<16x256xf32>
    %c6_147 = arith.constant 6 : index
    %c6_148 = arith.constant 6 : index
    %314 = memref.load %arg1[%c6_147, %c6_148] : memref<10x8xf32, #tpu.memory_space<smem>>
    %315 = vector.broadcast %314 : f32 to vector<16x256xf32>
    %316 = arith.mulf %315, %19 : vector<16x256xf32>
    %317 = arith.addf %313, %316 : vector<16x256xf32>
    %c7_149 = arith.constant 7 : index
    %c6_150 = arith.constant 6 : index
    %318 = memref.load %arg1[%c7_149, %c6_150] : memref<10x8xf32, #tpu.memory_space<smem>>
    %319 = vector.broadcast %318 : f32 to vector<16x256xf32>
    %320 = arith.mulf %319, %20 : vector<16x256xf32>
    %321 = arith.addf %317, %320 : vector<16x256xf32>
    %c8_151 = arith.constant 8 : index
    %c6_152 = arith.constant 6 : index
    %322 = memref.load %arg1[%c8_151, %c6_152] : memref<10x8xf32, #tpu.memory_space<smem>>
    %323 = vector.broadcast %322 : f32 to vector<16x256xf32>
    %324 = arith.mulf %323, %23 : vector<16x256xf32>
    %325 = arith.addf %321, %324 : vector<16x256xf32>
    %cst_153 = arith.constant 0.000000e+00 : f32
    %326 = vector.broadcast %cst_153 : f32 to vector<16x256xf32>
    %327 = arith.maximumf %325, %326 : vector<16x256xf32>
    %cst_154 = arith.constant dense<0.000000e+00> : vector<16xf32>
    %328 = vector.multi_reduction <add>, %327, %cst_154 [1] : vector<16x256xf32> to vector<16xf32>
    %329 = vector.shape_cast %328 : vector<16xf32> to vector<16x1xf32>
    %cst_155 = arith.constant 2.560000e+02 : f32
    %330 = vector.broadcast %cst_155 : f32 to vector<16x1xf32>
    %331 = arith.divf %329, %330 : vector<16x1xf32>
    %c9_156 = arith.constant 9 : index
    %c7_157 = arith.constant 7 : index
    %332 = memref.load %arg1[%c9_156, %c7_157] : memref<10x8xf32, #tpu.memory_space<smem>>
    %c0_158 = arith.constant 0 : index
    %c7_159 = arith.constant 7 : index
    %333 = memref.load %arg1[%c0_158, %c7_159] : memref<10x8xf32, #tpu.memory_space<smem>>
    %334 = vector.broadcast %333 : f32 to vector<16x256xf32>
    %335 = arith.mulf %334, %5 : vector<16x256xf32>
    %336 = vector.broadcast %332 : f32 to vector<16x256xf32>
    %337 = arith.addf %336, %335 : vector<16x256xf32>
    %c1_160 = arith.constant 1 : index
    %c7_161 = arith.constant 7 : index
    %338 = memref.load %arg1[%c1_160, %c7_161] : memref<10x8xf32, #tpu.memory_space<smem>>
    %339 = vector.broadcast %338 : f32 to vector<16x256xf32>
    %340 = arith.mulf %339, %6 : vector<16x256xf32>
    %341 = arith.addf %337, %340 : vector<16x256xf32>
    %c2_162 = arith.constant 2 : index
    %c7_163 = arith.constant 7 : index
    %342 = memref.load %arg1[%c2_162, %c7_163] : memref<10x8xf32, #tpu.memory_space<smem>>
    %343 = vector.broadcast %342 : f32 to vector<16x256xf32>
    %344 = arith.mulf %343, %9 : vector<16x256xf32>
    %345 = arith.addf %341, %344 : vector<16x256xf32>
    %c3_164 = arith.constant 3 : index
    %c7_165 = arith.constant 7 : index
    %346 = memref.load %arg1[%c3_164, %c7_165] : memref<10x8xf32, #tpu.memory_space<smem>>
    %347 = vector.broadcast %346 : f32 to vector<16x256xf32>
    %348 = arith.mulf %347, %12 : vector<16x256xf32>
    %349 = arith.addf %345, %348 : vector<16x256xf32>
    %c4_166 = arith.constant 4 : index
    %c7_167 = arith.constant 7 : index
    %350 = memref.load %arg1[%c4_166, %c7_167] : memref<10x8xf32, #tpu.memory_space<smem>>
    %351 = vector.broadcast %350 : f32 to vector<16x256xf32>
    %352 = arith.mulf %351, %13 : vector<16x256xf32>
    %353 = arith.addf %349, %352 : vector<16x256xf32>
    %c5_168 = arith.constant 5 : index
    %c7_169 = arith.constant 7 : index
    %354 = memref.load %arg1[%c5_168, %c7_169] : memref<10x8xf32, #tpu.memory_space<smem>>
    %355 = vector.broadcast %354 : f32 to vector<16x256xf32>
    %356 = arith.mulf %355, %16 : vector<16x256xf32>
    %357 = arith.addf %353, %356 : vector<16x256xf32>
    %c6_170 = arith.constant 6 : index
    %c7_171 = arith.constant 7 : index
    %358 = memref.load %arg1[%c6_170, %c7_171] : memref<10x8xf32, #tpu.memory_space<smem>>
    %359 = vector.broadcast %358 : f32 to vector<16x256xf32>
    %360 = arith.mulf %359, %19 : vector<16x256xf32>
    %361 = arith.addf %357, %360 : vector<16x256xf32>
    %c7_172 = arith.constant 7 : index
    %c7_173 = arith.constant 7 : index
    %362 = memref.load %arg1[%c7_172, %c7_173] : memref<10x8xf32, #tpu.memory_space<smem>>
    %363 = vector.broadcast %362 : f32 to vector<16x256xf32>
    %364 = arith.mulf %363, %20 : vector<16x256xf32>
    %365 = arith.addf %361, %364 : vector<16x256xf32>
    %c8_174 = arith.constant 8 : index
    %c7_175 = arith.constant 7 : index
    %366 = memref.load %arg1[%c8_174, %c7_175] : memref<10x8xf32, #tpu.memory_space<smem>>
    %367 = vector.broadcast %366 : f32 to vector<16x256xf32>
    %368 = arith.mulf %367, %23 : vector<16x256xf32>
    %369 = arith.addf %365, %368 : vector<16x256xf32>
    %cst_176 = arith.constant 0.000000e+00 : f32
    %370 = vector.broadcast %cst_176 : f32 to vector<16x256xf32>
    %371 = arith.maximumf %369, %370 : vector<16x256xf32>
    %cst_177 = arith.constant dense<0.000000e+00> : vector<16xf32>
    %372 = vector.multi_reduction <add>, %371, %cst_177 [1] : vector<16x256xf32> to vector<16xf32>
    %373 = vector.shape_cast %372 : vector<16xf32> to vector<16x1xf32>
    %cst_178 = arith.constant 2.560000e+02 : f32
    %374 = vector.broadcast %cst_178 : f32 to vector<16x1xf32>
    %375 = arith.divf %373, %374 : vector<16x1xf32>
    %376 = tpu.concatenate %67, %111, %155, %199, %243, %287, %331, %375 in 1 : vector<16x1xf32>, vector<16x1xf32>, vector<16x1xf32>, vector<16x1xf32>, vector<16x1xf32>, vector<16x1xf32>, vector<16x1xf32>, vector<16x1xf32> -> vector<16x8xf32>
    %c0_179 = arith.constant 0 : index
    %c0_180 = arith.constant 0 : index
    %377 = vector.load %arg5[%c0_179, %c0_180] : memref<8x32xf32, #tpu.memory_space<vmem>>, vector<8x32xf32>
    %cst_181 = arith.constant dense<0.000000e+00> : vector<16x32xf32>
    %378 = tpu.matmul %376, %377, %cst_181 {dimension_numbers = #tpu.dot_dimension_numbers<[1], [0], [0], [1], [0, 0, 1, 1], [], []>} : vector<16x8xf32>, vector<8x32xf32>, vector<16x32xf32> -> vector<16x32xf32>
    %c0_182 = arith.constant 0 : index
    %c0_183 = arith.constant 0 : index
    %379 = vector.load %arg6[%c0_182, %c0_183] : memref<1x32xf32, #tpu.memory_space<vmem>>, vector<1x32xf32>
    %380 = vector.broadcast %379 : vector<1x32xf32> to vector<16x32xf32>
    %381 = arith.addf %378, %380 : vector<16x32xf32>
    %c0_184 = arith.constant 0 : index
    %c0_185 = arith.constant 0 : index
    %382 = vector.load %arg7[%c0_184, %c0_185] : memref<256x32xf32, #tpu.memory_space<vmem>>, vector<256x32xf32>
    %cst_186 = arith.constant dense<0.000000e+00> : vector<16x32xf32>
    %383 = tpu.matmul %13, %382, %cst_186 {dimension_numbers = #tpu.dot_dimension_numbers<[1], [0], [0], [1], [0, 0, 1, 1], [], []>} : vector<16x256xf32>, vector<256x32xf32>, vector<16x32xf32> -> vector<16x32xf32>
    %c0_187 = arith.constant 0 : index
    %c0_188 = arith.constant 0 : index
    %384 = vector.load %arg8[%c0_187, %c0_188] : memref<1x32xf32, #tpu.memory_space<vmem>>, vector<1x32xf32>
    %385 = vector.broadcast %384 : vector<1x32xf32> to vector<16x32xf32>
    %386 = arith.addf %383, %385 : vector<16x32xf32>
    %387 = math.tanh %386 : vector<16x32xf32>
    %c0_189 = arith.constant 0 : index
    %c0_190 = arith.constant 0 : index
    %388 = vector.load %arg4[%c0_189, %c0_190] : memref<16x64xf32, #tpu.memory_space<vmem>>, vector<16x64xf32>
    %389 = tpu.concatenate %381, %387, %388 in 1 : vector<16x32xf32>, vector<16x32xf32>, vector<16x64xf32> -> vector<16x128xf32>
    %c0_191 = arith.constant 0 : index
    %c0_192 = arith.constant 0 : index
    %390 = vector.load %arg9[%c0_191, %c0_192] : memref<128x128xf32, #tpu.memory_space<vmem>>, vector<128x128xf32>
    %cst_193 = arith.constant dense<0.000000e+00> : vector<16x128xf32>
    %391 = tpu.matmul %389, %390, %cst_193 {dimension_numbers = #tpu.dot_dimension_numbers<[1], [0], [0], [1], [0, 0, 1, 1], [], []>} : vector<16x128xf32>, vector<128x128xf32>, vector<16x128xf32> -> vector<16x128xf32>
    %c0_194 = arith.constant 0 : index
    %c0_195 = arith.constant 0 : index
    %392 = vector.load %arg10[%c0_194, %c0_195] : memref<1x128xf32, #tpu.memory_space<vmem>>, vector<1x128xf32>
    %393 = vector.broadcast %392 : vector<1x128xf32> to vector<16x128xf32>
    %394 = arith.addf %391, %393 : vector<16x128xf32>
    %395 = arith.negf %394 : vector<16x128xf32>
    %396 = math.exp %395 : vector<16x128xf32>
    %cst_196 = arith.constant 1.000000e+00 : f32
    %397 = vector.broadcast %cst_196 : f32 to vector<16x128xf32>
    %398 = arith.addf %397, %396 : vector<16x128xf32>
    %399 = arith.divf %397, %398 : vector<16x128xf32>
    %400 = arith.mulf %399, %389 : vector<16x128xf32>
    %c0_197 = arith.constant 0 : index
    %c0_198 = arith.constant 0 : index
    %401 = vector.load %arg11[%c0_197, %c0_198] : memref<16x128xf32, #tpu.memory_space<vmem>>, vector<16x128xf32>
    tpu.vector_store %arg11[%c0_197, %c0_198], %400 {strides = array<i32>} : memref<16x128xf32, #tpu.memory_space<vmem>>, vector<16x128xf32>,
    return
  }
  func.func @transform_0(%arg0: i32) -> (i32, i32) {
    %c0_i32 = arith.constant 0 : i32
    %c0_i32_0 = arith.constant 0 : i32
    %c0_i32_1 = arith.constant 0 : i32
    return %c0_i32, %c0_i32_0 : i32, i32
  }
  func.func @transform_1(%arg0: i32) -> (i32, i32) {
    %c0_i32 = arith.constant 0 : i32
    %c0_i32_0 = arith.constant 0 : i32
    %c0_i32_1 = arith.constant 0 : i32
    return %c0_i32, %c0_i32_0 : i32, i32
  }
  func.func @transform_2(%arg0: i32) -> (i32, i32) {
    %c0_i32 = arith.constant 0 : i32
    %c0_i32_0 = arith.constant 0 : i32
    return %arg0, %c0_i32 : i32, i32
  }
  func.func @transform_3(%arg0: i32) -> (i32, i32) {
    %c0_i32 = arith.constant 0 : i32
    %c0_i32_0 = arith.constant 0 : i32
    return %arg0, %c0_i32 : i32, i32
  }
  func.func @transform_4(%arg0: i32) -> (i32, i32) {
    %c0_i32 = arith.constant 0 : i32
    %c0_i32_0 = arith.constant 0 : i32
    %c0_i32_1 = arith.constant 0 : i32
    return %c0_i32, %c0_i32_0 : i32, i32
  }
  func.func @transform_5(%arg0: i32) -> (i32, i32) {
    %c0_i32 = arith.constant 0 : i32
    %c0_i32_0 = arith.constant 0 : i32
    %c0_i32_1 = arith.constant 0 : i32
    return %c0_i32, %c0_i32_0 : i32, i32
  }
  func.func @transform_6(%arg0: i32) -> (i32, i32) {
    %c0_i32 = arith.constant 0 : i32
    %c0_i32_0 = arith.constant 0 : i32
    %c0_i32_1 = arith.constant 0 : i32
    return %c0_i32, %c0_i32_0 : i32, i32
  }
  func.func @transform_7(%arg0: i32) -> (i32, i32) {
    %c0_i32 = arith.constant 0 : i32
    %c0_i32_0 = arith.constant 0 : i32
    %c0_i32_1 = arith.constant 0 : i32
    return %c0_i32, %c0_i32_0 : i32, i32
  }
  func.func @transform_8(%arg0: i32) -> (i32, i32) {
    %c0_i32 = arith.constant 0 : i32
    %c0_i32_0 = arith.constant 0 : i32
    %c0_i32_1 = arith.constant 0 : i32
    return %c0_i32, %c0_i32_0 : i32, i32
  }
  func.func @transform_9(%arg0: i32) -> (i32, i32) {
    %c0_i32 = arith.constant 0 : i32
    %c0_i32_0 = arith.constant 0 : i32
    %c0_i32_1 = arith.constant 0 : i32
    return %c0_i32, %c0_i32_0 : i32, i32
  }
  func.func @transform_10(%arg0: i32) -> (i32, i32) {
    %c0_i32 = arith.constant 0 : i32
    %c0_i32_0 = arith.constant 0 : i32
    return %arg0, %c0_i32 : i32, i32
  }
}

module attributes {stable_mosaic.version = 11 : i64} {
  func.func @_dialog_kernel(%arg0: i32, %arg1: memref<28x128xf32, #tpu.memory_space<vmem>>, %arg2: memref<4x4xf32, #tpu.memory_space<vmem>>, %arg3: memref<4x4xf32, #tpu.memory_space<vmem>>, %arg4: memref<3x128x128xf32, #tpu.memory_space<vmem>>, %arg5: memref<1x128xf32, #tpu.memory_space<vmem>>, %arg6: memref<4x128x384xf32, #tpu.memory_space<vmem>>, %arg7: memref<1x128xf32, #tpu.memory_space<vmem>>, %arg8: memref<128x128xf32, #tpu.memory_space<vmem>>, %arg9: memref<1x128xf32, #tpu.memory_space<vmem>>, %arg10: memref<4x128xf32, #tpu.memory_space<vmem>>) attributes {dimension_semantics = [#tpu.dimension_semantics<arbitrary>], iteration_bounds = array<i64: 1>, scalar_prefetch = 0 : i64, scratch_operands = 0 : i64, tpu.core_type = #tpu.core_type<tc>, window_params = [{pipeline_mode = #tpu.pipeline_mode<synchronous>, transform_indices = @transform_0, window_bounds = array<i64: 28, 128>}, {pipeline_mode = #tpu.pipeline_mode<synchronous>, transform_indices = @transform_1, window_bounds = array<i64: 4, 4>}, {pipeline_mode = #tpu.pipeline_mode<synchronous>, transform_indices = @transform_2, window_bounds = array<i64: 4, 4>}, {pipeline_mode = #tpu.pipeline_mode<synchronous>, transform_indices = @transform_3, window_bounds = array<i64: 3, 128, 128>}, {pipeline_mode = #tpu.pipeline_mode<synchronous>, transform_indices = @transform_4, window_bounds = array<i64: 1, 128>}, {pipeline_mode = #tpu.pipeline_mode<synchronous>, transform_indices = @transform_5, window_bounds = array<i64: 4, 128, 384>}, {pipeline_mode = #tpu.pipeline_mode<synchronous>, transform_indices = @transform_6, window_bounds = array<i64: 1, 128>}, {pipeline_mode = #tpu.pipeline_mode<synchronous>, transform_indices = @transform_7, window_bounds = array<i64: 128, 128>}, {pipeline_mode = #tpu.pipeline_mode<synchronous>, transform_indices = @transform_8, window_bounds = array<i64: 1, 128>}, {pipeline_mode = #tpu.pipeline_mode<synchronous>, transform_indices = @transform_9, window_bounds = array<i64: 4, 128>}]} {
    %c0 = arith.constant 0 : index
    %c0_0 = arith.constant 0 : index
    %0 = vector.load %arg1[%c0, %c0_0] : memref<28x128xf32, #tpu.memory_space<vmem>>, vector<28x128xf32>
    %c0_1 = arith.constant 0 : index
    %c0_2 = arith.constant 0 : index
    %1 = vector.load %arg5[%c0_1, %c0_2] : memref<1x128xf32, #tpu.memory_space<vmem>>, vector<1x128xf32>
    %c0_3 = arith.constant 0 : index
    %c0_4 = arith.constant 0 : index
    %c0_5 = arith.constant 0 : index
    %2 = vector.load %arg4[%c0_3, %c0_4, %c0_5] : memref<3x128x128xf32, #tpu.memory_space<vmem>>, vector<1x128x128xf32>
    %3 = vector.shape_cast %2 : vector<1x128x128xf32> to vector<128x128xf32>
    %cst = arith.constant dense<0.000000e+00> : vector<28x128xf32>
    %4 = tpu.matmul %0, %3, %cst {dimension_numbers = #tpu.dot_dimension_numbers<[1], [0], [0], [1], [0, 0, 1, 1], [], []>} : vector<28x128xf32>, vector<128x128xf32>, vector<28x128xf32> -> vector<28x128xf32>
    %c1 = arith.constant 1 : index
    %c0_6 = arith.constant 0 : index
    %c0_7 = arith.constant 0 : index
    %5 = vector.load %arg4[%c1, %c0_6, %c0_7] : memref<3x128x128xf32, #tpu.memory_space<vmem>>, vector<1x128x128xf32>
    %6 = vector.shape_cast %5 : vector<1x128x128xf32> to vector<128x128xf32>
    %cst_8 = arith.constant dense<0.000000e+00> : vector<28x128xf32>
    %7 = tpu.matmul %0, %6, %cst_8 {dimension_numbers = #tpu.dot_dimension_numbers<[1], [0], [0], [1], [0, 0, 1, 1], [], []>} : vector<28x128xf32>, vector<128x128xf32>, vector<28x128xf32> -> vector<28x128xf32>
    %c2 = arith.constant 2 : index
    %c0_9 = arith.constant 0 : index
    %c0_10 = arith.constant 0 : index
    %8 = vector.load %arg4[%c2, %c0_9, %c0_10] : memref<3x128x128xf32, #tpu.memory_space<vmem>>, vector<1x128x128xf32>
    %9 = vector.shape_cast %8 : vector<1x128x128xf32> to vector<128x128xf32>
    %cst_11 = arith.constant dense<0.000000e+00> : vector<28x128xf32>
    %10 = tpu.matmul %0, %9, %cst_11 {dimension_numbers = #tpu.dot_dimension_numbers<[1], [0], [0], [1], [0, 0, 1, 1], [], []>} : vector<28x128xf32>, vector<128x128xf32>, vector<28x128xf32> -> vector<28x128xf32>
    %11 = vector.extract_strided_slice %4 {offsets = [0, 0], sizes = [5, 128], strides = [1, 1]} : vector<28x128xf32> to vector<5x128xf32>
    %12 = vector.extract_strided_slice %7 {offsets = [1, 0], sizes = [5, 128], strides = [1, 1]} : vector<28x128xf32> to vector<5x128xf32>
    %13 = arith.addf %11, %12 : vector<5x128xf32>
    %14 = vector.extract_strided_slice %10 {offsets = [2, 0], sizes = [5, 128], strides = [1, 1]} : vector<28x128xf32> to vector<5x128xf32>
    %15 = arith.addf %13, %14 : vector<5x128xf32>
    %16 = vector.broadcast %1 : vector<1x128xf32> to vector<5x128xf32>
    %17 = arith.addf %15, %16 : vector<5x128xf32>
    %cst_12 = arith.constant 0.000000e+00 : f32
    %18 = vector.broadcast %cst_12 : f32 to vector<5x128xf32>
    %19 = arith.maximumf %17, %18 : vector<5x128xf32>
    %20 = vector.extract_strided_slice %0 {offsets = [2, 0], sizes = [5, 128], strides = [1, 1]} : vector<28x128xf32> to vector<5x128xf32>
    %21 = arith.addf %19, %20 : vector<5x128xf32>
    %22 = vector.extract_strided_slice %4 {offsets = [7, 0], sizes = [5, 128], strides = [1, 1]} : vector<28x128xf32> to vector<5x128xf32>
    %23 = vector.extract_strided_slice %7 {offsets = [8, 0], sizes = [5, 128], strides = [1, 1]} : vector<28x128xf32> to vector<5x128xf32>
    %24 = arith.addf %22, %23 : vector<5x128xf32>
    %25 = vector.extract_strided_slice %10 {offsets = [9, 0], sizes = [5, 128], strides = [1, 1]} : vector<28x128xf32> to vector<5x128xf32>
    %26 = arith.addf %24, %25 : vector<5x128xf32>
    %27 = vector.broadcast %1 : vector<1x128xf32> to vector<5x128xf32>
    %28 = arith.addf %26, %27 : vector<5x128xf32>
    %cst_13 = arith.constant 0.000000e+00 : f32
    %29 = vector.broadcast %cst_13 : f32 to vector<5x128xf32>
    %30 = arith.maximumf %28, %29 : vector<5x128xf32>
    %31 = vector.extract_strided_slice %0 {offsets = [9, 0], sizes = [5, 128], strides = [1, 1]} : vector<28x128xf32> to vector<5x128xf32>
    %32 = arith.addf %30, %31 : vector<5x128xf32>
    %33 = vector.extract_strided_slice %4 {offsets = [14, 0], sizes = [5, 128], strides = [1, 1]} : vector<28x128xf32> to vector<5x128xf32>
    %34 = vector.extract_strided_slice %7 {offsets = [15, 0], sizes = [5, 128], strides = [1, 1]} : vector<28x128xf32> to vector<5x128xf32>
    %35 = arith.addf %33, %34 : vector<5x128xf32>
    %36 = vector.extract_strided_slice %10 {offsets = [16, 0], sizes = [5, 128], strides = [1, 1]} : vector<28x128xf32> to vector<5x128xf32>
    %37 = arith.addf %35, %36 : vector<5x128xf32>
    %38 = vector.broadcast %1 : vector<1x128xf32> to vector<5x128xf32>
    %39 = arith.addf %37, %38 : vector<5x128xf32>
    %cst_14 = arith.constant 0.000000e+00 : f32
    %40 = vector.broadcast %cst_14 : f32 to vector<5x128xf32>
    %41 = arith.maximumf %39, %40 : vector<5x128xf32>
    %42 = vector.extract_strided_slice %0 {offsets = [16, 0], sizes = [5, 128], strides = [1, 1]} : vector<28x128xf32> to vector<5x128xf32>
    %43 = arith.addf %41, %42 : vector<5x128xf32>
    %44 = vector.extract_strided_slice %4 {offsets = [21, 0], sizes = [5, 128], strides = [1, 1]} : vector<28x128xf32> to vector<5x128xf32>
    %45 = vector.extract_strided_slice %7 {offsets = [22, 0], sizes = [5, 128], strides = [1, 1]} : vector<28x128xf32> to vector<5x128xf32>
    %46 = arith.addf %44, %45 : vector<5x128xf32>
    %47 = vector.extract_strided_slice %10 {offsets = [23, 0], sizes = [5, 128], strides = [1, 1]} : vector<28x128xf32> to vector<5x128xf32>
    %48 = arith.addf %46, %47 : vector<5x128xf32>
    %49 = vector.broadcast %1 : vector<1x128xf32> to vector<5x128xf32>
    %50 = arith.addf %48, %49 : vector<5x128xf32>
    %cst_15 = arith.constant 0.000000e+00 : f32
    %51 = vector.broadcast %cst_15 : f32 to vector<5x128xf32>
    %52 = arith.maximumf %50, %51 : vector<5x128xf32>
    %53 = vector.extract_strided_slice %0 {offsets = [23, 0], sizes = [5, 128], strides = [1, 1]} : vector<28x128xf32> to vector<5x128xf32>
    %54 = arith.addf %52, %53 : vector<5x128xf32>
    %cst_16 = arith.constant 0.000000e+00 : f32
    %55 = vector.broadcast %cst_16 : f32 to vector<4x384xf32>
    %56 = vector.extract_strided_slice %21 {offsets = [0, 0], sizes = [2, 128], strides = [1, 1]} : vector<5x128xf32> to vector<2x128xf32>
    %cst_17 = arith.constant dense<0.000000e+00> : vector<128xf32>
    %57 = vector.multi_reduction <add>, %56, %cst_17 [0] : vector<2x128xf32> to vector<128xf32>
    %58 = vector.shape_cast %57 : vector<128xf32> to vector<1x128xf32>
    %cst_18 = arith.constant 2.000000e+00 : f32
    %59 = vector.broadcast %cst_18 : f32 to vector<1x128xf32>
    %60 = arith.divf %58, %59 : vector<1x128xf32>
    %61 = vector.extract_strided_slice %32 {offsets = [0, 0], sizes = [2, 128], strides = [1, 1]} : vector<5x128xf32> to vector<2x128xf32>
    %cst_19 = arith.constant dense<0.000000e+00> : vector<128xf32>
    %62 = vector.multi_reduction <add>, %61, %cst_19 [0] : vector<2x128xf32> to vector<128xf32>
    %63 = vector.shape_cast %62 : vector<128xf32> to vector<1x128xf32>
    %cst_20 = arith.constant 2.000000e+00 : f32
    %64 = vector.broadcast %cst_20 : f32 to vector<1x128xf32>
    %65 = arith.divf %63, %64 : vector<1x128xf32>
    %66 = vector.extract_strided_slice %43 {offsets = [0, 0], sizes = [2, 128], strides = [1, 1]} : vector<5x128xf32> to vector<2x128xf32>
    %cst_21 = arith.constant dense<0.000000e+00> : vector<128xf32>
    %67 = vector.multi_reduction <add>, %66, %cst_21 [0] : vector<2x128xf32> to vector<128xf32>
    %68 = vector.shape_cast %67 : vector<128xf32> to vector<1x128xf32>
    %cst_22 = arith.constant 2.000000e+00 : f32
    %69 = vector.broadcast %cst_22 : f32 to vector<1x128xf32>
    %70 = arith.divf %68, %69 : vector<1x128xf32>
    %71 = vector.extract_strided_slice %54 {offsets = [0, 0], sizes = [2, 128], strides = [1, 1]} : vector<5x128xf32> to vector<2x128xf32>
    %cst_23 = arith.constant dense<0.000000e+00> : vector<128xf32>
    %72 = vector.multi_reduction <add>, %71, %cst_23 [0] : vector<2x128xf32> to vector<128xf32>
    %73 = vector.shape_cast %72 : vector<128xf32> to vector<1x128xf32>
    %cst_24 = arith.constant 2.000000e+00 : f32
    %74 = vector.broadcast %cst_24 : f32 to vector<1x128xf32>
    %75 = arith.divf %73, %74 : vector<1x128xf32>
    %76 = tpu.concatenate %60, %65, %70, %75 in 0 : vector<1x128xf32>, vector<1x128xf32>, vector<1x128xf32>, vector<1x128xf32> -> vector<4x128xf32>
    %c0_25 = arith.constant 0 : index
    %c0_26 = arith.constant 0 : index
    %c0_27 = arith.constant 0 : index
    %77 = vector.load %arg6[%c0_25, %c0_26, %c0_27] : memref<4x128x384xf32, #tpu.memory_space<vmem>>, vector<1x128x384xf32>
    %78 = vector.shape_cast %77 : vector<1x128x384xf32> to vector<128x384xf32>
    %cst_28 = arith.constant dense<0.000000e+00> : vector<4x384xf32>
    %79 = tpu.matmul %76, %78, %cst_28 {dimension_numbers = #tpu.dot_dimension_numbers<[1], [0], [0], [1], [0, 0, 1, 1], [], []>} : vector<4x128xf32>, vector<128x384xf32>, vector<4x384xf32> -> vector<4x384xf32>
    %80 = arith.addf %55, %79 : vector<4x384xf32>
    %81 = vector.extract_strided_slice %21 {offsets = [1, 0], sizes = [2, 128], strides = [1, 1]} : vector<5x128xf32> to vector<2x128xf32>
    %cst_29 = arith.constant dense<0.000000e+00> : vector<128xf32>
    %82 = vector.multi_reduction <add>, %81, %cst_29 [0] : vector<2x128xf32> to vector<128xf32>
    %83 = vector.shape_cast %82 : vector<128xf32> to vector<1x128xf32>
    %cst_30 = arith.constant 2.000000e+00 : f32
    %84 = vector.broadcast %cst_30 : f32 to vector<1x128xf32>
    %85 = arith.divf %83, %84 : vector<1x128xf32>
    %86 = vector.extract_strided_slice %32 {offsets = [1, 0], sizes = [2, 128], strides = [1, 1]} : vector<5x128xf32> to vector<2x128xf32>
    %cst_31 = arith.constant dense<0.000000e+00> : vector<128xf32>
    %87 = vector.multi_reduction <add>, %86, %cst_31 [0] : vector<2x128xf32> to vector<128xf32>
    %88 = vector.shape_cast %87 : vector<128xf32> to vector<1x128xf32>
    %cst_32 = arith.constant 2.000000e+00 : f32
    %89 = vector.broadcast %cst_32 : f32 to vector<1x128xf32>
    %90 = arith.divf %88, %89 : vector<1x128xf32>
    %91 = vector.extract_strided_slice %43 {offsets = [1, 0], sizes = [2, 128], strides = [1, 1]} : vector<5x128xf32> to vector<2x128xf32>
    %cst_33 = arith.constant dense<0.000000e+00> : vector<128xf32>
    %92 = vector.multi_reduction <add>, %91, %cst_33 [0] : vector<2x128xf32> to vector<128xf32>
    %93 = vector.shape_cast %92 : vector<128xf32> to vector<1x128xf32>
    %cst_34 = arith.constant 2.000000e+00 : f32
    %94 = vector.broadcast %cst_34 : f32 to vector<1x128xf32>
    %95 = arith.divf %93, %94 : vector<1x128xf32>
    %96 = vector.extract_strided_slice %54 {offsets = [1, 0], sizes = [2, 128], strides = [1, 1]} : vector<5x128xf32> to vector<2x128xf32>
    %cst_35 = arith.constant dense<0.000000e+00> : vector<128xf32>
    %97 = vector.multi_reduction <add>, %96, %cst_35 [0] : vector<2x128xf32> to vector<128xf32>
    %98 = vector.shape_cast %97 : vector<128xf32> to vector<1x128xf32>
    %cst_36 = arith.constant 2.000000e+00 : f32
    %99 = vector.broadcast %cst_36 : f32 to vector<1x128xf32>
    %100 = arith.divf %98, %99 : vector<1x128xf32>
    %101 = tpu.concatenate %85, %90, %95, %100 in 0 : vector<1x128xf32>, vector<1x128xf32>, vector<1x128xf32>, vector<1x128xf32> -> vector<4x128xf32>
    %c1_37 = arith.constant 1 : index
    %c0_38 = arith.constant 0 : index
    %c0_39 = arith.constant 0 : index
    %102 = vector.load %arg6[%c1_37, %c0_38, %c0_39] : memref<4x128x384xf32, #tpu.memory_space<vmem>>, vector<1x128x384xf32>
    %103 = vector.shape_cast %102 : vector<1x128x384xf32> to vector<128x384xf32>
    %cst_40 = arith.constant dense<0.000000e+00> : vector<4x384xf32>
    %104 = tpu.matmul %101, %103, %cst_40 {dimension_numbers = #tpu.dot_dimension_numbers<[1], [0], [0], [1], [0, 0, 1, 1], [], []>} : vector<4x128xf32>, vector<128x384xf32>, vector<4x384xf32> -> vector<4x384xf32>
    %105 = arith.addf %80, %104 : vector<4x384xf32>
    %106 = vector.extract_strided_slice %21 {offsets = [2, 0], sizes = [2, 128], strides = [1, 1]} : vector<5x128xf32> to vector<2x128xf32>
    %cst_41 = arith.constant dense<0.000000e+00> : vector<128xf32>
    %107 = vector.multi_reduction <add>, %106, %cst_41 [0] : vector<2x128xf32> to vector<128xf32>
    %108 = vector.shape_cast %107 : vector<128xf32> to vector<1x128xf32>
    %cst_42 = arith.constant 2.000000e+00 : f32
    %109 = vector.broadcast %cst_42 : f32 to vector<1x128xf32>
    %110 = arith.divf %108, %109 : vector<1x128xf32>
    %111 = vector.extract_strided_slice %32 {offsets = [2, 0], sizes = [2, 128], strides = [1, 1]} : vector<5x128xf32> to vector<2x128xf32>
    %cst_43 = arith.constant dense<0.000000e+00> : vector<128xf32>
    %112 = vector.multi_reduction <add>, %111, %cst_43 [0] : vector<2x128xf32> to vector<128xf32>
    %113 = vector.shape_cast %112 : vector<128xf32> to vector<1x128xf32>
    %cst_44 = arith.constant 2.000000e+00 : f32
    %114 = vector.broadcast %cst_44 : f32 to vector<1x128xf32>
    %115 = arith.divf %113, %114 : vector<1x128xf32>
    %116 = vector.extract_strided_slice %43 {offsets = [2, 0], sizes = [2, 128], strides = [1, 1]} : vector<5x128xf32> to vector<2x128xf32>
    %cst_45 = arith.constant dense<0.000000e+00> : vector<128xf32>
    %117 = vector.multi_reduction <add>, %116, %cst_45 [0] : vector<2x128xf32> to vector<128xf32>
    %118 = vector.shape_cast %117 : vector<128xf32> to vector<1x128xf32>
    %cst_46 = arith.constant 2.000000e+00 : f32
    %119 = vector.broadcast %cst_46 : f32 to vector<1x128xf32>
    %120 = arith.divf %118, %119 : vector<1x128xf32>
    %121 = vector.extract_strided_slice %54 {offsets = [2, 0], sizes = [2, 128], strides = [1, 1]} : vector<5x128xf32> to vector<2x128xf32>
    %cst_47 = arith.constant dense<0.000000e+00> : vector<128xf32>
    %122 = vector.multi_reduction <add>, %121, %cst_47 [0] : vector<2x128xf32> to vector<128xf32>
    %123 = vector.shape_cast %122 : vector<128xf32> to vector<1x128xf32>
    %cst_48 = arith.constant 2.000000e+00 : f32
    %124 = vector.broadcast %cst_48 : f32 to vector<1x128xf32>
    %125 = arith.divf %123, %124 : vector<1x128xf32>
    %126 = tpu.concatenate %110, %115, %120, %125 in 0 : vector<1x128xf32>, vector<1x128xf32>, vector<1x128xf32>, vector<1x128xf32> -> vector<4x128xf32>
    %c2_49 = arith.constant 2 : index
    %c0_50 = arith.constant 0 : index
    %c0_51 = arith.constant 0 : index
    %127 = vector.load %arg6[%c2_49, %c0_50, %c0_51] : memref<4x128x384xf32, #tpu.memory_space<vmem>>, vector<1x128x384xf32>
    %128 = vector.shape_cast %127 : vector<1x128x384xf32> to vector<128x384xf32>
    %cst_52 = arith.constant dense<0.000000e+00> : vector<4x384xf32>
    %129 = tpu.matmul %126, %128, %cst_52 {dimension_numbers = #tpu.dot_dimension_numbers<[1], [0], [0], [1], [0, 0, 1, 1], [], []>} : vector<4x128xf32>, vector<128x384xf32>, vector<4x384xf32> -> vector<4x384xf32>
    %130 = arith.addf %105, %129 : vector<4x384xf32>
    %131 = vector.extract_strided_slice %21 {offsets = [3, 0], sizes = [2, 128], strides = [1, 1]} : vector<5x128xf32> to vector<2x128xf32>
    %cst_53 = arith.constant dense<0.000000e+00> : vector<128xf32>
    %132 = vector.multi_reduction <add>, %131, %cst_53 [0] : vector<2x128xf32> to vector<128xf32>
    %133 = vector.shape_cast %132 : vector<128xf32> to vector<1x128xf32>
    %cst_54 = arith.constant 2.000000e+00 : f32
    %134 = vector.broadcast %cst_54 : f32 to vector<1x128xf32>
    %135 = arith.divf %133, %134 : vector<1x128xf32>
    %136 = vector.extract_strided_slice %32 {offsets = [3, 0], sizes = [2, 128], strides = [1, 1]} : vector<5x128xf32> to vector<2x128xf32>
    %cst_55 = arith.constant dense<0.000000e+00> : vector<128xf32>
    %137 = vector.multi_reduction <add>, %136, %cst_55 [0] : vector<2x128xf32> to vector<128xf32>
    %138 = vector.shape_cast %137 : vector<128xf32> to vector<1x128xf32>
    %cst_56 = arith.constant 2.000000e+00 : f32
    %139 = vector.broadcast %cst_56 : f32 to vector<1x128xf32>
    %140 = arith.divf %138, %139 : vector<1x128xf32>
    %141 = vector.extract_strided_slice %43 {offsets = [3, 0], sizes = [2, 128], strides = [1, 1]} : vector<5x128xf32> to vector<2x128xf32>
    %cst_57 = arith.constant dense<0.000000e+00> : vector<128xf32>
    %142 = vector.multi_reduction <add>, %141, %cst_57 [0] : vector<2x128xf32> to vector<128xf32>
    %143 = vector.shape_cast %142 : vector<128xf32> to vector<1x128xf32>
    %cst_58 = arith.constant 2.000000e+00 : f32
    %144 = vector.broadcast %cst_58 : f32 to vector<1x128xf32>
    %145 = arith.divf %143, %144 : vector<1x128xf32>
    %146 = vector.extract_strided_slice %54 {offsets = [3, 0], sizes = [2, 128], strides = [1, 1]} : vector<5x128xf32> to vector<2x128xf32>
    %cst_59 = arith.constant dense<0.000000e+00> : vector<128xf32>
    %147 = vector.multi_reduction <add>, %146, %cst_59 [0] : vector<2x128xf32> to vector<128xf32>
    %148 = vector.shape_cast %147 : vector<128xf32> to vector<1x128xf32>
    %cst_60 = arith.constant 2.000000e+00 : f32
    %149 = vector.broadcast %cst_60 : f32 to vector<1x128xf32>
    %150 = arith.divf %148, %149 : vector<1x128xf32>
    %151 = tpu.concatenate %135, %140, %145, %150 in 0 : vector<1x128xf32>, vector<1x128xf32>, vector<1x128xf32>, vector<1x128xf32> -> vector<4x128xf32>
    %c3 = arith.constant 3 : index
    %c0_61 = arith.constant 0 : index
    %c0_62 = arith.constant 0 : index
    %152 = vector.load %arg6[%c3, %c0_61, %c0_62] : memref<4x128x384xf32, #tpu.memory_space<vmem>>, vector<1x128x384xf32>
    %153 = vector.shape_cast %152 : vector<1x128x384xf32> to vector<128x384xf32>
    %cst_63 = arith.constant dense<0.000000e+00> : vector<4x384xf32>
    %154 = tpu.matmul %151, %153, %cst_63 {dimension_numbers = #tpu.dot_dimension_numbers<[1], [0], [0], [1], [0, 0, 1, 1], [], []>} : vector<4x128xf32>, vector<128x384xf32>, vector<4x384xf32> -> vector<4x384xf32>
    %155 = arith.addf %130, %154 : vector<4x384xf32>
    %c0_64 = arith.constant 0 : index
    %c0_65 = arith.constant 0 : index
    %156 = vector.load %arg2[%c0_64, %c0_65] : memref<4x4xf32, #tpu.memory_space<vmem>>, vector<4x4xf32>
    %157 = vector.extract_strided_slice %155 {offsets = [0, 0], sizes = [4, 128], strides = [1, 1]} : vector<4x384xf32> to vector<4x128xf32>
    %cst_66 = arith.constant dense<0.000000e+00> : vector<4x128xf32>
    %158 = tpu.matmul %156, %157, %cst_66 {dimension_numbers = #tpu.dot_dimension_numbers<[1], [0], [0], [1], [0, 0, 1, 1], [], []>} : vector<4x4xf32>, vector<4x128xf32>, vector<4x128xf32> -> vector<4x128xf32>
    %c0_67 = arith.constant 0 : index
    %c0_68 = arith.constant 0 : index
    %159 = vector.load %arg3[%c0_67, %c0_68] : memref<4x4xf32, #tpu.memory_space<vmem>>, vector<4x4xf32>
    %160 = vector.extract_strided_slice %155 {offsets = [0, 128], sizes = [4, 128], strides = [1, 1]} : vector<4x384xf32> to vector<4x128xf32>
    %cst_69 = arith.constant dense<0.000000e+00> : vector<4x128xf32>
    %161 = tpu.matmul %159, %160, %cst_69 {dimension_numbers = #tpu.dot_dimension_numbers<[1], [0], [0], [1], [0, 0, 1, 1], [], []>} : vector<4x4xf32>, vector<4x128xf32>, vector<4x128xf32> -> vector<4x128xf32>
    %162 = arith.addf %158, %161 : vector<4x128xf32>
    %163 = vector.extract_strided_slice %155 {offsets = [0, 256], sizes = [4, 128], strides = [1, 1]} : vector<4x384xf32> to vector<4x128xf32>
    %164 = arith.addf %162, %163 : vector<4x128xf32>
    %c0_70 = arith.constant 0 : index
    %c0_71 = arith.constant 0 : index
    %165 = vector.load %arg7[%c0_70, %c0_71] : memref<1x128xf32, #tpu.memory_space<vmem>>, vector<1x128xf32>
    %166 = vector.broadcast %165 : vector<1x128xf32> to vector<4x128xf32>
    %167 = arith.addf %164, %166 : vector<4x128xf32>
    %cst_72 = arith.constant 0.000000e+00 : f32
    %168 = vector.broadcast %cst_72 : f32 to vector<4x128xf32>
    %169 = arith.maximumf %167, %168 : vector<4x128xf32>
    %c0_73 = arith.constant 0 : index
    %c0_74 = arith.constant 0 : index
    %170 = vector.load %arg8[%c0_73, %c0_74] : memref<128x128xf32, #tpu.memory_space<vmem>>, vector<128x128xf32>
    %cst_75 = arith.constant dense<0.000000e+00> : vector<4x128xf32>
    %171 = tpu.matmul %169, %170, %cst_75 {dimension_numbers = #tpu.dot_dimension_numbers<[1], [0], [0], [1], [0, 0, 1, 1], [], []>} : vector<4x128xf32>, vector<128x128xf32>, vector<4x128xf32> -> vector<4x128xf32>
    %c0_76 = arith.constant 0 : index
    %c0_77 = arith.constant 0 : index
    %172 = vector.load %arg9[%c0_76, %c0_77] : memref<1x128xf32, #tpu.memory_space<vmem>>, vector<1x128xf32>
    %173 = vector.broadcast %172 : vector<1x128xf32> to vector<4x128xf32>
    %174 = arith.addf %171, %173 : vector<4x128xf32>
    %c0_78 = arith.constant 0 : index
    %c0_79 = arith.constant 0 : index
    %175 = vector.load %arg10[%c0_78, %c0_79] : memref<4x128xf32, #tpu.memory_space<vmem>>, vector<4x128xf32>
    tpu.vector_store %arg10[%c0_78, %c0_79], %174 {strides = array<i32>} : memref<4x128xf32, #tpu.memory_space<vmem>>, vector<4x128xf32>,
    return
  }
  func.func @transform_0(%arg0: i32) -> (i32, i32) {
    %c0_i32 = arith.constant 0 : i32
    %c0_i32_0 = arith.constant 0 : i32
    %c0_i32_1 = arith.constant 0 : i32
    return %c0_i32, %c0_i32_0 : i32, i32
  }
  func.func @transform_1(%arg0: i32) -> (i32, i32) {
    %c0_i32 = arith.constant 0 : i32
    %c0_i32_0 = arith.constant 0 : i32
    %c0_i32_1 = arith.constant 0 : i32
    return %c0_i32, %c0_i32_0 : i32, i32
  }
  func.func @transform_2(%arg0: i32) -> (i32, i32) {
    %c0_i32 = arith.constant 0 : i32
    %c0_i32_0 = arith.constant 0 : i32
    %c0_i32_1 = arith.constant 0 : i32
    return %c0_i32, %c0_i32_0 : i32, i32
  }
  func.func @transform_3(%arg0: i32) -> (i32, i32, i32) {
    %c0_i32 = arith.constant 0 : i32
    %c0_i32_0 = arith.constant 0 : i32
    %c0_i32_1 = arith.constant 0 : i32
    %c0_i32_2 = arith.constant 0 : i32
    return %c0_i32, %c0_i32_0, %c0_i32_1 : i32, i32, i32
  }
  func.func @transform_4(%arg0: i32) -> (i32, i32) {
    %c0_i32 = arith.constant 0 : i32
    %c0_i32_0 = arith.constant 0 : i32
    %c0_i32_1 = arith.constant 0 : i32
    return %c0_i32, %c0_i32_0 : i32, i32
  }
  func.func @transform_5(%arg0: i32) -> (i32, i32, i32) {
    %c0_i32 = arith.constant 0 : i32
    %c0_i32_0 = arith.constant 0 : i32
    %c0_i32_1 = arith.constant 0 : i32
    %c0_i32_2 = arith.constant 0 : i32
    return %c0_i32, %c0_i32_0, %c0_i32_1 : i32, i32, i32
  }
  func.func @transform_6(%arg0: i32) -> (i32, i32) {
    %c0_i32 = arith.constant 0 : i32
    %c0_i32_0 = arith.constant 0 : i32
    %c0_i32_1 = arith.constant 0 : i32
    return %c0_i32, %c0_i32_0 : i32, i32
  }
  func.func @transform_7(%arg0: i32) -> (i32, i32) {
    %c0_i32 = arith.constant 0 : i32
    %c0_i32_0 = arith.constant 0 : i32
    %c0_i32_1 = arith.constant 0 : i32
    return %c0_i32, %c0_i32_0 : i32, i32
  }
  func.func @transform_8(%arg0: i32) -> (i32, i32) {
    %c0_i32 = arith.constant 0 : i32
    %c0_i32_0 = arith.constant 0 : i32
    %c0_i32_1 = arith.constant 0 : i32
    return %c0_i32, %c0_i32_0 : i32, i32
  }
  func.func @transform_9(%arg0: i32) -> (i32, i32) {
    %c0_i32 = arith.constant 0 : i32
    %c0_i32_0 = arith.constant 0 : i32
    %c0_i32_1 = arith.constant 0 : i32
    return %c0_i32, %c0_i32_0 : i32, i32
  }
}

</mosaic_0001>

<llo_original>
// kernel: _forward_jit.3
$region0: #{_forward_jit.3}
  #allocation0 [shape = 'u32[]', space=smem, size = 0x4, offset = 0x4, fixed_abs, tag = 'smem constant byte address 0x4 - core index']
  #allocation1 [shape = 'u32[144,128]{1,0:T(1,128)}', space=vmem, size = 0x12000, scoped, tag = 'internal scratch']
  %s0 = inlined_call_operand.vmem [shape: f32[28,128], index: 0, kind: input, shape index: {}]
  %s1 = inlined_call_operand.vmem [shape: f32[4,4], index: 1, kind: input, shape index: {}]
  %s2 = inlined_call_operand.vmem [shape: f32[4,4], index: 2, kind: input, shape index: {}]
  %s3 = inlined_call_operand.hbm [shape: f32[3,128,128], index: 3, kind: input, shape index: {}]
  %s4 = inlined_call_operand.vmem [shape: f32[1,128], index: 4, kind: input, shape index: {}]
  %s5 = inlined_call_operand.vmem [shape: f32[4,128,384], index: 5, kind: input, shape index: {}]
  %s6 = inlined_call_operand.vmem [shape: f32[1,128], index: 6, kind: input, shape index: {}]
  %s7 = inlined_call_operand.hbm [shape: f32[128,128], index: 7, kind: input, shape index: {}]
  %s8 = inlined_call_operand.vmem [shape: f32[1,128], index: 8, kind: input, shape index: {}]
  %s9 = inlined_call_operand.hbm [shape: f32[4,128], index: 9, kind: output, shape index: {}]
  %s10 = sld [smem:[#allocation0]]
  $region54: #{_forward_jit.3} parent=0
    _
  %s12 = ssub.s32 1, %s10
  %s13 = scalar_select 0, %s12, %s10
  $region1: #{_forward_jit.3} parent=0
    #allocation2 [shape = 'u8[196608]{0}', space=vmem, size = 0x30000, scoped, tag = 'input window, operand 3, single buffered']
    #allocation3 [shape = 's32[1]{0}', space=sflag, size = 0x4, scoped, tag = 'scoped memory for _forward_jit.3']
    #allocation4 [shape = 's32[1]{0}', space=sflag, size = 0x4, scoped, tag = 'scoped memory for _forward_jit.3']
    #allocation5 [shape = 'u8[65536]{0}', space=vmem, size = 0x10000, scoped, tag = 'input window, operand 7, single buffered']
    #allocation6 [shape = 's32[1]{0}', space=sflag, size = 0x4, scoped, tag = 'scoped memory for _forward_jit.3']
    #allocation7 [shape = 'u8[2048]{0}', space=vmem, size = 0x800, scoped, tag = 'output window, operand 0, single buffered']
    %14 = vsyncpa [#allocation3], 0
    %15 = vsyncpa [#allocation6], 0
    %16 = vsyncpa [#allocation4], 0
    // Predicated region
    $region2: #{_forward_jit.3} parent=1 // pred_check
      _
    $region3: #{_forward_jit.3} parent=1 // pred_check_branch
      %18 = sbr.rel (0) target = $region5
    $region4: #{_forward_jit.3} parent=1 // pred_region
      _
    $region5: #{_forward_jit.3} parent=1 // pred_fallthru
      _
    // Predicated region
    $region6: #{_forward_jit.3} parent=1 // pred_check
      _
    $region7: #{_forward_jit.3} parent=1 // pred_check_branch
      %20 = sbr.rel (0) target = $region9
    $region8: #{_forward_jit.3} parent=1 // pred_region
      _
    $region9: #{_forward_jit.3} parent=1 // pred_fallthru
      _
    // Predicated region
    $region10: #{_forward_jit.3} parent=1 // pred_check
      _
    $region11: #{_forward_jit.3} parent=1 // pred_check_branch
      %22 = sbr.rel (0) target = $region13
    $region12: #{_forward_jit.3} parent=1 // pred_region
      _
    $region13: #{_forward_jit.3} parent=1 // pred_fallthru
      _
    // Predicated region
    $region14: #{_forward_jit.3} parent=1 // pred_check
      _
    $region15: #{_forward_jit.3} parent=1 // pred_check_branch
      %24 = sbr.rel (0) target = $region17
    $region16: #{_forward_jit.3} parent=1 // pred_region
      %s26 = ssub.s32 6144, 6144
      %27 = vsyncadd [#allocation3], %s26
      %s28 = sshll.u32 [#allocation2], 4
      %s29 = int_to_ptr.vmem [resolvable:$true] %s28
      %34 = dma.hbm_to_vmem [thread:$0]  %s3, 6144, %s29, [#allocation3], 128, 128, 8
    $region17: #{_forward_jit.3} parent=1 // pred_fallthru
      _
    // Predicated region
    $region18: #{_forward_jit.3} parent=1 // pred_check
      _
    $region19: #{_forward_jit.3} parent=1 // pred_check_branch
      %36 = sbr.rel (0) target = $region21
    $region20: #{_forward_jit.3} parent=1 // pred_region
      _
    $region21: #{_forward_jit.3} parent=1 // pred_fallthru
      _
    // Predicated region
    $region22: #{_forward_jit.3} parent=1 // pred_check
      _
    $region23: #{_forward_jit.3} parent=1 // pred_check_branch
      %38 = sbr.rel (0) target = $region25
    $region24: #{_forward_jit.3} parent=1 // pred_region
      _
    $region25: #{_forward_jit.3} parent=1 // pred_fallthru
      _
    // Predicated region
    $region26: #{_forward_jit.3} parent=1 // pred_check
      _
    $region27: #{_forward_jit.3} parent=1 // pred_check_branch
      %40 = sbr.rel (0) target = $region29
    $region28: #{_forward_jit.3} parent=1 // pred_region
      _
    $region29: #{_forward_jit.3} parent=1 // pred_fallthru
      _
    // Predicated region
    $region30: #{_forward_jit.3} parent=1 // pred_check
      _
    $region31: #{_forward_jit.3} parent=1 // pred_check_branch
      %42 = sbr.rel (0) target = $region33
    $region32: #{_forward_jit.3} parent=1 // pred_region
      %s44 = ssub.s32 2048, 2048
      %45 = vsyncadd [#allocation6], %s44
      %s46 = sshll.u32 [#allocation5], 4
      %s47 = int_to_ptr.vmem [resolvable:$true] %s46
      %52 = dma.hbm_to_vmem [thread:$0]  %s7, 2048, %s47, [#allocation6], 128, 128, 8
    $region33: #{_forward_jit.3} parent=1 // pred_fallthru
      _
    // Predicated region
    $region34: #{_forward_jit.3} parent=1 // pred_check
      _
    $region35: #{_forward_jit.3} parent=1 // pred_check_branch
      %54 = sbr.rel (0) target = $region37
    $region36: #{_forward_jit.3} parent=1 // pred_region
      _
    $region37: #{_forward_jit.3} parent=1 // pred_fallthru
      _
    // Predicated region
    $region38: #{_forward_jit.3} parent=1 // pred_check
      _
    $region39: #{_forward_jit.3} parent=1 // pred_check_branch
      %56 = sbr.rel (0) target = $region41
    $region40: #{_forward_jit.3} parent=1 // pred_region
      %57 = dma.done [#allocation3], 6144
    $region41: #{_forward_jit.3} parent=1 // pred_fallthru
      _
    // Predicated region
    $region42: #{_forward_jit.3} parent=1 // pred_check
      _
    $region43: #{_forward_jit.3} parent=1 // pred_check_branch
      %59 = sbr.rel (0) target = $region45
    $region44: #{_forward_jit.3} parent=1 // pred_region
      %60 = dma.done [#allocation6], 2048
    $region45: #{_forward_jit.3} parent=1 // pred_fallthru
      _
    %v61 = vld [vmem:[%s0] sm:$0xff]
    %v62 = vld [vmem:[%s0 + $0x8] sm:$0xff]
    %v63 = vld [vmem:[%s0 + $0x10] sm:$0xff]
    %v64 = vld [vmem:[%s0 + $0x18] sm:$0xf]
    %v65 = vld [vmem:[%s4] sm:$0x1]
    %v66 = vld [vmem:[#allocation2] sm:$0xff]
    %v67 = vld [vmem:[#allocation2 + $0x8] sm:$0xff]
    %v68 = vld [vmem:[#allocation2 + $0x10] sm:$0xff]
    %v69 = vld [vmem:[#allocation2 + $0x18] sm:$0xff]
    %v70 = vld [vmem:[#allocation2 + $0x20] sm:$0xff]
    %v71 = vld [vmem:[#allocation2 + $0x28] sm:$0xff]
    %v72 = vld [vmem:[#allocation2 + $0x30] sm:$0xff]
    %v73 = vld [vmem:[#allocation2 + $0x38] sm:$0xff]
    %v74 = vld [vmem:[#allocation2 + $0x40] sm:$0xff]
    %v75 = vld [vmem:[#allocation2 + $0x48] sm:$0xff]
    %v76 = vld [vmem:[#allocation2 + $0x50] sm:$0xff]
    %v77 = vld [vmem:[#allocation2 + $0x58] sm:$0xff]
    %v78 = vld [vmem:[#allocation2 + $0x60] sm:$0xff]
    %v79 = vld [vmem:[#allocation2 + $0x68] sm:$0xff]
    %v80 = vld [vmem:[#allocation2 + $0x70] sm:$0xff]
    %v81 = vld [vmem:[#allocation2 + $0x78] sm:$0xff]
    %82 = vmatprep.subr.mxu0 0.0
    %83 = vmatpush1.msra.mxu0 %v66
    %84 = vmatprep.subr.mxu0 0.0
    %85 = vmatpush1.msra.mxu0 %v67
    %86 = vmatprep.subr.mxu0 0.0
    %87 = vmatpush1.msra.mxu0 %v68
    %88 = vmatprep.subr.mxu0 0.0
    %89 = vmatpush1.msra.mxu0 %v69
    %90 = vmatprep.subr.mxu0 0.0
    %91 = vmatpush1.msra.mxu0 %v70
    %92 = vmatprep.subr.mxu0 0.0
    %93 = vmatpush1.msra.mxu0 %v71
    %94 = vmatprep.subr.mxu0 0.0
    %95 = vmatpush1.msra.mxu0 %v72
    %96 = vmatprep.subr.mxu0 0.0
    %97 = vmatpush1.msra.mxu0 %v73
    %98 = vmatprep.subr.mxu0 0.0
    %99 = vmatpush1.msra.mxu0 %v74
    %100 = vmatprep.subr.mxu0 0.0
    %101 = vmatpush1.msra.mxu0 %v75
    %102 = vmatprep.subr.mxu0 0.0
    %103 = vmatpush1.msra.mxu0 %v76
    %104 = vmatprep.subr.mxu0 0.0
    %105 = vmatpush1.msra.mxu0 %v77
    %106 = vmatprep.subr.mxu0 0.0
    %107 = vmatpush1.msra.mxu0 %v78
    %108 = vmatprep.subr.mxu0 0.0
    %109 = vmatpush1.msra.mxu0 %v79
    %110 = vmatprep.subr.mxu0 0.0
    %111 = vmatpush1.msra.mxu0 %v80
    %112 = vmatprep.subr.mxu0 0.0
    %113 = vmatpush1.msra.mxu0 %v81
    %114 = vmatprep.subr.mxu0 0.0
    %115 = vmatpush1.msra.mxu0 0.0
    %116 = vmatprep.subr.mxu0 0.0
    %117 = vmatpush1.msra.mxu0 0.0
    %118 = vmatprep.subr.mxu0 0.0
    %119 = vmatpush1.msra.mxu0 0.0
    %120 = vmatprep.subr.mxu0 0.0
    %121 = vmatpush1.msra.mxu0 0.0
    %122 = vmatprep.subr.mxu0 0.0
    %123 = vmatpush1.msra.mxu0 0.0
    %124 = vmatprep.subr.mxu0 0.0
    %125 = vmatpush1.msra.mxu0 0.0
    %126 = vmatprep.subr.mxu0 0.0
    %127 = vmatpush1.msra.mxu0 0.0
    %128 = vmatprep.subr.mxu0 0.0
    %129 = vmatpush1.msra.mxu0 0.0
    %130 = vmatprep.subr.mxu0 0.0
    %131 = vmatpush1.msra.mxu0 0.0
    %132 = vmatprep.subr.mxu0 0.0
    %133 = vmatpush1.msra.mxu0 0.0
    %134 = vmatprep.subr.mxu0 0.0
    %135 = vmatpush1.msra.mxu0 0.0
    %136 = vmatprep.subr.mxu0 0.0
    %137 = vmatpush1.msra.mxu0 0.0
    %138 = vmatprep.subr.mxu0 0.0
    %139 = vmatpush1.msra.mxu0 0.0
    %140 = vmatprep.subr.mxu0 0.0
    %141 = vmatpush1.msra.mxu0 0.0
    %142 = vmatprep.subr.mxu0 0.0
    %143 = vmatpush1.msra.mxu0 0.0
    %144 = vmatprep.subr.mxu0 0.0
    %145 = vmatpush1.msra.mxu0 0.0
    %146 = vmatprep.mubr.f32.mxu0 0.0
    %147 = vmatmul.mubr.f32.gmra.mrb[0].mxu0 %v61
    %v148 = vpop.f32.mrb[0].mxu0
    %v149 = vadd.f32 0.0, %v148
    %v150 = vpop.f32.mrb[0].mxu0
    %151 = vmatprep.mubr.f32.mxu0 0.0
    %152 = vmatmul.mubr.f32.gmra.mrb[0].mxu0 %v62
    %v153 = vpop.f32.mrb[0].mxu0
    %v154 = vadd.f32 0.0, %v153
    %v155 = vpop.f32.mrb[0].mxu0
    %156 = vmatprep.mubr.f32.mxu0 0.0
    %157 = vmatmul.mubr.f32.gmra.mrb[0].mxu0 %v63
    %v158 = vpop.f32.mrb[0].mxu0
    %v159 = vadd.f32 0.0, %v158
    %v160 = vpop.f32.mrb[0].mxu0
    %161 = vmatprep.mubr.f32.mxu0 0.0
    %162 = vmatmul.mubr.f32.gmra.mrb[0].mxu0 %v64
    %v163 = vpop.f32.mrb[0].mxu0
    %v164 = vadd.f32 0.0, %v163
    %v165 = vpop.f32.mrb[0].mxu0
    %166 = vdwg.mxu0
    %s167 = scalar_lea.vmem [#allocation2], 128
    %v168 = vld [vmem:[%s167] sm:$0xff]
    %v169 = vld [vmem:[%s167 + $0x8] sm:$0xff]
    %v170 = vld [vmem:[%s167 + $0x10] sm:$0xff]
    %v171 = vld [vmem:[%s167 + $0x18] sm:$0xff]
    %v172 = vld [vmem:[%s167 + $0x20] sm:$0xff]
    %v173 = vld [vmem:[%s167 + $0x28] sm:$0xff]
    %v174 = vld [vmem:[%s167 + $0x30] sm:$0xff]
    %v175 = vld [vmem:[%s167 + $0x38] sm:$0xff]
    %v176 = vld [vmem:[%s167 + $0x40] sm:$0xff]
    %v177 = vld [vmem:[%s167 + $0x48] sm:$0xff]
    %v178 = vld [vmem:[%s167 + $0x50] sm:$0xff]
    %v179 = vld [vmem:[%s167 + $0x58] sm:$0xff]
    %v180 = vld [vmem:[%s167 + $0x60] sm:$0xff]
    %v181 = vld [vmem:[%s167 + $0x68] sm:$0xff]
    %v182 = vld [vmem:[%s167 + $0x70] sm:$0xff]
    %v183 = vld [vmem:[%s167 + $0x78] sm:$0xff]
    %184 = vmatprep.subr.mxu0 0.0
    %185 = vmatpush1.msra.mxu0 %v168
    %186 = vmatprep.subr.mxu0 0.0
    %187 = vmatpush1.msra.mxu0 %v169
    %188 = vmatprep.subr.mxu0 0.0
    %189 = vmatpush1.msra.mxu0 %v170
    %190 = vmatprep.subr.mxu0 0.0
    %191 = vmatpush1.msra.mxu0 %v171
    %192 = vmatprep.subr.mxu0 0.0
    %193 = vmatpush1.msra.mxu0 %v172
    %194 = vmatprep.subr.mxu0 0.0
    %195 = vmatpush1.msra.mxu0 %v173
    %196 = vmatprep.subr.mxu0 0.0
    %197 = vmatpush1.msra.mxu0 %v174
    %198 = vmatprep.subr.mxu0 0.0
    %199 = vmatpush1.msra.mxu0 %v175
    %200 = vmatprep.subr.mxu0 0.0
    %201 = vmatpush1.msra.mxu0 %v176
    %202 = vmatprep.subr.mxu0 0.0
    %203 = vmatpush1.msra.mxu0 %v177
    %204 = vmatprep.subr.mxu0 0.0
    %205 = vmatpush1.msra.mxu0 %v178
    %206 = vmatprep.subr.mxu0 0.0
    %207 = vmatpush1.msra.mxu0 %v179
    %208 = vmatprep.subr.mxu0 0.0
    %209 = vmatpush1.msra.mxu0 %v180
    %210 = vmatprep.subr.mxu0 0.0
    %211 = vmatpush1.msra.mxu0 %v181
    %212 = vmatprep.subr.mxu0 0.0
    %213 = vmatpush1.msra.mxu0 %v182
    %214 = vmatprep.subr.mxu0 0.0
    %215 = vmatpush1.msra.mxu0 %v183
    %216 = vmatprep.subr.mxu0 0.0
    %217 = vmatpush1.msra.mxu0 0.0
    %218 = vmatprep.subr.mxu0 0.0
    %219 = vmatpush1.msra.mxu0 0.0
    %220 = vmatprep.subr.mxu0 0.0
    %221 = vmatpush1.msra.mxu0 0.0
    %222 = vmatprep.subr.mxu0 0.0
    %223 = vmatpush1.msra.mxu0 0.0
    %224 = vmatprep.subr.mxu0 0.0
    %225 = vmatpush1.msra.mxu0 0.0
    %226 = vmatprep.subr.mxu0 0.0
    %227 = vmatpush1.msra.mxu0 0.0
    %228 = vmatprep.subr.mxu0 0.0
    %229 = vmatpush1.msra.mxu0 0.0
    %230 = vmatprep.subr.mxu0 0.0
    %231 = vmatpush1.msra.mxu0 0.0
    %232 = vmatprep.subr.mxu0 0.0
    %233 = vmatpush1.msra.mxu0 0.0
    %234 = vmatprep.subr.mxu0 0.0
    %235 = vmatpush1.msra.mxu0 0.0
    %236 = vmatprep.subr.mxu0 0.0
    %237 = vmatpush1.msra.mxu0 0.0
    %238 = vmatprep.subr.mxu0 0.0
    %239 = vmatpush1.msra.mxu0 0.0
    %240 = vmatprep.subr.mxu0 0.0
    %241 = vmatpush1.msra.mxu0 0.0
    %242 = vmatprep.subr.mxu0 0.0
    %243 = vmatpush1.msra.mxu0 0.0
    %244 = vmatprep.subr.mxu0 0.0
    %245 = vmatpush1.msra.mxu0 0.0
    %246 = vmatprep.subr.mxu0 0.0
    %247 = vmatpush1.msra.mxu0 0.0
    %248 = vmatprep.mubr.f32.mxu0 0.0
    %249 = vmatmul.mubr.f32.gmra.mrb[0].mxu0 %v61
    %v250 = vpop.f32.mrb[0].mxu0
    %v251 = vadd.f32 0.0, %v250
    %v252 = vpop.f32.mrb[0].mxu0
    %253 = vmatprep.mubr.f32.mxu0 0.0
    %254 = vmatmul.mubr.f32.gmra.mrb[0].mxu0 %v62
    %v255 = vpop.f32.mrb[0].mxu0
    %v256 = vadd.f32 0.0, %v255
    %v257 = vpop.f32.mrb[0].mxu0
    %258 = vmatprep.mubr.f32.mxu0 0.0
    %259 = vmatmul.mubr.f32.gmra.mrb[0].mxu0 %v63
    %v260 = vpop.f32.mrb[0].mxu0
    %v261 = vadd.f32 0.0, %v260
    %v262 = vpop.f32.mrb[0].mxu0
    %263 = vmatprep.mubr.f32.mxu0 0.0
    %264 = vmatmul.mubr.f32.gmra.mrb[0].mxu0 %v64
    %v265 = vpop.f32.mrb[0].mxu0
    %v266 = vadd.f32 0.0, %v265
    %v267 = vpop.f32.mrb[0].mxu0
    %268 = vdwg.mxu0
    %s269 = scalar_lea.vmem [#allocation2], 256
    %v270 = vld [vmem:[%s269] sm:$0xff]
    %v271 = vld [vmem:[%s269 + $0x8] sm:$0xff]
    %v272 = vld [vmem:[%s269 + $0x10] sm:$0xff]
    %v273 = vld [vmem:[%s269 + $0x18] sm:$0xff]
    %v274 = vld [vmem:[%s269 + $0x20] sm:$0xff]
    %v275 = vld [vmem:[%s269 + $0x28] sm:$0xff]
    %v276 = vld [vmem:[%s269 + $0x30] sm:$0xff]
    %v277 = vld [vmem:[%s269 + $0x38] sm:$0xff]
    %v278 = vld [vmem:[%s269 + $0x40] sm:$0xff]
    %v279 = vld [vmem:[%s269 + $0x48] sm:$0xff]
    %v280 = vld [vmem:[%s269 + $0x50] sm:$0xff]
    %v281 = vld [vmem:[%s269 + $0x58] sm:$0xff]
    %v282 = vld [vmem:[%s269 + $0x60] sm:$0xff]
    %v283 = vld [vmem:[%s269 + $0x68] sm:$0xff]
    %v284 = vld [vmem:[%s269 + $0x70] sm:$0xff]
    %v285 = vld [vmem:[%s269 + $0x78] sm:$0xff]
    %286 = vmatprep.subr.mxu0 0.0
    %287 = vmatpush1.msra.mxu0 %v270
    %288 = vmatprep.subr.mxu0 0.0
    %289 = vmatpush1.msra.mxu0 %v271
    %290 = vmatprep.subr.mxu0 0.0
    %291 = vmatpush1.msra.mxu0 %v272
    %292 = vmatprep.subr.mxu0 0.0
    %293 = vmatpush1.msra.mxu0 %v273
    %294 = vmatprep.subr.mxu0 0.0
    %295 = vmatpush1.msra.mxu0 %v274
    %296 = vmatprep.subr.mxu0 0.0
    %297 = vmatpush1.msra.mxu0 %v275
    %298 = vmatprep.subr.mxu0 0.0
    %299 = vmatpush1.msra.mxu0 %v276
    %300 = vmatprep.subr.mxu0 0.0
    %301 = vmatpush1.msra.mxu0 %v277
    %302 = vmatprep.subr.mxu0 0.0
    %303 = vmatpush1.msra.mxu0 %v278
    %304 = vmatprep.subr.mxu0 0.0
    %305 = vmatpush1.msra.mxu0 %v279
    %306 = vmatprep.subr.mxu0 0.0
    %307 = vmatpush1.msra.mxu0 %v280
    %308 = vmatprep.subr.mxu0 0.0
    %309 = vmatpush1.msra.mxu0 %v281
    %310 = vmatprep.subr.mxu0 0.0
    %311 = vmatpush1.msra.mxu0 %v282
    %312 = vmatprep.subr.mxu0 0.0
    %313 = vmatpush1.msra.mxu0 %v283
    %314 = vmatprep.subr.mxu0 0.0
    %315 = vmatpush1.msra.mxu0 %v284
    %316 = vmatprep.subr.mxu0 0.0
    %317 = vmatpush1.msra.mxu0 %v285
    %318 = vmatprep.subr.mxu0 0.0
    %319 = vmatpush1.msra.mxu0 0.0
    %320 = vmatprep.subr.mxu0 0.0
    %321 = vmatpush1.msra.mxu0 0.0
    %322 = vmatprep.subr.mxu0 0.0
    %323 = vmatpush1.msra.mxu0 0.0
    %324 = vmatprep.subr.mxu0 0.0
    %325 = vmatpush1.msra.mxu0 0.0
    %326 = vmatprep.subr.mxu0 0.0
    %327 = vmatpush1.msra.mxu0 0.0
    %328 = vmatprep.subr.mxu0 0.0
    %329 = vmatpush1.msra.mxu0 0.0
    %330 = vmatprep.subr.mxu0 0.0
    %331 = vmatpush1.msra.mxu0 0.0
    %332 = vmatprep.subr.mxu0 0.0
    %333 = vmatpush1.msra.mxu0 0.0
    %334 = vmatprep.subr.mxu0 0.0
    %335 = vmatpush1.msra.mxu0 0.0
    %336 = vmatprep.subr.mxu0 0.0
    %337 = vmatpush1.msra.mxu0 0.0
    %338 = vmatprep.subr.mxu0 0.0
    %339 = vmatpush1.msra.mxu0 0.0
    %340 = vmatprep.subr.mxu0 0.0
    %341 = vmatpush1.msra.mxu0 0.0
    %342 = vmatprep.subr.mxu0 0.0
    %343 = vmatpush1.msra.mxu0 0.0
    %344 = vmatprep.subr.mxu0 0.0
    %345 = vmatpush1.msra.mxu0 0.0
    %346 = vmatprep.subr.mxu0 0.0
    %347 = vmatpush1.msra.mxu0 0.0
    %348 = vmatprep.subr.mxu0 0.0
    %349 = vmatpush1.msra.mxu0 0.0
    %350 = vmatprep.mubr.f32.mxu0 0.0
    %351 = vmatmul.mubr.f32.gmra.mrb[0].mxu0 %v61
    %v352 = vpop.f32.mrb[0].mxu0
    %v353 = vadd.f32 0.0, %v352
    %v354 = vpop.f32.mrb[0].mxu0
    %355 = vmatprep.mubr.f32.mxu0 0.0
    %356 = vmatmul.mubr.f32.gmra.mrb[0].mxu0 %v62
    %v357 = vpop.f32.mrb[0].mxu0
    %v358 = vadd.f32 0.0, %v357
    %v359 = vpop.f32.mrb[0].mxu0
    %360 = vmatprep.mubr.f32.mxu0 0.0
    %361 = vmatmul.mubr.f32.gmra.mrb[0].mxu0 %v63
    %v362 = vpop.f32.mrb[0].mxu0
    %v363 = vadd.f32 0.0, %v362
    %v364 = vpop.f32.mrb[0].mxu0
    %365 = vmatprep.mubr.f32.mxu0 0.0
    %366 = vmatmul.mubr.f32.gmra.mrb[0].mxu0 %v64
    %v367 = vpop.f32.mrb[0].mxu0
    %v368 = vadd.f32 0.0, %v367
    %v369 = vpop.f32.mrb[0].mxu0
    %370 = vdwg.mxu0
    %v372 = vrot.slane %v251, 1
    %v374 = vadd.f32 %v149, %v372
    %v376 = vrot.slane %v353, 2
    %v378 = vadd.f32 %v374, %v376
    %v380 = vlaneseq
    %v381 = vshrl.u32 %v380, 7
    %v382 = vsub.s32 0, %v381
    %v383 = vrot.slane %v65, %v382
    %v385 = vadd.f32 %v378, %v383
    %v386 = vmax.f32 %v385, 0.0
    %v388 = vrot.slane %v61, 2
    %v390 = vadd.f32 %v386, %v388
    %v392 = vrot.slane %v256, 1
    %v394 = vadd.f32 %v149, %v392
    %v395 = vadd.f32 %v154, %v392
    %v397 = vrot.slane %v358, 2
    %v399 = vadd.f32 %v394, %v397
    %v400 = vadd.f32 %v395, %v397
    %v401 = vadd.f32 %v399, %v383
    %v402 = vadd.f32 %v400, %v383
    %v403 = vmax.f32 %v401, 0.0
    %v404 = vmax.f32 %v402, 0.0
    %v406 = vrot.slane %v62, 2
    %v408 = vadd.f32 %v403, %v406
    %v409 = vadd.f32 %v404, %v406
    %vm411 = vcmask 1046528
    %v412 = vrot.slane %v261, 1
    %v413 = vsel %vm411, %v392, %v412
    %v416 = vadd.f32 %v154, %v413
    %v417 = vadd.f32 %v159, %v412
    %v419 = vrot.slane %v363, 2
    %v421 = vadd.f32 %v416, %v419
    %v422 = vadd.f32 %v417, %v419
    %v423 = vadd.f32 %v421, %v383
    %v424 = vadd.f32 %v422, %v383
    %v425 = vmax.f32 %v423, 0.0
    %v426 = vmax.f32 %v424, 0.0
    %v428 = vrot.slane %v63, 2
    %v430 = vadd.f32 %v425, %v428
    %v431 = vadd.f32 %v426, %v428
    %v433 = vrot.slane %v266, 1
    %v434 = vsel %vm411, %v412, %v433
    %v437 = vadd.f32 %v159, %v434
    %v438 = vadd.f32 %v164, %v433
    %vm440 = vcmask 1045504
    %v441 = vrot.slane %v368, 2
    %v442 = vsel %vm440, %v419, %v441
    %v445 = vadd.f32 %v437, %v442
    %v446 = vadd.f32 %v438, %v441
    %v447 = vadd.f32 %v445, %v383
    %v448 = vadd.f32 %v446, %v383
    %v449 = vmax.f32 %v447, 0.0
    %v450 = vmax.f32 %v448, 0.0
    %v452 = vrot.slane %v64, 2
    %v453 = vsel %vm440, %v428, %v452
    %v456 = vadd.f32 %v449, %v453
    %v457 = vadd.f32 %v450, %v452
    %vm458 = vcmask 1041408
    %v459 = vsel %vm458, %v390, 0.0
    %v460 = vrot.slane %v459, 4
    %v461 = vadd.f32 %v459, %v460
    %v462 = vrot.slane %v461, 2
    %v463 = vadd.f32 %v461, %v462
    %v464 = vrot.slane %v463, 1
    %v465 = vadd.f32 %v463, %v464
    %v466 = vrcp.pop 2.0
    %v467 = vmul.f32 %v465, %v466
    %vm470 = vcmask 1040384
    %v471 = vrot.slane %v408, 7
    %v472 = vrot.slane %v409, 7
    %v473 = vsel %vm470, %v471, %v472
    %v475 = vsel %vm458, %v473, 0.0
    %v476 = vrot.slane %v475, 4
    %v477 = vadd.f32 %v475, %v476
    %v478 = vrot.slane %v477, 2
    %v479 = vadd.f32 %v477, %v478
    %v480 = vrot.slane %v479, 1
    %v481 = vadd.f32 %v479, %v480
    %v482 = vmul.f32 %v481, %v466
    %v484 = vrot.slane %v430, 6
    %v486 = vsel %vm458, %v484, 0.0
    %v487 = vrot.slane %v486, 4
    %v488 = vadd.f32 %v486, %v487
    %v489 = vrot.slane %v488, 2
    %v490 = vadd.f32 %v488, %v489
    %v491 = vrot.slane %v490, 1
    %v492 = vadd.f32 %v490, %v491
    %v493 = vmul.f32 %v492, %v466
    %v495 = vrot.slane %v456, 5
    %v497 = vsel %vm458, %v495, 0.0
    %v498 = vrot.slane %v497, 4
    %v499 = vadd.f32 %v497, %v498
    %v500 = vrot.slane %v499, 2
    %v501 = vadd.f32 %v499, %v500
    %v502 = vrot.slane %v501, 1
    %v503 = vadd.f32 %v501, %v502
    %v504 = vmul.f32 %v503, %v466
    %v505 = vsel %vm470, %v467, %v482
    %v506 = vsel %vm458, %v505, %v493
    %vm507 = vcmask 1042432
    %v508 = vsel %vm507, %v506, %v504
    %v509 = vld [vmem:[%s5] sm:$0xff]
    %v510 = vld [vmem:[%s5 + $0x8] sm:$0xff]
    %v511 = vld [vmem:[%s5 + $0x10] sm:$0xff]
    %v512 = vld [vmem:[%s5 + $0x18] sm:$0xff]
    %v513 = vld [vmem:[%s5 + $0x20] sm:$0xff]
    %v514 = vld [vmem:[%s5 + $0x28] sm:$0xff]
    %v515 = vld [vmem:[%s5 + $0x30] sm:$0xff]
    %v516 = vld [vmem:[%s5 + $0x38] sm:$0xff]
    %v517 = vld [vmem:[%s5 + $0x40] sm:$0xff]
    %v518 = vld [vmem:[%s5 + $0x48] sm:$0xff]
    %v519 = vld [vmem:[%s5 + $0x50] sm:$0xff]
    %v520 = vld [vmem:[%s5 + $0x58] sm:$0xff]
    %v521 = vld [vmem:[%s5 + $0x60] sm:$0xff]
    %v522 = vld [vmem:[%s5 + $0x68] sm:$0xff]
    %v523 = vld [vmem:[%s5 + $0x70] sm:$0xff]
    %v524 = vld [vmem:[%s5 + $0x78] sm:$0xff]
    %v525 = vld [vmem:[%s5 + $0x80] sm:$0xff]
    %v526 = vld [vmem:[%s5 + $0x88] sm:$0xff]
    %v527 = vld [vmem:[%s5 + $0x90] sm:$0xff]
    %v528 = vld [vmem:[%s5 + $0x98] sm:$0xff]
    %v529 = vld [vmem:[%s5 + $0xa0] sm:$0xff]
    %v530 = vld [vmem:[%s5 + $0xa8] sm:$0xff]
    %v531 = vld [vmem:[%s5 + $0xb0] sm:$0xff]
    %v532 = vld [vmem:[%s5 + $0xb8] sm:$0xff]
    %v533 = vld [vmem:[%s5 + $0xc0] sm:$0xff]
    %v534 = vld [vmem:[%s5 + $0xc8] sm:$0xff]
    %v535 = vld [vmem:[%s5 + $0xd0] sm:$0xff]
    %v536 = vld [vmem:[%s5 + $0xd8] sm:$0xff]
    %v537 = vld [vmem:[%s5 + $0xe0] sm:$0xff]
    %v538 = vld [vmem:[%s5 + $0xe8] sm:$0xff]
    %v539 = vld [vmem:[%s5 + $0xf0] sm:$0xff]
    %v540 = vld [vmem:[%s5 + $0xf8] sm:$0xff]
    %v541 = vld [vmem:[%s5 + $0x100] sm:$0xff]
    %v542 = vld [vmem:[%s5 + $0x108] sm:$0xff]
    %v543 = vld [vmem:[%s5 + $0x110] sm:$0xff]
    %v544 = vld [vmem:[%s5 + $0x118] sm:$0xff]
    %v545 = vld [vmem:[%s5 + $0x120] sm:$0xff]
    %v546 = vld [vmem:[%s5 + $0x128] sm:$0xff]
    %v547 = vld [vmem:[%s5 + $0x130] sm:$0xff]
    %v548 = vld [vmem:[%s5 + $0x138] sm:$0xff]
    %v549 = vld [vmem:[%s5 + $0x140] sm:$0xff]
    %v550 = vld [vmem:[%s5 + $0x148] sm:$0xff]
    %v551 = vld [vmem:[%s5 + $0x150] sm:$0xff]
    %v552 = vld [vmem:[%s5 + $0x158] sm:$0xff]
    %v553 = vld [vmem:[%s5 + $0x160] sm:$0xff]
    %v554 = vld [vmem:[%s5 + $0x168] sm:$0xff]
    %v555 = vld [vmem:[%s5 + $0x170] sm:$0xff]
    %v556 = vld [vmem:[%s5 + $0x178] sm:$0xff]
    %v558 = vrot.slane %v390, 1
    %v560 = vsel %vm458, %v558, 0.0
    %v561 = vrot.slane %v560, 4
    %v562 = vadd.f32 %v560, %v561
    %v563 = vrot.slane %v562, 2
    %v564 = vadd.f32 %v562, %v563
    %v565 = vrot.slane %v564, 1
    %v566 = vadd.f32 %v564, %v565
    %v567 = vmul.f32 %v566, %v466
    %v568 = vsel %vm458, %v409, 0.0
    %v569 = vrot.slane %v568, 4
    %v570 = vadd.f32 %v568, %v569
    %v571 = vrot.slane %v570, 2
    %v572 = vadd.f32 %v570, %v571
    %v573 = vrot.slane %v572, 1
    %v574 = vadd.f32 %v572, %v573
    %v575 = vmul.f32 %v574, %v466
    %v577 = vrot.slane %v430, 7
    %v578 = vrot.slane %v431, 7
    %v579 = vsel %vm470, %v577, %v578
    %v581 = vsel %vm458, %v579, 0.0
    %v582 = vrot.slane %v581, 4
    %v583 = vadd.f32 %v581, %v582
    %v584 = vrot.slane %v583, 2
    %v585 = vadd.f32 %v583, %v584
    %v586 = vrot.slane %v585, 1
    %v587 = vadd.f32 %v585, %v586
    %v588 = vmul.f32 %v587, %v466
    %v589 = vrot.slane %v456, 6
    %v591 = vsel %vm458, %v589, 0.0
    %v592 = vrot.slane %v591, 4
    %v593 = vadd.f32 %v591, %v592
    %v594 = vrot.slane %v593, 2
    %v595 = vadd.f32 %v593, %v594
    %v596 = vrot.slane %v595, 1
    %v597 = vadd.f32 %v595, %v596
    %v598 = vmul.f32 %v597, %v466
    %v599 = vsel %vm470, %v567, %v575
    %v600 = vsel %vm458, %v599, %v588
    %v601 = vsel %vm507, %v600, %v598
    %s602 = scalar_lea.vmem %s5, 384
    %v603 = vld [vmem:[%s602] sm:$0xff]
    %v604 = vld [vmem:[%s602 + $0x8] sm:$0xff]
    %v605 = vld [vmem:[%s602 + $0x10] sm:$0xff]
    %v606 = vld [vmem:[%s602 + $0x18] sm:$0xff]
    %v607 = vld [vmem:[%s602 + $0x20] sm:$0xff]
    %v608 = vld [vmem:[%s602 + $0x28] sm:$0xff]
    %v609 = vld [vmem:[%s602 + $0x30] sm:$0xff]
    %v610 = vld [vmem:[%s602 + $0x38] sm:$0xff]
    %v611 = vld [vmem:[%s602 + $0x40] sm:$0xff]
    %v612 = vld [vmem:[%s602 + $0x48] sm:$0xff]
    %v613 = vld [vmem:[%s602 + $0x50] sm:$0xff]
    %v614 = vld [vmem:[%s602 + $0x58] sm:$0xff]
    %v615 = vld [vmem:[%s602 + $0x60] sm:$0xff]
    %v616 = vld [vmem:[%s602 + $0x68] sm:$0xff]
    %v617 = vld [vmem:[%s602 + $0x70] sm:$0xff]
    %v618 = vld [vmem:[%s602 + $0x78] sm:$0xff]
    %v619 = vld [vmem:[%s602 + $0x80] sm:$0xff]
    %v620 = vld [vmem:[%s602 + $0x88] sm:$0xff]
    %v621 = vld [vmem:[%s602 + $0x90] sm:$0xff]
    %v622 = vld [vmem:[%s602 + $0x98] sm:$0xff]
    %v623 = vld [vmem:[%s602 + $0xa0] sm:$0xff]
    %v624 = vld [vmem:[%s602 + $0xa8] sm:$0xff]
    %v625 = vld [vmem:[%s602 + $0xb0] sm:$0xff]
    %v626 = vld [vmem:[%s602 + $0xb8] sm:$0xff]
    %v627 = vld [vmem:[%s602 + $0xc0] sm:$0xff]
    %v628 = vld [vmem:[%s602 + $0xc8] sm:$0xff]
    %v629 = vld [vmem:[%s602 + $0xd0] sm:$0xff]
    %v630 = vld [vmem:[%s602 + $0xd8] sm:$0xff]
    %v631 = vld [vmem:[%s602 + $0xe0] sm:$0xff]
    %v632 = vld [vmem:[%s602 + $0xe8] sm:$0xff]
    %v633 = vld [vmem:[%s602 + $0xf0] sm:$0xff]
    %v634 = vld [vmem:[%s602 + $0xf8] sm:$0xff]
    %v635 = vld [vmem:[%s602 + $0x100] sm:$0xff]
    %v636 = vld [vmem:[%s602 + $0x108] sm:$0xff]
    %v637 = vld [vmem:[%s602 + $0x110] sm:$0xff]
    %v638 = vld [vmem:[%s602 + $0x118] sm:$0xff]
    %v639 = vld [vmem:[%s602 + $0x120] sm:$0xff]
    %v640 = vld [vmem:[%s602 + $0x128] sm:$0xff]
    %v641 = vld [vmem:[%s602 + $0x130] sm:$0xff]
    %v642 = vld [vmem:[%s602 + $0x138] sm:$0xff]
    %v643 = vld [vmem:[%s602 + $0x140] sm:$0xff]
    %v644 = vld [vmem:[%s602 + $0x148] sm:$0xff]
    %v645 = vld [vmem:[%s602 + $0x150] sm:$0xff]
    %v646 = vld [vmem:[%s602 + $0x158] sm:$0xff]
    %v647 = vld [vmem:[%s602 + $0x160] sm:$0xff]
    %v648 = vld [vmem:[%s602 + $0x168] sm:$0xff]
    %v649 = vld [vmem:[%s602 + $0x170] sm:$0xff]
    %v650 = vld [vmem:[%s602 + $0x178] sm:$0xff]
    %651 = vmatprep.subr.mxu0 %v604
    %652 = vmatpush1.msra.mxu0 %v603
    %653 = vmatprep.subr.mxu0 %v607
    %654 = vmatpush1.msra.mxu0 %v606
    %655 = vmatprep.subr.mxu0 %v610
    %656 = vmatpush1.msra.mxu0 %v609
    %657 = vmatprep.subr.mxu0 %v613
    %658 = vmatpush1.msra.mxu0 %v612
    %659 = vmatprep.subr.mxu0 %v616
    %660 = vmatpush1.msra.mxu0 %v615
    %661 = vmatprep.subr.mxu0 %v619
    %662 = vmatpush1.msra.mxu0 %v618
    %663 = vmatprep.subr.mxu0 %v622
    %664 = vmatpush1.msra.mxu0 %v621
    %665 = vmatprep.subr.mxu0 %v625
    %666 = vmatpush1.msra.mxu0 %v624
    %667 = vmatprep.subr.mxu0 %v628
    %668 = vmatpush1.msra.mxu0 %v627
    %669 = vmatprep.subr.mxu0 %v631
    %670 = vmatpush1.msra.mxu0 %v630
    %671 = vmatprep.subr.mxu0 %v634
    %672 = vmatpush1.msra.mxu0 %v633
    %673 = vmatprep.subr.mxu0 %v637
    %674 = vmatpush1.msra.mxu0 %v636
    %675 = vmatprep.subr.mxu0 %v640
    %676 = vmatpush1.msra.mxu0 %v639
    %677 = vmatprep.subr.mxu0 %v643
    %678 = vmatpush1.msra.mxu0 %v642
    %679 = vmatprep.subr.mxu0 %v646
    %680 = vmatpush1.msra.mxu0 %v645
    %681 = vmatprep.subr.mxu0 %v649
    %682 = vmatpush1.msra.mxu0 %v648
    %683 = vmatprep.subr.mxu0 0.0
    %684 = vmatpush1.msra.mxu0 0.0
    %685 = vmatprep.subr.mxu0 0.0
    %686 = vmatpush1.msra.mxu0 0.0
    %687 = vmatprep.subr.mxu0 0.0
    %688 = vmatpush1.msra.mxu0 0.0
    %689 = vmatprep.subr.mxu0 0.0
    %690 = vmatpush1.msra.mxu0 0.0
    %691 = vmatprep.subr.mxu0 0.0
    %692 = vmatpush1.msra.mxu0 0.0
    %693 = vmatprep.subr.mxu0 0.0
    %694 = vmatpush1.msra.mxu0 0.0
    %695 = vmatprep.subr.mxu0 0.0
    %696 = vmatpush1.msra.mxu0 0.0
    %697 = vmatprep.subr.mxu0 0.0
    %698 = vmatpush1.msra.mxu0 0.0
    %699 = vmatprep.subr.mxu0 0.0
    %700 = vmatpush1.msra.mxu0 0.0
    %701 = vmatprep.subr.mxu0 0.0
    %702 = vmatpush1.msra.mxu0 0.0
    %703 = vmatprep.subr.mxu0 0.0
    %704 = vmatpush1.msra.mxu0 0.0
    %705 = vmatprep.subr.mxu0 0.0
    %706 = vmatpush1.msra.mxu0 0.0
    %707 = vmatprep.subr.mxu0 0.0
    %708 = vmatpush1.msra.mxu0 0.0
    %709 = vmatprep.subr.mxu0 0.0
    %710 = vmatpush1.msra.mxu0 0.0
    %711 = vmatprep.subr.mxu0 0.0
    %712 = vmatpush1.msra.mxu0 0.0
    %713 = vmatprep.subr.mxu0 0.0
    %714 = vmatpush1.msra.mxu0 0.0
    %715 = vmatprep.mubr.f32.mxu0 0.0
    %716 = vmatmul.mubr.f32.gmra.mrb[0].mxu0 %v601
    %v717 = vpop.f32.mrb[0].mxu0
    %v718 = vadd.f32 0.0, %v717
    %v719 = vpop.f32.mrb[0].mxu0
    %v720 = vadd.f32 0.0, %v719
    %721 = vdwg.mxu0
    %722 = vmatprep.subr.mxu0 0.0
    %723 = vmatpush1.msra.mxu0 %v605
    %724 = vmatprep.subr.mxu0 0.0
    %725 = vmatpush1.msra.mxu0 %v608
    %726 = vmatprep.subr.mxu0 0.0
    %727 = vmatpush1.msra.mxu0 %v611
    %728 = vmatprep.subr.mxu0 0.0
    %729 = vmatpush1.msra.mxu0 %v614
    %730 = vmatprep.subr.mxu0 0.0
    %731 = vmatpush1.msra.mxu0 %v617
    %732 = vmatprep.subr.mxu0 0.0
    %733 = vmatpush1.msra.mxu0 %v620
    %734 = vmatprep.subr.mxu0 0.0
    %735 = vmatpush1.msra.mxu0 %v623
    %736 = vmatprep.subr.mxu0 0.0
    %737 = vmatpush1.msra.mxu0 %v626
    %738 = vmatprep.subr.mxu0 0.0
    %739 = vmatpush1.msra.mxu0 %v629
    %740 = vmatprep.subr.mxu0 0.0
    %741 = vmatpush1.msra.mxu0 %v632
    %742 = vmatprep.subr.mxu0 0.0
    %743 = vmatpush1.msra.mxu0 %v635
    %744 = vmatprep.subr.mxu0 0.0
    %745 = vmatpush1.msra.mxu0 %v638
    %746 = vmatprep.subr.mxu0 0.0
    %747 = vmatpush1.msra.mxu0 %v641
    %748 = vmatprep.subr.mxu0 0.0
    %749 = vmatpush1.msra.mxu0 %v644
    %750 = vmatprep.subr.mxu0 0.0
    %751 = vmatpush1.msra.mxu0 %v647
    %752 = vmatprep.subr.mxu0 0.0
    %753 = vmatpush1.msra.mxu0 %v650
    %754 = vmatprep.subr.mxu0 0.0
    %755 = vmatpush1.msra.mxu0 0.0
    %756 = vmatprep.subr.mxu0 0.0
    %757 = vmatpush1.msra.mxu0 0.0
    %758 = vmatprep.subr.mxu0 0.0
    %759 = vmatpush1.msra.mxu0 0.0
    %760 = vmatprep.subr.mxu0 0.0
    %761 = vmatpush1.msra.mxu0 0.0
    %762 = vmatprep.subr.mxu0 0.0
    %763 = vmatpush1.msra.mxu0 0.0
    %764 = vmatprep.subr.mxu0 0.0
    %765 = vmatpush1.msra.mxu0 0.0
    %766 = vmatprep.subr.mxu0 0.0
    %767 = vmatpush1.msra.mxu0 0.0
    %768 = vmatprep.subr.mxu0 0.0
    %769 = vmatpush1.msra.mxu0 0.0
    %770 = vmatprep.subr.mxu0 0.0
    %771 = vmatpush1.msra.mxu0 0.0
    %772 = vmatprep.subr.mxu0 0.0
    %773 = vmatpush1.msra.mxu0 0.0
    %774 = vmatprep.subr.mxu0 0.0
    %775 = vmatpush1.msra.mxu0 0.0
    %776 = vmatprep.subr.mxu0 0.0
    %777 = vmatpush1.msra.mxu0 0.0
    %778 = vmatprep.subr.mxu0 0.0
    %779 = vmatpush1.msra.mxu0 0.0
    %780 = vmatprep.subr.mxu0 0.0
    %781 = vmatpush1.msra.mxu0 0.0
    %782 = vmatprep.subr.mxu0 0.0
    %783 = vmatpush1.msra.mxu0 0.0
    %784 = vmatprep.subr.mxu0 0.0
    %785 = vmatpush1.msra.mxu0 0.0
    %786 = vmatprep.mubr.f32.mxu0 0.0
    %787 = vmatmul.mubr.f32.gmra.mrb[0].mxu0 %v601
    %v788 = vpop.f32.mrb[0].mxu0
    %v789 = vadd.f32 0.0, %v788
    %v790 = vpop.f32.mrb[0].mxu0
    %791 = vdwg.mxu0
    %792 = vmatprep.subr.mxu0 %v510
    %793 = vmatpush1.msra.mxu0 %v509
    %794 = vmatprep.subr.mxu0 %v513
    %795 = vmatpush1.msra.mxu0 %v512
    %796 = vmatprep.subr.mxu0 %v516
    %797 = vmatpush1.msra.mxu0 %v515
    %798 = vmatprep.subr.mxu0 %v519
    %799 = vmatpush1.msra.mxu0 %v518
    %800 = vmatprep.subr.mxu0 %v522
    %801 = vmatpush1.msra.mxu0 %v521
    %802 = vmatprep.subr.mxu0 %v525
    %803 = vmatpush1.msra.mxu0 %v524
    %804 = vmatprep.subr.mxu0 %v528
    %805 = vmatpush1.msra.mxu0 %v527
    %806 = vmatprep.subr.mxu0 %v531
    %807 = vmatpush1.msra.mxu0 %v530
    %808 = vmatprep.subr.mxu0 %v534
    %809 = vmatpush1.msra.mxu0 %v533
    %810 = vmatprep.subr.mxu0 %v537
    %811 = vmatpush1.msra.mxu0 %v536
    %812 = vmatprep.subr.mxu0 %v540
    %813 = vmatpush1.msra.mxu0 %v539
    %814 = vmatprep.subr.mxu0 %v543
    %815 = vmatpush1.msra.mxu0 %v542
    %816 = vmatprep.subr.mxu0 %v546
    %817 = vmatpush1.msra.mxu0 %v545
    %818 = vmatprep.subr.mxu0 %v549
    %819 = vmatpush1.msra.mxu0 %v548
    %820 = vmatprep.subr.mxu0 %v552
    %821 = vmatpush1.msra.mxu0 %v551
    %822 = vmatprep.subr.mxu0 %v555
    %823 = vmatpush1.msra.mxu0 %v554
    %824 = vmatprep.subr.mxu0 0.0
    %825 = vmatpush1.msra.mxu0 0.0
    %826 = vmatprep.subr.mxu0 0.0
    %827 = vmatpush1.msra.mxu0 0.0
    %828 = vmatprep.subr.mxu0 0.0
    %829 = vmatpush1.msra.mxu0 0.0
    %830 = vmatprep.subr.mxu0 0.0
    %831 = vmatpush1.msra.mxu0 0.0
    %832 = vmatprep.subr.mxu0 0.0
    %833 = vmatpush1.msra.mxu0 0.0
    %834 = vmatprep.subr.mxu0 0.0
    %835 = vmatpush1.msra.mxu0 0.0
    %836 = vmatprep.subr.mxu0 0.0
    %837 = vmatpush1.msra.mxu0 0.0
    %838 = vmatprep.subr.mxu0 0.0
    %839 = vmatpush1.msra.mxu0 0.0
    %840 = vmatprep.subr.mxu0 0.0
    %841 = vmatpush1.msra.mxu0 0.0
    %842 = vmatprep.subr.mxu0 0.0
    %843 = vmatpush1.msra.mxu0 0.0
    %844 = vmatprep.subr.mxu0 0.0
    %845 = vmatpush1.msra.mxu0 0.0
    %846 = vmatprep.subr.mxu0 0.0
    %847 = vmatpush1.msra.mxu0 0.0
    %848 = vmatprep.subr.mxu0 0.0
    %849 = vmatpush1.msra.mxu0 0.0
    %850 = vmatprep.subr.mxu0 0.0
    %851 = vmatpush1.msra.mxu0 0.0
    %852 = vmatprep.subr.mxu0 0.0
    %853 = vmatpush1.msra.mxu0 0.0
    %854 = vmatprep.subr.mxu0 0.0
    %855 = vmatpush1.msra.mxu0 0.0
    %856 = vmatprep.mubr.f32.mxu0 0.0
    %857 = vmatmul.mubr.f32.gmra.mrb[0].mxu0 %v508
    %v858 = vpop.f32.mrb[0].mxu0
    %v859 = vadd.f32 %v718, %v858
    %v860 = vpop.f32.mrb[0].mxu0
    %v861 = vadd.f32 %v720, %v860
    %862 = vdwg.mxu0
    %863 = vmatprep.subr.mxu0 0.0
    %864 = vmatpush1.msra.mxu0 %v511
    %865 = vmatprep.subr.mxu0 0.0
    %866 = vmatpush1.msra.mxu0 %v514
    %867 = vmatprep.subr.mxu0 0.0
    %868 = vmatpush1.msra.mxu0 %v517
    %869 = vmatprep.subr.mxu0 0.0
    %870 = vmatpush1.msra.mxu0 %v520
    %871 = vmatprep.subr.mxu0 0.0
    %872 = vmatpush1.msra.mxu0 %v523
    %873 = vmatprep.subr.mxu0 0.0
    %874 = vmatpush1.msra.mxu0 %v526
    %875 = vmatprep.subr.mxu0 0.0
    %876 = vmatpush1.msra.mxu0 %v529
    %877 = vmatprep.subr.mxu0 0.0
    %878 = vmatpush1.msra.mxu0 %v532
    %879 = vmatprep.subr.mxu0 0.0
    %880 = vmatpush1.msra.mxu0 %v535
    %881 = vmatprep.subr.mxu0 0.0
    %882 = vmatpush1.msra.mxu0 %v538
    %883 = vmatprep.subr.mxu0 0.0
    %884 = vmatpush1.msra.mxu0 %v541
    %885 = vmatprep.subr.mxu0 0.0
    %886 = vmatpush1.msra.mxu0 %v544
    %887 = vmatprep.subr.mxu0 0.0
    %888 = vmatpush1.msra.mxu0 %v547
    %889 = vmatprep.subr.mxu0 0.0
    %890 = vmatpush1.msra.mxu0 %v550
    %891 = vmatprep.subr.mxu0 0.0
    %892 = vmatpush1.msra.mxu0 %v553
    %893 = vmatprep.subr.mxu0 0.0
    %894 = vmatpush1.msra.mxu0 %v556
    %895 = vmatprep.subr.mxu0 0.0
    %896 = vmatpush1.msra.mxu0 0.0
    %897 = vmatprep.subr.mxu0 0.0
    %898 = vmatpush1.msra.mxu0 0.0
    %899 = vmatprep.subr.mxu0 0.0
    %900 = vmatpush1.msra.mxu0 0.0
    %901 = vmatprep.subr.mxu0 0.0
    %902 = vmatpush1.msra.mxu0 0.0
    %903 = vmatprep.subr.mxu0 0.0
    %904 = vmatpush1.msra.mxu0 0.0
    %905 = vmatprep.subr.mxu0 0.0
    %906 = vmatpush1.msra.mxu0 0.0
    %907 = vmatprep.subr.mxu0 0.0
    %908 = vmatpush1.msra.mxu0 0.0
    %909 = vmatprep.subr.mxu0 0.0
    %910 = vmatpush1.msra.mxu0 0.0
    %911 = vmatprep.subr.mxu0 0.0
    %912 = vmatpush1.msra.mxu0 0.0
    %913 = vmatprep.subr.mxu0 0.0
    %914 = vmatpush1.msra.mxu0 0.0
    %915 = vmatprep.subr.mxu0 0.0
    %916 = vmatpush1.msra.mxu0 0.0
    %917 = vmatprep.subr.mxu0 0.0
    %918 = vmatpush1.msra.mxu0 0.0
    %919 = vmatprep.subr.mxu0 0.0
    %920 = vmatpush1.msra.mxu0 0.0
    %921 = vmatprep.subr.mxu0 0.0
    %922 = vmatpush1.msra.mxu0 0.0
    %923 = vmatprep.subr.mxu0 0.0
    %924 = vmatpush1.msra.mxu0 0.0
    %925 = vmatprep.subr.mxu0 0.0
    %926 = vmatpush1.msra.mxu0 0.0
    %927 = vmatprep.mubr.f32.mxu0 0.0
    %928 = vmatmul.mubr.f32.gmra.mrb[0].mxu0 %v508
    %v929 = vpop.f32.mrb[0].mxu0
    %v930 = vadd.f32 %v789, %v929
    %v931 = vpop.f32.mrb[0].mxu0
    %932 = vdwg.mxu0
    %v933 = vrot.slane %v390, 2
    %v935 = vsel %vm458, %v933, 0.0
    %v936 = vrot.slane %v935, 4
    %v937 = vadd.f32 %v935, %v936
    %v938 = vrot.slane %v937, 2
    %v939 = vadd.f32 %v937, %v938
    %v940 = vrot.slane %v939, 1
    %v941 = vadd.f32 %v939, %v940
    %v942 = vmul.f32 %v941, %v466
    %v943 = vrot.slane %v409, 1
    %v945 = vsel %vm458, %v943, 0.0
    %v946 = vrot.slane %v945, 4
    %v947 = vadd.f32 %v945, %v946
    %v948 = vrot.slane %v947, 2
    %v949 = vadd.f32 %v947, %v948
    %v950 = vrot.slane %v949, 1
    %v951 = vadd.f32 %v949, %v950
    %v952 = vmul.f32 %v951, %v466
    %v953 = vsel %vm458, %v431, 0.0
    %v954 = vrot.slane %v953, 4
    %v955 = vadd.f32 %v953, %v954
    %v956 = vrot.slane %v955, 2
    %v957 = vadd.f32 %v955, %v956
    %v958 = vrot.slane %v957, 1
    %v959 = vadd.f32 %v957, %v958
    %v960 = vmul.f32 %v959, %v466
    %v962 = vrot.slane %v456, 7
    %v963 = vrot.slane %v457, 7
    %v964 = vsel %vm470, %v962, %v963
    %v966 = vsel %vm458, %v964, 0.0
    %v967 = vrot.slane %v966, 4
    %v968 = vadd.f32 %v966, %v967
    %v969 = vrot.slane %v968, 2
    %v970 = vadd.f32 %v968, %v969
    %v971 = vrot.slane %v970, 1
    %v972 = vadd.f32 %v970, %v971
    %v973 = vmul.f32 %v972, %v466
    %v974 = vsel %vm470, %v942, %v952
    %v975 = vsel %vm458, %v974, %v960
    %v976 = vsel %vm507, %v975, %v973
    %s977 = scalar_lea.vmem %s5, 768
    %v978 = vld [vmem:[%s977] sm:$0xff]
    %v979 = vld [vmem:[%s977 + $0x8] sm:$0xff]
    %v980 = vld [vmem:[%s977 + $0x10] sm:$0xff]
    %v981 = vld [vmem:[%s977 + $0x18] sm:$0xff]
    %v982 = vld [vmem:[%s977 + $0x20] sm:$0xff]
    %v983 = vld [vmem:[%s977 + $0x28] sm:$0xff]
    %v984 = vld [vmem:[%s977 + $0x30] sm:$0xff]
    %v985 = vld [vmem:[%s977 + $0x38] sm:$0xff]
    %v986 = vld [vmem:[%s977 + $0x40] sm:$0xff]
    %v987 = vld [vmem:[%s977 + $0x48] sm:$0xff]
    %v988 = vld [vmem:[%s977 + $0x50] sm:$0xff]
    %v989 = vld [vmem:[%s977 + $0x58] sm:$0xff]
    %v990 = vld [vmem:[%s977 + $0x60] sm:$0xff]
    %v991 = vld [vmem:[%s977 + $0x68] sm:$0xff]
    %v992 = vld [vmem:[%s977 + $0x70] sm:$0xff]
    %v993 = vld [vmem:[%s977 + $0x78] sm:$0xff]
    %v994 = vld [vmem:[%s977 + $0x80] sm:$0xff]
    %v995 = vld [vmem:[%s977 + $0x88] sm:$0xff]
    %v996 = vld [vmem:[%s977 + $0x90] sm:$0xff]
    %v997 = vld [vmem:[%s977 + $0x98] sm:$0xff]
    %v998 = vld [vmem:[%s977 + $0xa0] sm:$0xff]
    %v999 = vld [vmem:[%s977 + $0xa8] sm:$0xff]
    %v1000 = vld [vmem:[%s977 + $0xb0] sm:$0xff]
    %v1001 = vld [vmem:[%s977 + $0xb8] sm:$0xff]
    %v1002 = vld [vmem:[%s977 + $0xc0] sm:$0xff]
    %v1003 = vld [vmem:[%s977 + $0xc8] sm:$0xff]
    %v1004 = vld [vmem:[%s977 + $0xd0] sm:$0xff]
    %v1005 = vld [vmem:[%s977 + $0xd8] sm:$0xff]
    %v1006 = vld [vmem:[%s977 + $0xe0] sm:$0xff]
    %v1007 = vld [vmem:[%s977 + $0xe8] sm:$0xff]
    %v1008 = vld [vmem:[%s977 + $0xf0] sm:$0xff]
    %v1009 = vld [vmem:[%s977 + $0xf8] sm:$0xff]
    %v1010 = vld [vmem:[%s977 + $0x100] sm:$0xff]
    %v1011 = vld [vmem:[%s977 + $0x108] sm:$0xff]
    %v1012 = vld [vmem:[%s977 + $0x110] sm:$0xff]
    %v1013 = vld [vmem:[%s977 + $0x118] sm:$0xff]
    %v1014 = vld [vmem:[%s977 + $0x120] sm:$0xff]
    %v1015 = vld [vmem:[%s977 + $0x128] sm:$0xff]
    %v1016 = vld [vmem:[%s977 + $0x130] sm:$0xff]
    %v1017 = vld [vmem:[%s977 + $0x138] sm:$0xff]
    %v1018 = vld [vmem:[%s977 + $0x140] sm:$0xff]
    %v1019 = vld [vmem:[%s977 + $0x148] sm:$0xff]
    %v1020 = vld [vmem:[%s977 + $0x150] sm:$0xff]
    %v1021 = vld [vmem:[%s977 + $0x158] sm:$0xff]
    %v1022 = vld [vmem:[%s977 + $0x160] sm:$0xff]
    %v1023 = vld [vmem:[%s977 + $0x168] sm:$0xff]
    %v1024 = vld [vmem:[%s977 + $0x170] sm:$0xff]
    %v1025 = vld [vmem:[%s977 + $0x178] sm:$0xff]
    %1026 = vmatprep.subr.mxu0 %v979
    %1027 = vmatpush1.msra.mxu0 %v978
    %1028 = vmatprep.subr.mxu0 %v982
    %1029 = vmatpush1.msra.mxu0 %v981
    %1030 = vmatprep.subr.mxu0 %v985
    %1031 = vmatpush1.msra.mxu0 %v984
    %1032 = vmatprep.subr.mxu0 %v988
    %1033 = vmatpush1.msra.mxu0 %v987
    %1034 = vmatprep.subr.mxu0 %v991
    %1035 = vmatpush1.msra.mxu0 %v990
    %1036 = vmatprep.subr.mxu0 %v994
    %1037 = vmatpush1.msra.mxu0 %v993
    %1038 = vmatprep.subr.mxu0 %v997
    %1039 = vmatpush1.msra.mxu0 %v996
    %1040 = vmatprep.subr.mxu0 %v1000
    %1041 = vmatpush1.msra.mxu0 %v999
    %1042 = vmatprep.subr.mxu0 %v1003
    %1043 = vmatpush1.msra.mxu0 %v1002
    %1044 = vmatprep.subr.mxu0 %v1006
    %1045 = vmatpush1.msra.mxu0 %v1005
    %1046 = vmatprep.subr.mxu0 %v1009
    %1047 = vmatpush1.msra.mxu0 %v1008
    %1048 = vmatprep.subr.mxu0 %v1012
    %1049 = vmatpush1.msra.mxu0 %v1011
    %1050 = vmatprep.subr.mxu0 %v1015
    %1051 = vmatpush1.msra.mxu0 %v1014
    %1052 = vmatprep.subr.mxu0 %v1018
    %1053 = vmatpush1.msra.mxu0 %v1017
    %1054 = vmatprep.subr.mxu0 %v1021
    %1055 = vmatpush1.msra.mxu0 %v1020
    %1056 = vmatprep.subr.mxu0 %v1024
    %1057 = vmatpush1.msra.mxu0 %v1023
    %1058 = vmatprep.subr.mxu0 0.0
    %1059 = vmatpush1.msra.mxu0 0.0
    %1060 = vmatprep.subr.mxu0 0.0
    %1061 = vmatpush1.msra.mxu0 0.0
    %1062 = vmatprep.subr.mxu0 0.0
    %1063 = vmatpush1.msra.mxu0 0.0
    %1064 = vmatprep.subr.mxu0 0.0
    %1065 = vmatpush1.msra.mxu0 0.0
    %1066 = vmatprep.subr.mxu0 0.0
    %1067 = vmatpush1.msra.mxu0 0.0
    %1068 = vmatprep.subr.mxu0 0.0
    %1069 = vmatpush1.msra.mxu0 0.0
    %1070 = vmatprep.subr.mxu0 0.0
    %1071 = vmatpush1.msra.mxu0 0.0
    %1072 = vmatprep.subr.mxu0 0.0
    %1073 = vmatpush1.msra.mxu0 0.0
    %1074 = vmatprep.subr.mxu0 0.0
    %1075 = vmatpush1.msra.mxu0 0.0
    %1076 = vmatprep.subr.mxu0 0.0
    %1077 = vmatpush1.msra.mxu0 0.0
    %1078 = vmatprep.subr.mxu0 0.0
    %1079 = vmatpush1.msra.mxu0 0.0
    %1080 = vmatprep.subr.mxu0 0.0
    %1081 = vmatpush1.msra.mxu0 0.0
    %1082 = vmatprep.subr.mxu0 0.0
    %1083 = vmatpush1.msra.mxu0 0.0
    %1084 = vmatprep.subr.mxu0 0.0
    %1085 = vmatpush1.msra.mxu0 0.0
    %1086 = vmatprep.subr.mxu0 0.0
    %1087 = vmatpush1.msra.mxu0 0.0
    %1088 = vmatprep.subr.mxu0 0.0
    %1089 = vmatpush1.msra.mxu0 0.0
    %1090 = vmatprep.mubr.f32.mxu0 0.0
    %1091 = vmatmul.mubr.f32.gmra.mrb[0].mxu0 %v976
    %v1092 = vpop.f32.mrb[0].mxu0
    %v1093 = vadd.f32 0.0, %v1092
    %v1094 = vpop.f32.mrb[0].mxu0
    %v1095 = vadd.f32 0.0, %v1094
    %1096 = vdwg.mxu0
    %1097 = vmatprep.subr.mxu0 0.0
    %1098 = vmatpush1.msra.mxu0 %v980
    %1099 = vmatprep.subr.mxu0 0.0
    %1100 = vmatpush1.msra.mxu0 %v983
    %1101 = vmatprep.subr.mxu0 0.0
    %1102 = vmatpush1.msra.mxu0 %v986
    %1103 = vmatprep.subr.mxu0 0.0
    %1104 = vmatpush1.msra.mxu0 %v989
    %1105 = vmatprep.subr.mxu0 0.0
    %1106 = vmatpush1.msra.mxu0 %v992
    %1107 = vmatprep.subr.mxu0 0.0
    %1108 = vmatpush1.msra.mxu0 %v995
    %1109 = vmatprep.subr.mxu0 0.0
    %1110 = vmatpush1.msra.mxu0 %v998
    %1111 = vmatprep.subr.mxu0 0.0
    %1112 = vmatpush1.msra.mxu0 %v1001
    %1113 = vmatprep.subr.mxu0 0.0
    %1114 = vmatpush1.msra.mxu0 %v1004
    %1115 = vmatprep.subr.mxu0 0.0
    %1116 = vmatpush1.msra.mxu0 %v1007
    %1117 = vmatprep.subr.mxu0 0.0
    %1118 = vmatpush1.msra.mxu0 %v1010
    %1119 = vmatprep.subr.mxu0 0.0
    %1120 = vmatpush1.msra.mxu0 %v1013
    %1121 = vmatprep.subr.mxu0 0.0
    %1122 = vmatpush1.msra.mxu0 %v1016
    %1123 = vmatprep.subr.mxu0 0.0
    %1124 = vmatpush1.msra.mxu0 %v1019
    %1125 = vmatprep.subr.mxu0 0.0
    %1126 = vmatpush1.msra.mxu0 %v1022
    %1127 = vmatprep.subr.mxu0 0.0
    %1128 = vmatpush1.msra.mxu0 %v1025
    %1129 = vmatprep.subr.mxu0 0.0
    %1130 = vmatpush1.msra.mxu0 0.0
    %1131 = vmatprep.subr.mxu0 0.0
    %1132 = vmatpush1.msra.mxu0 0.0
    %1133 = vmatprep.subr.mxu0 0.0
    %1134 = vmatpush1.msra.mxu0 0.0
    %1135 = vmatprep.subr.mxu0 0.0
    %1136 = vmatpush1.msra.mxu0 0.0
    %1137 = vmatprep.subr.mxu0 0.0
    %1138 = vmatpush1.msra.mxu0 0.0
    %1139 = vmatprep.subr.mxu0 0.0
    %1140 = vmatpush1.msra.mxu0 0.0
    %1141 = vmatprep.subr.mxu0 0.0
    %1142 = vmatpush1.msra.mxu0 0.0
    %1143 = vmatprep.subr.mxu0 0.0
    %1144 = vmatpush1.msra.mxu0 0.0
    %1145 = vmatprep.subr.mxu0 0.0
    %1146 = vmatpush1.msra.mxu0 0.0
    %1147 = vmatprep.subr.mxu0 0.0
    %1148 = vmatpush1.msra.mxu0 0.0
    %1149 = vmatprep.subr.mxu0 0.0
    %1150 = vmatpush1.msra.mxu0 0.0
    %1151 = vmatprep.subr.mxu0 0.0
    %1152 = vmatpush1.msra.mxu0 0.0
    %1153 = vmatprep.subr.mxu0 0.0
    %1154 = vmatpush1.msra.mxu0 0.0
    %1155 = vmatprep.subr.mxu0 0.0
    %1156 = vmatpush1.msra.mxu0 0.0
    %1157 = vmatprep.subr.mxu0 0.0
    %1158 = vmatpush1.msra.mxu0 0.0
    %1159 = vmatprep.subr.mxu0 0.0
    %1160 = vmatpush1.msra.mxu0 0.0
    %1161 = vmatprep.mubr.f32.mxu0 0.0
    %1162 = vmatmul.mubr.f32.gmra.mrb[0].mxu0 %v976
    %v1163 = vpop.f32.mrb[0].mxu0
    %v1164 = vadd.f32 0.0, %v1163
    %v1165 = vpop.f32.mrb[0].mxu0
    %1166 = vdwg.mxu0
    %v1167 = vadd.f32 %v859, %v1093
    %v1168 = vadd.f32 %v861, %v1095
    %v1169 = vadd.f32 %v930, %v1164
    %v1170 = vrot.slane %v390, 3
    %v1172 = vsel %vm458, %v1170, 0.0
    %v1173 = vrot.slane %v1172, 4
    %v1174 = vadd.f32 %v1172, %v1173
    %v1175 = vrot.slane %v1174, 2
    %v1176 = vadd.f32 %v1174, %v1175
    %v1177 = vrot.slane %v1176, 1
    %v1178 = vadd.f32 %v1176, %v1177
    %v1179 = vmul.f32 %v1178, %v466
    %v1180 = vrot.slane %v409, 2
    %v1182 = vsel %vm458, %v1180, 0.0
    %v1183 = vrot.slane %v1182, 4
    %v1184 = vadd.f32 %v1182, %v1183
    %v1185 = vrot.slane %v1184, 2
    %v1186 = vadd.f32 %v1184, %v1185
    %v1187 = vrot.slane %v1186, 1
    %v1188 = vadd.f32 %v1186, %v1187
    %v1189 = vmul.f32 %v1188, %v466
    %v1190 = vrot.slane %v431, 1
    %v1192 = vsel %vm458, %v1190, 0.0
    %v1193 = vrot.slane %v1192, 4
    %v1194 = vadd.f32 %v1192, %v1193
    %v1195 = vrot.slane %v1194, 2
    %v1196 = vadd.f32 %v1194, %v1195
    %v1197 = vrot.slane %v1196, 1
    %v1198 = vadd.f32 %v1196, %v1197
    %v1199 = vmul.f32 %v1198, %v466
    %v1200 = vsel %vm458, %v457, 0.0
    %v1201 = vrot.slane %v1200, 4
    %v1202 = vadd.f32 %v1200, %v1201
    %v1203 = vrot.slane %v1202, 2
    %v1204 = vadd.f32 %v1202, %v1203
    %v1205 = vrot.slane %v1204, 1
    %v1206 = vadd.f32 %v1204, %v1205
    %v1207 = vmul.f32 %v1206, %v466
    %v1208 = vsel %vm470, %v1179, %v1189
    %v1209 = vsel %vm458, %v1208, %v1199
    %v1210 = vsel %vm507, %v1209, %v1207
    %s1211 = scalar_lea.vmem %s5, 1152
    %v1212 = vld [vmem:[%s1211] sm:$0xff]
    %v1213 = vld [vmem:[%s1211 + $0x8] sm:$0xff]
    %v1214 = vld [vmem:[%s1211 + $0x10] sm:$0xff]
    %v1215 = vld [vmem:[%s1211 + $0x18] sm:$0xff]
    %v1216 = vld [vmem:[%s1211 + $0x20] sm:$0xff]
    %v1217 = vld [vmem:[%s1211 + $0x28] sm:$0xff]
    %v1218 = vld [vmem:[%s1211 + $0x30] sm:$0xff]
    %v1219 = vld [vmem:[%s1211 + $0x38] sm:$0xff]
    %v1220 = vld [vmem:[%s1211 + $0x40] sm:$0xff]
    %v1221 = vld [vmem:[%s1211 + $0x48] sm:$0xff]
    %v1222 = vld [vmem:[%s1211 + $0x50] sm:$0xff]
    %v1223 = vld [vmem:[%s1211 + $0x58] sm:$0xff]
    %v1224 = vld [vmem:[%s1211 + $0x60] sm:$0xff]
    %v1225 = vld [vmem:[%s1211 + $0x68] sm:$0xff]
    %v1226 = vld [vmem:[%s1211 + $0x70] sm:$0xff]
    %v1227 = vld [vmem:[%s1211 + $0x78] sm:$0xff]
    %v1228 = vld [vmem:[%s1211 + $0x80] sm:$0xff]
    %v1229 = vld [vmem:[%s1211 + $0x88] sm:$0xff]
    %v1230 = vld [vmem:[%s1211 + $0x90] sm:$0xff]
    %v1231 = vld [vmem:[%s1211 + $0x98] sm:$0xff]
    %v1232 = vld [vmem:[%s1211 + $0xa0] sm:$0xff]
    %v1233 = vld [vmem:[%s1211 + $0xa8] sm:$0xff]
    %v1234 = vld [vmem:[%s1211 + $0xb0] sm:$0xff]
    %v1235 = vld [vmem:[%s1211 + $0xb8] sm:$0xff]
    %v1236 = vld [vmem:[%s1211 + $0xc0] sm:$0xff]
    %v1237 = vld [vmem:[%s1211 + $0xc8] sm:$0xff]
    %v1238 = vld [vmem:[%s1211 + $0xd0] sm:$0xff]
    %v1239 = vld [vmem:[%s1211 + $0xd8] sm:$0xff]
    %v1240 = vld [vmem:[%s1211 + $0xe0] sm:$0xff]
    %v1241 = vld [vmem:[%s1211 + $0xe8] sm:$0xff]
    %v1242 = vld [vmem:[%s1211 + $0xf0] sm:$0xff]
    %v1243 = vld [vmem:[%s1211 + $0xf8] sm:$0xff]
    %v1244 = vld [vmem:[%s1211 + $0x100] sm:$0xff]
    %v1245 = vld [vmem:[%s1211 + $0x108] sm:$0xff]
    %v1246 = vld [vmem:[%s1211 + $0x110] sm:$0xff]
    %v1247 = vld [vmem:[%s1211 + $0x118] sm:$0xff]
    %v1248 = vld [vmem:[%s1211 + $0x120] sm:$0xff]
    %v1249 = vld [vmem:[%s1211 + $0x128] sm:$0xff]
    %v1250 = vld [vmem:[%s1211 + $0x130] sm:$0xff]
    %v1251 = vld [vmem:[%s1211 + $0x138] sm:$0xff]
    %v1252 = vld [vmem:[%s1211 + $0x140] sm:$0xff]
    %v1253 = vld [vmem:[%s1211 + $0x148] sm:$0xff]
    %v1254 = vld [vmem:[%s1211 + $0x150] sm:$0xff]
    %v1255 = vld [vmem:[%s1211 + $0x158] sm:$0xff]
    %v1256 = vld [vmem:[%s1211 + $0x160] sm:$0xff]
    %v1257 = vld [vmem:[%s1211 + $0x168] sm:$0xff]
    %v1258 = vld [vmem:[%s1211 + $0x170] sm:$0xff]
    %v1259 = vld [vmem:[%s1211 + $0x178] sm:$0xff]
    %1260 = vmatprep.subr.mxu0 %v1213
    %1261 = vmatpush1.msra.mxu0 %v1212
    %1262 = vmatprep.subr.mxu0 %v1216
    %1263 = vmatpush1.msra.mxu0 %v1215
    %1264 = vmatprep.subr.mxu0 %v1219
    %1265 = vmatpush1.msra.mxu0 %v1218
    %1266 = vmatprep.subr.mxu0 %v1222
    %1267 = vmatpush1.msra.mxu0 %v1221
    %1268 = vmatprep.subr.mxu0 %v1225
    %1269 = vmatpush1.msra.mxu0 %v1224
    %1270 = vmatprep.subr.mxu0 %v1228
    %1271 = vmatpush1.msra.mxu0 %v1227
    %1272 = vmatprep.subr.mxu0 %v1231
    %1273 = vmatpush1.msra.mxu0 %v1230
    %1274 = vmatprep.subr.mxu0 %v1234
    %1275 = vmatpush1.msra.mxu0 %v1233
    %1276 = vmatprep.subr.mxu0 %v1237
    %1277 = vmatpush1.msra.mxu0 %v1236
    %1278 = vmatprep.subr.mxu0 %v1240
    %1279 = vmatpush1.msra.mxu0 %v1239
    %1280 = vmatprep.subr.mxu0 %v1243
    %1281 = vmatpush1.msra.mxu0 %v1242
    %1282 = vmatprep.subr.mxu0 %v1246
    %1283 = vmatpush1.msra.mxu0 %v1245
    %1284 = vmatprep.subr.mxu0 %v1249
    %1285 = vmatpush1.msra.mxu0 %v1248
    %1286 = vmatprep.subr.mxu0 %v1252
    %1287 = vmatpush1.msra.mxu0 %v1251
    %1288 = vmatprep.subr.mxu0 %v1255
    %1289 = vmatpush1.msra.mxu0 %v1254
    %1290 = vmatprep.subr.mxu0 %v1258
    %1291 = vmatpush1.msra.mxu0 %v1257
    %1292 = vmatprep.subr.mxu0 0.0
    %1293 = vmatpush1.msra.mxu0 0.0
    %1294 = vmatprep.subr.mxu0 0.0
    %1295 = vmatpush1.msra.mxu0 0.0
    %1296 = vmatprep.subr.mxu0 0.0
    %1297 = vmatpush1.msra.mxu0 0.0
    %1298 = vmatprep.subr.mxu0 0.0
    %1299 = vmatpush1.msra.mxu0 0.0
    %1300 = vmatprep.subr.mxu0 0.0
    %1301 = vmatpush1.msra.mxu0 0.0
    %1302 = vmatprep.subr.mxu0 0.0
    %1303 = vmatpush1.msra.mxu0 0.0
    %1304 = vmatprep.subr.mxu0 0.0
    %1305 = vmatpush1.msra.mxu0 0.0
    %1306 = vmatprep.subr.mxu0 0.0
    %1307 = vmatpush1.msra.mxu0 0.0
    %1308 = vmatprep.subr.mxu0 0.0
    %1309 = vmatpush1.msra.mxu0 0.0
    %1310 = vmatprep.subr.mxu0 0.0
    %1311 = vmatpush1.msra.mxu0 0.0
    %1312 = vmatprep.subr.mxu0 0.0
    %1313 = vmatpush1.msra.mxu0 0.0
    %1314 = vmatprep.subr.mxu0 0.0
    %1315 = vmatpush1.msra.mxu0 0.0
    %1316 = vmatprep.subr.mxu0 0.0
    %1317 = vmatpush1.msra.mxu0 0.0
    %1318 = vmatprep.subr.mxu0 0.0
    %1319 = vmatpush1.msra.mxu0 0.0
    %1320 = vmatprep.subr.mxu0 0.0
    %1321 = vmatpush1.msra.mxu0 0.0
    %1322 = vmatprep.subr.mxu0 0.0
    %1323 = vmatpush1.msra.mxu0 0.0
    %1324 = vmatprep.mubr.f32.mxu0 0.0
    %1325 = vmatmul.mubr.f32.gmra.mrb[0].mxu0 %v1210
    %v1326 = vpop.f32.mrb[0].mxu0
    %v1327 = vadd.f32 0.0, %v1326
    %v1328 = vpop.f32.mrb[0].mxu0
    %v1329 = vadd.f32 0.0, %v1328
    %1330 = vdwg.mxu0
    %1331 = vmatprep.subr.mxu0 0.0
    %1332 = vmatpush1.msra.mxu0 %v1214
    %1333 = vmatprep.subr.mxu0 0.0
    %1334 = vmatpush1.msra.mxu0 %v1217
    %1335 = vmatprep.subr.mxu0 0.0
    %1336 = vmatpush1.msra.mxu0 %v1220
    %1337 = vmatprep.subr.mxu0 0.0
    %1338 = vmatpush1.msra.mxu0 %v1223
    %1339 = vmatprep.subr.mxu0 0.0
    %1340 = vmatpush1.msra.mxu0 %v1226
    %1341 = vmatprep.subr.mxu0 0.0
    %1342 = vmatpush1.msra.mxu0 %v1229
    %1343 = vmatprep.subr.mxu0 0.0
    %1344 = vmatpush1.msra.mxu0 %v1232
    %1345 = vmatprep.subr.mxu0 0.0
    %1346 = vmatpush1.msra.mxu0 %v1235
    %1347 = vmatprep.subr.mxu0 0.0
    %1348 = vmatpush1.msra.mxu0 %v1238
    %1349 = vmatprep.subr.mxu0 0.0
    %1350 = vmatpush1.msra.mxu0 %v1241
    %1351 = vmatprep.subr.mxu0 0.0
    %1352 = vmatpush1.msra.mxu0 %v1244
    %1353 = vmatprep.subr.mxu0 0.0
    %1354 = vmatpush1.msra.mxu0 %v1247
    %1355 = vmatprep.subr.mxu0 0.0
    %1356 = vmatpush1.msra.mxu0 %v1250
    %1357 = vmatprep.subr.mxu0 0.0
    %1358 = vmatpush1.msra.mxu0 %v1253
    %1359 = vmatprep.subr.mxu0 0.0
    %1360 = vmatpush1.msra.mxu0 %v1256
    %1361 = vmatprep.subr.mxu0 0.0
    %1362 = vmatpush1.msra.mxu0 %v1259
    %1363 = vmatprep.subr.mxu0 0.0
    %1364 = vmatpush1.msra.mxu0 0.0
    %1365 = vmatprep.subr.mxu0 0.0
    %1366 = vmatpush1.msra.mxu0 0.0
    %1367 = vmatprep.subr.mxu0 0.0
    %1368 = vmatpush1.msra.mxu0 0.0
    %1369 = vmatprep.subr.mxu0 0.0
    %1370 = vmatpush1.msra.mxu0 0.0
    %1371 = vmatprep.subr.mxu0 0.0
    %1372 = vmatpush1.msra.mxu0 0.0
    %1373 = vmatprep.subr.mxu0 0.0
    %1374 = vmatpush1.msra.mxu0 0.0
    %1375 = vmatprep.subr.mxu0 0.0
    %1376 = vmatpush1.msra.mxu0 0.0
    %1377 = vmatprep.subr.mxu0 0.0
    %1378 = vmatpush1.msra.mxu0 0.0
    %1379 = vmatprep.subr.mxu0 0.0
    %1380 = vmatpush1.msra.mxu0 0.0
    %1381 = vmatprep.subr.mxu0 0.0
    %1382 = vmatpush1.msra.mxu0 0.0
    %1383 = vmatprep.subr.mxu0 0.0
    %1384 = vmatpush1.msra.mxu0 0.0
    %1385 = vmatprep.subr.mxu0 0.0
    %1386 = vmatpush1.msra.mxu0 0.0
    %1387 = vmatprep.subr.mxu0 0.0
    %1388 = vmatpush1.msra.mxu0 0.0
    %1389 = vmatprep.subr.mxu0 0.0
    %1390 = vmatpush1.msra.mxu0 0.0
    %1391 = vmatprep.subr.mxu0 0.0
    %1392 = vmatpush1.msra.mxu0 0.0
    %1393 = vmatprep.subr.mxu0 0.0
    %1394 = vmatpush1.msra.mxu0 0.0
    %1395 = vmatprep.mubr.f32.mxu0 0.0
    %1396 = vmatmul.mubr.f32.gmra.mrb[0].mxu0 %v1210
    %v1397 = vpop.f32.mrb[0].mxu0
    %v1398 = vadd.f32 0.0, %v1397
    %v1399 = vpop.f32.mrb[0].mxu0
    %1400 = vdwg.mxu0
    %v1401 = vadd.f32 %v1167, %v1327
    %v1402 = vadd.f32 %v1168, %v1329
    %v1403 = vadd.f32 %v1169, %v1398
    %v1404 = vld [vmem:[%s1] sm:$0xf]
    %v1405 = vld [vmem:[%s2] sm:$0xf]
    %vm1406 = vcmask 31744
    %v1408 = vsel %vm1406, %v1405, 0
    %vm1410 = vcmask 1043456
    %v1412 = vsel %vm1410, %v1402, 0
    %1414 = vmatprep.subr.mxu0 0.0
    %1415 = vmatpush1.msra.mxu0 %v1412
    %1416 = vmatprep.subr.mxu0 0.0
    %1417 = vmatpush1.msra.mxu0 0.0
    %1418 = vmatprep.subr.mxu0 0.0
    %1419 = vmatpush1.msra.mxu0 0.0
    %1420 = vmatprep.subr.mxu0 0.0
    %1421 = vmatpush1.msra.mxu0 0.0
    %1422 = vmatprep.subr.mxu0 0.0
    %1423 = vmatpush1.msra.mxu0 0.0
    %1424 = vmatprep.subr.mxu0 0.0
    %1425 = vmatpush1.msra.mxu0 0.0
    %1426 = vmatprep.subr.mxu0 0.0
    %1427 = vmatpush1.msra.mxu0 0.0
    %1428 = vmatprep.subr.mxu0 0.0
    %1429 = vmatpush1.msra.mxu0 0.0
    %1430 = vmatprep.subr.mxu0 0.0
    %1431 = vmatpush1.msra.mxu0 0.0
    %1432 = vmatprep.subr.mxu0 0.0
    %1433 = vmatpush1.msra.mxu0 0.0
    %1434 = vmatprep.subr.mxu0 0.0
    %1435 = vmatpush1.msra.mxu0 0.0
    %1436 = vmatprep.subr.mxu0 0.0
    %1437 = vmatpush1.msra.mxu0 0.0
    %1438 = vmatprep.subr.mxu0 0.0
    %1439 = vmatpush1.msra.mxu0 0.0
    %1440 = vmatprep.subr.mxu0 0.0
    %1441 = vmatpush1.msra.mxu0 0.0
    %1442 = vmatprep.subr.mxu0 0.0
    %1443 = vmatpush1.msra.mxu0 0.0
    %1444 = vmatprep.subr.mxu0 0.0
    %1445 = vmatpush1.msra.mxu0 0.0
    %1446 = vmatprep.subr.mxu0 0.0
    %1447 = vmatpush1.msra.mxu0 0.0
    %1448 = vmatprep.subr.mxu0 0.0
    %1449 = vmatpush1.msra.mxu0 0.0
    %1450 = vmatprep.subr.mxu0 0.0
    %1451 = vmatpush1.msra.mxu0 0.0
    %1452 = vmatprep.subr.mxu0 0.0
    %1453 = vmatpush1.msra.mxu0 0.0
    %1454 = vmatprep.subr.mxu0 0.0
    %1455 = vmatpush1.msra.mxu0 0.0
    %1456 = vmatprep.subr.mxu0 0.0
    %1457 = vmatpush1.msra.mxu0 0.0
    %1458 = vmatprep.subr.mxu0 0.0
    %1459 = vmatpush1.msra.mxu0 0.0
    %1460 = vmatprep.subr.mxu0 0.0
    %1461 = vmatpush1.msra.mxu0 0.0
    %1462 = vmatprep.subr.mxu0 0.0
    %1463 = vmatpush1.msra.mxu0 0.0
    %1464 = vmatprep.subr.mxu0 0.0
    %1465 = vmatpush1.msra.mxu0 0.0
    %1466 = vmatprep.subr.mxu0 0.0
    %1467 = vmatpush1.msra.mxu0 0.0
    %1468 = vmatprep.subr.mxu0 0.0
    %1469 = vmatpush1.msra.mxu0 0.0
    %1470 = vmatprep.subr.mxu0 0.0
    %1471 = vmatpush1.msra.mxu0 0.0
    %1472 = vmatprep.subr.mxu0 0.0
    %1473 = vmatpush1.msra.mxu0 0.0
    %1474 = vmatprep.subr.mxu0 0.0
    %1475 = vmatpush1.msra.mxu0 0.0
    %1476 = vmatprep.subr.mxu0 0.0
    %1477 = vmatpush1.msra.mxu0 0.0
    %1478 = vmatprep.mubr.f32.mxu0 0.0
    %1479 = vmatmul.mubr.f32.gmra.mrb[0].mxu0 %v1408
    %v1480 = vpop.f32.mrb[0].mxu0
    %v1481 = vadd.f32 0.0, %v1480
    %v1482 = vpop.f32.mrb[0].mxu0
    %1483 = vdwg.mxu0
    %v1485 = vsel %vm1406, %v1404, 0
    %v1488 = vsel %vm1410, %v1401, 0
    %1490 = vmatprep.subr.mxu0 0.0
    %1491 = vmatpush1.msra.mxu0 %v1488
    %1492 = vmatprep.subr.mxu0 0.0
    %1493 = vmatpush1.msra.mxu0 0.0
    %1494 = vmatprep.subr.mxu0 0.0
    %1495 = vmatpush1.msra.mxu0 0.0
    %1496 = vmatprep.subr.mxu0 0.0
    %1497 = vmatpush1.msra.mxu0 0.0
    %1498 = vmatprep.subr.mxu0 0.0
    %1499 = vmatpush1.msra.mxu0 0.0
    %1500 = vmatprep.subr.mxu0 0.0
    %1501 = vmatpush1.msra.mxu0 0.0
    %1502 = vmatprep.subr.mxu0 0.0
    %1503 = vmatpush1.msra.mxu0 0.0
    %1504 = vmatprep.subr.mxu0 0.0
    %1505 = vmatpush1.msra.mxu0 0.0
    %1506 = vmatprep.subr.mxu0 0.0
    %1507 = vmatpush1.msra.mxu0 0.0
    %1508 = vmatprep.subr.mxu0 0.0
    %1509 = vmatpush1.msra.mxu0 0.0
    %1510 = vmatprep.subr.mxu0 0.0
    %1511 = vmatpush1.msra.mxu0 0.0
    %1512 = vmatprep.subr.mxu0 0.0
    %1513 = vmatpush1.msra.mxu0 0.0
    %1514 = vmatprep.subr.mxu0 0.0
    %1515 = vmatpush1.msra.mxu0 0.0
    %1516 = vmatprep.subr.mxu0 0.0
    %1517 = vmatpush1.msra.mxu0 0.0
    %1518 = vmatprep.subr.mxu0 0.0
    %1519 = vmatpush1.msra.mxu0 0.0
    %1520 = vmatprep.subr.mxu0 0.0
    %1521 = vmatpush1.msra.mxu0 0.0
    %1522 = vmatprep.subr.mxu0 0.0
    %1523 = vmatpush1.msra.mxu0 0.0
    %1524 = vmatprep.subr.mxu0 0.0
    %1525 = vmatpush1.msra.mxu0 0.0
    %1526 = vmatprep.subr.mxu0 0.0
    %1527 = vmatpush1.msra.mxu0 0.0
    %1528 = vmatprep.subr.mxu0 0.0
    %1529 = vmatpush1.msra.mxu0 0.0
    %1530 = vmatprep.subr.mxu0 0.0
    %1531 = vmatpush1.msra.mxu0 0.0
    %1532 = vmatprep.subr.mxu0 0.0
    %1533 = vmatpush1.msra.mxu0 0.0
    %1534 = vmatprep.subr.mxu0 0.0
    %1535 = vmatpush1.msra.mxu0 0.0
    %1536 = vmatprep.subr.mxu0 0.0
    %1537 = vmatpush1.msra.mxu0 0.0
    %1538 = vmatprep.subr.mxu0 0.0
    %1539 = vmatpush1.msra.mxu0 0.0
    %1540 = vmatprep.subr.mxu0 0.0
    %1541 = vmatpush1.msra.mxu0 0.0
    %1542 = vmatprep.subr.mxu0 0.0
    %1543 = vmatpush1.msra.mxu0 0.0
    %1544 = vmatprep.subr.mxu0 0.0
    %1545 = vmatpush1.msra.mxu0 0.0
    %1546 = vmatprep.subr.mxu0 0.0
    %1547 = vmatpush1.msra.mxu0 0.0
    %1548 = vmatprep.subr.mxu0 0.0
    %1549 = vmatpush1.msra.mxu0 0.0
    %1550 = vmatprep.subr.mxu0 0.0
    %1551 = vmatpush1.msra.mxu0 0.0
    %1552 = vmatprep.subr.mxu0 0.0
    %1553 = vmatpush1.msra.mxu0 0.0
    %1554 = vmatprep.mubr.f32.mxu0 0.0
    %1555 = vmatmul.mubr.f32.gmra.mrb[0].mxu0 %v1485
    %v1556 = vpop.f32.mrb[0].mxu0
    %v1557 = vadd.f32 %v1481, %v1556
    %v1558 = vpop.f32.mrb[0].mxu0
    %1559 = vdwg.mxu0
    %v1560 = vadd.f32 %v1557, %v1403
    %v1561 = vld [vmem:[%s6] sm:$0x1]
    %v1563 = vlaneseq
    %v1564 = vshrl.u32 %v1563, 7
    %v1565 = vsub.s32 0, %v1564
    %v1566 = vrot.slane %v1561, %v1565
    %v1568 = vadd.f32 %v1560, %v1566
    %v1569 = vmax.f32 %v1568, 0.0
    %v1570 = vld [vmem:[#allocation5] sm:$0xff]
    %v1571 = vld [vmem:[#allocation5 + $0x8] sm:$0xff]
    %v1572 = vld [vmem:[#allocation5 + $0x10] sm:$0xff]
    %v1573 = vld [vmem:[#allocation5 + $0x18] sm:$0xff]
    %v1574 = vld [vmem:[#allocation5 + $0x20] sm:$0xff]
    %v1575 = vld [vmem:[#allocation5 + $0x28] sm:$0xff]
    %v1576 = vld [vmem:[#allocation5 + $0x30] sm:$0xff]
    %v1577 = vld [vmem:[#allocation5 + $0x38] sm:$0xff]
    %v1578 = vld [vmem:[#allocation5 + $0x40] sm:$0xff]
    %v1579 = vld [vmem:[#allocation5 + $0x48] sm:$0xff]
    %v1580 = vld [vmem:[#allocation5 + $0x50] sm:$0xff]
    %v1581 = vld [vmem:[#allocation5 + $0x58] sm:$0xff]
    %v1582 = vld [vmem:[#allocation5 + $0x60] sm:$0xff]
    %v1583 = vld [vmem:[#allocation5 + $0x68] sm:$0xff]
    %v1584 = vld [vmem:[#allocation5 + $0x70] sm:$0xff]
    %v1585 = vld [vmem:[#allocation5 + $0x78] sm:$0xff]
    %v1586 = vld [vmem:[%s8] sm:$0x1]
    %v1588 = vlaneseq
    %v1589 = vshrl.u32 %v1588, 7
    %v1590 = vsub.s32 0, %v1589
    %v1591 = vrot.slane %v1586, %v1590
    %1593 = vmatprep.subr.mxu0 0.0
    %1594 = vmatpush1.msra.mxu0 %v1570
    %1595 = vmatprep.subr.mxu0 0.0
    %1596 = vmatpush1.msra.mxu0 %v1571
    %1597 = vmatprep.subr.mxu0 0.0
    %1598 = vmatpush1.msra.mxu0 %v1572
    %1599 = vmatprep.subr.mxu0 0.0
    %1600 = vmatpush1.msra.mxu0 %v1573
    %1601 = vmatprep.subr.mxu0 0.0
    %1602 = vmatpush1.msra.mxu0 %v1574
    %1603 = vmatprep.subr.mxu0 0.0
    %1604 = vmatpush1.msra.mxu0 %v1575
    %1605 = vmatprep.subr.mxu0 0.0
    %1606 = vmatpush1.msra.mxu0 %v1576
    %1607 = vmatprep.subr.mxu0 0.0
    %1608 = vmatpush1.msra.mxu0 %v1577
    %1609 = vmatprep.subr.mxu0 0.0
    %1610 = vmatpush1.msra.mxu0 %v1578
    %1611 = vmatprep.subr.mxu0 0.0
    %1612 = vmatpush1.msra.mxu0 %v1579
    %1613 = vmatprep.subr.mxu0 0.0
    %1614 = vmatpush1.msra.mxu0 %v1580
    %1615 = vmatprep.subr.mxu0 0.0
    %1616 = vmatpush1.msra.mxu0 %v1581
    %1617 = vmatprep.subr.mxu0 0.0
    %1618 = vmatpush1.msra.mxu0 %v1582
    %1619 = vmatprep.subr.mxu0 0.0
    %1620 = vmatpush1.msra.mxu0 %v1583
    %1621 = vmatprep.subr.mxu0 0.0
    %1622 = vmatpush1.msra.mxu0 %v1584
    %1623 = vmatprep.subr.mxu0 0.0
    %1624 = vmatpush1.msra.mxu0 %v1585
    %1625 = vmatprep.subr.mxu0 0.0
    %1626 = vmatpush1.msra.mxu0 0.0
    %1627 = vmatprep.subr.mxu0 0.0
    %1628 = vmatpush1.msra.mxu0 0.0
    %1629 = vmatprep.subr.mxu0 0.0
    %1630 = vmatpush1.msra.mxu0 0.0
    %1631 = vmatprep.subr.mxu0 0.0
    %1632 = vmatpush1.msra.mxu0 0.0
    %1633 = vmatprep.subr.mxu0 0.0
    %1634 = vmatpush1.msra.mxu0 0.0
    %1635 = vmatprep.subr.mxu0 0.0
    %1636 = vmatpush1.msra.mxu0 0.0
    %1637 = vmatprep.subr.mxu0 0.0
    %1638 = vmatpush1.msra.mxu0 0.0
    %1639 = vmatprep.subr.mxu0 0.0
    %1640 = vmatpush1.msra.mxu0 0.0
    %1641 = vmatprep.subr.mxu0 0.0
    %1642 = vmatpush1.msra.mxu0 0.0
    %1643 = vmatprep.subr.mxu0 0.0
    %1644 = vmatpush1.msra.mxu0 0.0
    %1645 = vmatprep.subr.mxu0 0.0
    %1646 = vmatpush1.msra.mxu0 0.0
    %1647 = vmatprep.subr.mxu0 0.0
    %1648 = vmatpush1.msra.mxu0 0.0
    %1649 = vmatprep.subr.mxu0 0.0
    %1650 = vmatpush1.msra.mxu0 0.0
    %1651 = vmatprep.subr.mxu0 0.0
    %1652 = vmatpush1.msra.mxu0 0.0
    %1653 = vmatprep.subr.mxu0 0.0
    %1654 = vmatpush1.msra.mxu0 0.0
    %1655 = vmatprep.subr.mxu0 0.0
    %1656 = vmatpush1.msra.mxu0 0.0
    %1657 = vmatprep.mubr.f32.mxu0 0.0
    %1658 = vmatmul.mubr.f32.gmra.mrb[0].mxu0 %v1569
    %v1659 = vpop.f32.mrb[0].mxu0
    %v1660 = vadd.f32 %v1591, %v1659
    %v1661 = vpop.f32.mrb[0].mxu0
    %1662 = vdwg.mxu0
    %1663 = vst [vmem:[#allocation7] sm:$0xf] %v1660
    // Predicated region
    $region46: #{_forward_jit.3} parent=1 // pred_check
      _
    $region47: #{_forward_jit.3} parent=1 // pred_check_branch
      %1665 = sbr.rel (0) target = $region49
    $region48: #{_forward_jit.3} parent=1 // pred_region
      %s1667 = ssub.s32 64, 64
      %1668 = vsyncadd [#allocation4], %s1667
      %s1670 = sshll.u32 [#allocation7], 4
      %s1671 = int_to_ptr.vmem [resolvable:$true] %s1670
      %1673 = dma.vmem_to_hbm [thread:$0]  %s1671, 64, %s9, [#allocation4]
    $region49: #{_forward_jit.3} parent=1 // pred_fallthru
      _
    // Predicated region
    $region50: #{_forward_jit.3} parent=1 // pred_check
      _
    $region51: #{_forward_jit.3} parent=1 // pred_check_branch
      %1675 = sbr.rel (0) target = $region53
    $region52: #{_forward_jit.3} parent=1 // pred_region
      %1676 = dma.done [#allocation4], 64
    $region53: #{_forward_jit.3} parent=1 // pred_fallthru
      _
    %1677 = vsyncpa [#allocation3], 1
    %1678 = vsyncpa [#allocation6], 1
    %1679 = vsyncpa [#allocation4], 1

// kernel: _forward_jit.2
$region0: #{_forward_jit.2}
  #allocation0 [shape = 'u32[]', space=smem, size = 0x4, offset = 0x4, fixed_abs, tag = 'smem constant byte address 0x4 - core index']
  #allocation1 [shape = 'u32[144,128]{1,0:T(1,128)}', space=vmem, size = 0x12000, scoped, tag = 'internal scratch']
  %s0 = inlined_call_operand.vmem [shape: f32[10,8], index: 0, kind: input, shape index: {}]
  %s1 = inlined_call_operand.vmem [shape: f32[2,256], index: 1, kind: input, shape index: {}]
  %s2 = inlined_call_operand.vmem [shape: f32[16,384], index: 2, kind: input, shape index: {}]
  %s3 = inlined_call_operand.vmem [shape: f32[16,64], index: 3, kind: input, shape index: {}]
  %s4 = inlined_call_operand.vmem [shape: f32[8,32], index: 4, kind: input, shape index: {}]
  %s5 = inlined_call_operand.vmem [shape: f32[1,32], index: 5, kind: input, shape index: {}]
  %s6 = inlined_call_operand.vmem [shape: f32[256,32], index: 6, kind: input, shape index: {}]
  %s7 = inlined_call_operand.vmem [shape: f32[1,32], index: 7, kind: input, shape index: {}]
  %s8 = inlined_call_operand.hbm [shape: f32[128,128], index: 8, kind: input, shape index: {}]
  %s9 = inlined_call_operand.vmem [shape: f32[1,128], index: 9, kind: input, shape index: {}]
  %s10 = inlined_call_operand.vmem [shape: f32[16,128], index: 10, kind: output, shape index: {}]
  %s11 = sld [smem:[#allocation0]]
  $region58: #{_forward_jit.2} parent=0
    _
  %s13 = ssub.s32 1, %s11
  %s14 = scalar_select 0, %s13, %s11
  $region1: #{_forward_jit.2} parent=0
    #allocation2 [shape = 'u8[8192]{0}', space=smem, size = 0x2000, scoped, tag = 'input window, operand 0, single buffered']
    #allocation3 [shape = 's32[1]{0}', space=sflag, size = 0x4, scoped, tag = 'scoped memory for _forward_jit.2']
    #allocation4 [shape = 's32[1]{0}', space=sflag, size = 0x4, scoped, tag = 'scoped memory for _forward_jit.2']
    #allocation5 [shape = 'u8[65536]{0}', space=vmem, size = 0x10000, scoped, tag = 'input window, operand 8, single buffered']
    %15 = vsyncpa [#allocation4], 0
    %16 = vsyncpa [#allocation3], 0
    // Predicated region
    $region2: #{_forward_jit.2} parent=1 // pred_check
      _
    $region3: #{_forward_jit.2} parent=1 // pred_check_branch
      %18 = sbr.rel (0) target = $region5
    $region4: #{_forward_jit.2} parent=1 // pred_region
      %s20 = ssub.s32 256, 256
      %21 = vsyncadd [#allocation4], %s20
      %s22 = sshll.u32 %s0, 4
      %s23 = int_to_ptr.vmem [resolvable:$true] %s22
      %28 = dma.vmem_to_smem %s23, 256, [#allocation2], [#allocation4], 128, 128, 8
    $region5: #{_forward_jit.2} parent=1 // pred_fallthru
      _
    // Predicated region
    $region6: #{_forward_jit.2} parent=1 // pred_check
      _
    $region7: #{_forward_jit.2} parent=1 // pred_check_branch
      %30 = sbr.rel (0) target = $region9
    $region8: #{_forward_jit.2} parent=1 // pred_region
      _
    $region9: #{_forward_jit.2} parent=1 // pred_fallthru
      _
    // Predicated region
    $region10: #{_forward_jit.2} parent=1 // pred_check
      _
    $region11: #{_forward_jit.2} parent=1 // pred_check_branch
      %32 = sbr.rel (0) target = $region13
    $region12: #{_forward_jit.2} parent=1 // pred_region
      _
    $region13: #{_forward_jit.2} parent=1 // pred_fallthru
      _
    // Predicated region
    $region14: #{_forward_jit.2} parent=1 // pred_check
      _
    $region15: #{_forward_jit.2} parent=1 // pred_check_branch
      %34 = sbr.rel (0) target = $region17
    $region16: #{_forward_jit.2} parent=1 // pred_region
      _
    $region17: #{_forward_jit.2} parent=1 // pred_fallthru
      _
    // Predicated region
    $region18: #{_forward_jit.2} parent=1 // pred_check
      _
    $region19: #{_forward_jit.2} parent=1 // pred_check_branch
      %36 = sbr.rel (0) target = $region21
    $region20: #{_forward_jit.2} parent=1 // pred_region
      _
    $region21: #{_forward_jit.2} parent=1 // pred_fallthru
      _
    // Predicated region
    $region22: #{_forward_jit.2} parent=1 // pred_check
      _
    $region23: #{_forward_jit.2} parent=1 // pred_check_branch
      %38 = sbr.rel (0) target = $region25
    $region24: #{_forward_jit.2} parent=1 // pred_region
      _
    $region25: #{_forward_jit.2} parent=1 // pred_fallthru
      _
    // Predicated region
    $region26: #{_forward_jit.2} parent=1 // pred_check
      _
    $region27: #{_forward_jit.2} parent=1 // pred_check_branch
      %40 = sbr.rel (0) target = $region29
    $region28: #{_forward_jit.2} parent=1 // pred_region
      _
    $region29: #{_forward_jit.2} parent=1 // pred_fallthru
      _
    // Predicated region
    $region30: #{_forward_jit.2} parent=1 // pred_check
      _
    $region31: #{_forward_jit.2} parent=1 // pred_check_branch
      %42 = sbr.rel (0) target = $region33
    $region32: #{_forward_jit.2} parent=1 // pred_region
      _
    $region33: #{_forward_jit.2} parent=1 // pred_fallthru
      _
    // Predicated region
    $region34: #{_forward_jit.2} parent=1 // pred_check
      _
    $region35: #{_forward_jit.2} parent=1 // pred_check_branch
      %44 = sbr.rel (0) target = $region37
    $region36: #{_forward_jit.2} parent=1 // pred_region
      %s46 = ssub.s32 2048, 2048
      %47 = vsyncadd [#allocation3], %s46
      %s48 = sshll.u32 [#allocation5], 4
      %s49 = int_to_ptr.vmem [resolvable:$true] %s48
      %54 = dma.hbm_to_vmem [thread:$0]  %s8, 2048, %s49, [#allocation3], 128, 128, 8
    $region37: #{_forward_jit.2} parent=1 // pred_fallthru
      _
    // Predicated region
    $region38: #{_forward_jit.2} parent=1 // pred_check
      _
    $region39: #{_forward_jit.2} parent=1 // pred_check_branch
      %56 = sbr.rel (0) target = $region41
    $region40: #{_forward_jit.2} parent=1 // pred_region
      _
    $region41: #{_forward_jit.2} parent=1 // pred_fallthru
      _
    // Predicated region
    $region42: #{_forward_jit.2} parent=1 // pred_check
      _
    $region43: #{_forward_jit.2} parent=1 // pred_check_branch
      %58 = sbr.rel (0) target = $region45
    $region44: #{_forward_jit.2} parent=1 // pred_region
      %59 = dma.done [#allocation4], 256
    $region45: #{_forward_jit.2} parent=1 // pred_fallthru
      _
    // Predicated region
    $region46: #{_forward_jit.2} parent=1 // pred_check
      _
    $region47: #{_forward_jit.2} parent=1 // pred_check_branch
      %61 = sbr.rel (0) target = $region49
    $region48: #{_forward_jit.2} parent=1 // pred_region
      %62 = dma.done [#allocation3], 2048
    $region49: #{_forward_jit.2} parent=1 // pred_fallthru
      _
    %63 = sfence
    %v64 = vld [vmem:[%s2] sm:$0xff]
    %v65 = vld [vmem:[%s2 + $0x8] sm:$0xff]
    %v66 = vld [vmem:[%s2 + $0x10] sm:$0xff]
    %v67 = vld [vmem:[%s2 + $0x18] sm:$0xff]
    %v68 = vld [vmem:[%s2 + $0x20] sm:$0xff]
    %v69 = vld [vmem:[%s2 + $0x28] sm:$0xff]
    %v70 = vld [vmem:[%s1] ss:$2 sm:$0x3]
    %s71 = scalar_lea.vmem %s1, 1
    %v72 = vld [vmem:[%s71] ss:$2 sm:$0x3]
    %v74 = vlaneseq
    %v75 = vshrl.u32 %v74, 7
    %v76 = vsub.s32 0, %v75
    %v77 = vrot.slane %v70, %v76
    %v78 = vlaneseq
    %v79 = vshrl.u32 %v78, 7
    %v80 = vsub.s32 1, %v79
    %v81 = vrot.slane %v70, %v80
    %82 = vrot.lane.b32.xlu0 %v77, 47
    %v83 = vpop.permute.xlu0 %82
    %84 = vrot.lane.b32.xlu0 %v81, 47
    %v85 = vpop.permute.xlu0 %84
    %vm86 = vcmask 384000
    %v87 = vsel %vm86, %v83, %v85
    %v91 = vmul.f32 %v64, %v83
    %v92 = vmul.f32 %v65, %v87
    %v93 = vmul.f32 %v66, %v85
    %v94 = vmul.f32 %v67, %v83
    %v95 = vmul.f32 %v68, %v87
    %v96 = vmul.f32 %v69, %v85
    %v98 = vlaneseq
    %v99 = vshrl.u32 %v98, 7
    %v100 = vsub.s32 0, %v99
    %v101 = vrot.slane %v72, %v100
    %v102 = vlaneseq
    %v103 = vshrl.u32 %v102, 7
    %v104 = vsub.s32 1, %v103
    %v105 = vrot.slane %v72, %v104
    %106 = vrot.lane.b32.xlu0 %v101, 49
    %v107 = vpop.permute.xlu0 %106
    %108 = vrot.lane.b32.xlu0 %v105, 49
    %v109 = vpop.permute.xlu0 %108
    %vm110 = vcmask 400384
    %v111 = vsel %vm110, %v107, %v109
    %v115 = vmul.f32 %v64, %v107
    %v116 = vmul.f32 %v65, %v111
    %v117 = vmul.f32 %v66, %v109
    %v118 = vmul.f32 %v67, %v107
    %v119 = vmul.f32 %v68, %v111
    %v120 = vmul.f32 %v69, %v109
    %121 = vrot.lane.b32.xlu0 %v77, 63
    %v122 = vpop.permute.xlu0 %121
    %123 = vrot.lane.b32.xlu0 %v81, 63
    %v124 = vpop.permute.xlu0 %123
    %vm125 = vcmask 515072
    %v126 = vsel %vm125, %v122, %v124
    %v130 = vmul.f32 %v64, %v122
    %v131 = vmul.f32 %v65, %v126
    %v132 = vmul.f32 %v66, %v124
    %v133 = vmul.f32 %v67, %v122
    %v134 = vmul.f32 %v68, %v126
    %v135 = vmul.f32 %v69, %v124
    %136 = vrot.lane.b32.xlu0 %v101, 65
    %v137 = vpop.permute.xlu0 %136
    %138 = vrot.lane.b32.xlu0 %v105, 65
    %v139 = vpop.permute.xlu0 %138
    %vm140 = vcmask 531456
    %v141 = vsel %vm140, %v137, %v139
    %v145 = vmul.f32 %v64, %v137
    %v146 = vmul.f32 %v65, %v141
    %v147 = vmul.f32 %v66, %v139
    %v148 = vmul.f32 %v67, %v137
    %v149 = vmul.f32 %v68, %v141
    %v150 = vmul.f32 %v69, %v139
    %151 = vrot.lane.b32.xlu0 %v77, 79
    %v152 = vpop.permute.xlu0 %151
    %153 = vrot.lane.b32.xlu0 %v81, 79
    %v154 = vpop.permute.xlu0 %153
    %vm155 = vcmask 646144
    %v156 = vsel %vm155, %v152, %v154
    %v160 = vmul.f32 %v64, %v152
    %v161 = vmul.f32 %v65, %v156
    %v162 = vmul.f32 %v66, %v154
    %v163 = vmul.f32 %v67, %v152
    %v164 = vmul.f32 %v68, %v156
    %v165 = vmul.f32 %v69, %v154
    %166 = vrot.lane.b32.xlu0 %v101, 81
    %v167 = vpop.permute.xlu0 %166
    %168 = vrot.lane.b32.xlu0 %v105, 81
    %v169 = vpop.permute.xlu0 %168
    %vm170 = vcmask 662528
    %v171 = vsel %vm170, %v167, %v169
    %v175 = vmul.f32 %v64, %v167
    %v176 = vmul.f32 %v65, %v171
    %v177 = vmul.f32 %v66, %v169
    %v178 = vmul.f32 %v67, %v167
    %v179 = vmul.f32 %v68, %v171
    %v180 = vmul.f32 %v69, %v169
    %s181 = sld [smem:[#allocation2 + $0x480]]
    %s182 = sld [smem:[#allocation2]]
    %v183 = vstv %s182
    %v184 = vmul.f32 %v183, %v91
    %v185 = vmul.f32 %v183, %v92
    %v186 = vmul.f32 %v183, %v93
    %v187 = vmul.f32 %v183, %v94
    %v188 = vmul.f32 %v183, %v95
    %v189 = vmul.f32 %v183, %v96
    %v190 = vstv %s181
    %v191 = vadd.f32 %v190, %v184
    %v192 = vadd.f32 %v190, %v185
    %v193 = vadd.f32 %v190, %v186
    %v194 = vadd.f32 %v190, %v187
    %v195 = vadd.f32 %v190, %v188
    %v196 = vadd.f32 %v190, %v189
    %s197 = sld [smem:[#allocation2 + $0x80]]
    %v198 = vstv %s197
    %v199 = vmul.f32 %v198, %v64
    %v200 = vmul.f32 %v198, %v65
    %v201 = vmul.f32 %v198, %v66
    %v202 = vmul.f32 %v198, %v67
    %v203 = vmul.f32 %v198, %v68
    %v204 = vmul.f32 %v198, %v69
    %211 = vrot.lane.b32.xlu0 %v199, 127
    %v212 = vpop.permute.xlu0 %211
    %213 = vrot.lane.b32.xlu0 %v200, 127
    %v214 = vpop.permute.xlu0 %213
    %215 = vrot.lane.b32.xlu0 %v201, 127
    %v216 = vpop.permute.xlu0 %215
    %217 = vrot.lane.b32.xlu0 %v202, 127
    %v218 = vpop.permute.xlu0 %217
    %219 = vrot.lane.b32.xlu0 %v203, 127
    %v220 = vpop.permute.xlu0 %219
    %221 = vrot.lane.b32.xlu0 %v204, 127
    %v222 = vpop.permute.xlu0 %221
    %vm223 = vcmask 1039360
    %v224 = vsel %vm223, %v212, %v214
    %v225 = vsel %vm223, %v214, %v216
    %v226 = vsel %vm223, %v218, %v220
    %v227 = vsel %vm223, %v220, %v222
    %v234 = vadd.f32 %v191, %v224
    %v235 = vadd.f32 %v192, %v225
    %v236 = vadd.f32 %v193, %v216
    %v237 = vadd.f32 %v194, %v226
    %v238 = vadd.f32 %v195, %v227
    %v239 = vadd.f32 %v196, %v222
    %s240 = sld [smem:[#allocation2 + $0x100]]
    %v241 = vstv %s240
    %v242 = vmul.f32 %v241, %v115
    %v243 = vmul.f32 %v241, %v116
    %v244 = vmul.f32 %v241, %v117
    %v245 = vmul.f32 %v241, %v118
    %v246 = vmul.f32 %v241, %v119
    %v247 = vmul.f32 %v241, %v120
    %254 = vrot.lane.b32.xlu0 %v242, 126
    %v255 = vpop.permute.xlu0 %254
    %256 = vrot.lane.b32.xlu0 %v243, 126
    %v257 = vpop.permute.xlu0 %256
    %258 = vrot.lane.b32.xlu0 %v244, 126
    %v259 = vpop.permute.xlu0 %258
    %260 = vrot.lane.b32.xlu0 %v245, 126
    %v261 = vpop.permute.xlu0 %260
    %262 = vrot.lane.b32.xlu0 %v246, 126
    %v263 = vpop.permute.xlu0 %262
    %264 = vrot.lane.b32.xlu0 %v247, 126
    %v265 = vpop.permute.xlu0 %264
    %vm266 = vcmask 1031168
    %v267 = vsel %vm266, %v255, %v257
    %v268 = vsel %vm266, %v257, %v259
    %v269 = vsel %vm266, %v261, %v263
    %v270 = vsel %vm266, %v263, %v265
    %v277 = vadd.f32 %v234, %v267
    %v278 = vadd.f32 %v235, %v268
    %v279 = vadd.f32 %v236, %v259
    %v280 = vadd.f32 %v237, %v269
    %v281 = vadd.f32 %v238, %v270
    %v282 = vadd.f32 %v239, %v265
    %s283 = sld [smem:[#allocation2 + $0x180]]
    %v284 = vstv %s283
    %v285 = vmul.f32 %v284, %v130
    %v286 = vmul.f32 %v284, %v131
    %v287 = vmul.f32 %v284, %v132
    %v288 = vmul.f32 %v284, %v133
    %v289 = vmul.f32 %v284, %v134
    %v290 = vmul.f32 %v284, %v135
    %297 = vrot.lane.b32.xlu0 %v285, 112
    %v298 = vpop.permute.xlu0 %297
    %299 = vrot.lane.b32.xlu0 %v286, 112
    %v300 = vpop.permute.xlu0 %299
    %301 = vrot.lane.b32.xlu0 %v287, 112
    %v302 = vpop.permute.xlu0 %301
    %303 = vrot.lane.b32.xlu0 %v288, 112
    %v304 = vpop.permute.xlu0 %303
    %305 = vrot.lane.b32.xlu0 %v289, 112
    %v306 = vpop.permute.xlu0 %305
    %307 = vrot.lane.b32.xlu0 %v290, 112
    %v308 = vpop.permute.xlu0 %307
    %vm309 = vcmask 916480
    %v310 = vsel %vm309, %v298, %v300
    %v311 = vsel %vm309, %v300, %v302
    %v312 = vsel %vm309, %v304, %v306
    %v313 = vsel %vm309, %v306, %v308
    %v320 = vadd.f32 %v277, %v310
    %v321 = vadd.f32 %v278, %v311
    %v322 = vadd.f32 %v279, %v302
    %v323 = vadd.f32 %v280, %v312
    %v324 = vadd.f32 %v281, %v313
    %v325 = vadd.f32 %v282, %v308
    %s326 = sld [smem:[#allocation2 + $0x200]]
    %v327 = vstv %s326
    %v328 = vmul.f32 %v327, %v64
    %v329 = vmul.f32 %v327, %v65
    %v330 = vmul.f32 %v327, %v66
    %v331 = vmul.f32 %v327, %v67
    %v332 = vmul.f32 %v327, %v68
    %v333 = vmul.f32 %v327, %v69
    %340 = vrot.lane.b32.xlu0 %v328, 111
    %v341 = vpop.permute.xlu0 %340
    %342 = vrot.lane.b32.xlu0 %v329, 111
    %v343 = vpop.permute.xlu0 %342
    %344 = vrot.lane.b32.xlu0 %v330, 111
    %v345 = vpop.permute.xlu0 %344
    %346 = vrot.lane.b32.xlu0 %v331, 111
    %v347 = vpop.permute.xlu0 %346
    %348 = vrot.lane.b32.xlu0 %v332, 111
    %v349 = vpop.permute.xlu0 %348
    %350 = vrot.lane.b32.xlu0 %v333, 111
    %v351 = vpop.permute.xlu0 %350
    %vm352 = vcmask 908288
    %v353 = vsel %vm352, %v341, %v343
    %v354 = vsel %vm352, %v343, %v345
    %v355 = vsel %vm352, %v347, %v349
    %v356 = vsel %vm352, %v349, %v351
    %v363 = vadd.f32 %v320, %v353
    %v364 = vadd.f32 %v321, %v354
    %v365 = vadd.f32 %v322, %v345
    %v366 = vadd.f32 %v323, %v355
    %v367 = vadd.f32 %v324, %v356
    %v368 = vadd.f32 %v325, %v351
    %s369 = sld [smem:[#allocation2 + $0x280]]
    %v370 = vstv %s369
    %v371 = vmul.f32 %v370, %v145
    %v372 = vmul.f32 %v370, %v146
    %v373 = vmul.f32 %v370, %v147
    %v374 = vmul.f32 %v370, %v148
    %v375 = vmul.f32 %v370, %v149
    %v376 = vmul.f32 %v370, %v150
    %383 = vrot.lane.b32.xlu0 %v371, 110
    %v384 = vpop.permute.xlu0 %383
    %385 = vrot.lane.b32.xlu0 %v372, 110
    %v386 = vpop.permute.xlu0 %385
    %387 = vrot.lane.b32.xlu0 %v373, 110
    %v388 = vpop.permute.xlu0 %387
    %389 = vrot.lane.b32.xlu0 %v374, 110
    %v390 = vpop.permute.xlu0 %389
    %391 = vrot.lane.b32.xlu0 %v375, 110
    %v392 = vpop.permute.xlu0 %391
    %393 = vrot.lane.b32.xlu0 %v376, 110
    %v394 = vpop.permute.xlu0 %393
    %vm395 = vcmask 900096
    %v396 = vsel %vm395, %v384, %v386
    %v397 = vsel %vm395, %v386, %v388
    %v398 = vsel %vm395, %v390, %v392
    %v399 = vsel %vm395, %v392, %v394
    %v406 = vadd.f32 %v363, %v396
    %v407 = vadd.f32 %v364, %v397
    %v408 = vadd.f32 %v365, %v388
    %v409 = vadd.f32 %v366, %v398
    %v410 = vadd.f32 %v367, %v399
    %v411 = vadd.f32 %v368, %v394
    %s412 = sld [smem:[#allocation2 + $0x300]]
    %v413 = vstv %s412
    %v414 = vmul.f32 %v413, %v160
    %v415 = vmul.f32 %v413, %v161
    %v416 = vmul.f32 %v413, %v162
    %v417 = vmul.f32 %v413, %v163
    %v418 = vmul.f32 %v413, %v164
    %v419 = vmul.f32 %v413, %v165
    %426 = vrot.lane.b32.xlu0 %v414, 96
    %v427 = vpop.permute.xlu0 %426
    %428 = vrot.lane.b32.xlu0 %v415, 96
    %v429 = vpop.permute.xlu0 %428
    %430 = vrot.lane.b32.xlu0 %v416, 96
    %v431 = vpop.permute.xlu0 %430
    %432 = vrot.lane.b32.xlu0 %v417, 96
    %v433 = vpop.permute.xlu0 %432
    %434 = vrot.lane.b32.xlu0 %v418, 96
    %v435 = vpop.permute.xlu0 %434
    %436 = vrot.lane.b32.xlu0 %v419, 96
    %v437 = vpop.permute.xlu0 %436
    %vm438 = vcmask 785408
    %v439 = vsel %vm438, %v427, %v429
    %v440 = vsel %vm438, %v429, %v431
    %v441 = vsel %vm438, %v433, %v435
    %v442 = vsel %vm438, %v435, %v437
    %v449 = vadd.f32 %v406, %v439
    %v450 = vadd.f32 %v407, %v440
    %v451 = vadd.f32 %v408, %v431
    %v452 = vadd.f32 %v409, %v441
    %v453 = vadd.f32 %v410, %v442
    %v454 = vadd.f32 %v411, %v437
    %s455 = sld [smem:[#allocation2 + $0x380]]
    %v456 = vstv %s455
    %v457 = vmul.f32 %v456, %v64
    %v458 = vmul.f32 %v456, %v65
    %v459 = vmul.f32 %v456, %v66
    %v460 = vmul.f32 %v456, %v67
    %v461 = vmul.f32 %v456, %v68
    %v462 = vmul.f32 %v456, %v69
    %469 = vrot.lane.b32.xlu0 %v457, 95
    %v470 = vpop.permute.xlu0 %469
    %471 = vrot.lane.b32.xlu0 %v458, 95
    %v472 = vpop.permute.xlu0 %471
    %473 = vrot.lane.b32.xlu0 %v459, 95
    %v474 = vpop.permute.xlu0 %473
    %475 = vrot.lane.b32.xlu0 %v460, 95
    %v476 = vpop.permute.xlu0 %475
    %477 = vrot.lane.b32.xlu0 %v461, 95
    %v478 = vpop.permute.xlu0 %477
    %479 = vrot.lane.b32.xlu0 %v462, 95
    %v480 = vpop.permute.xlu0 %479
    %vm481 = vcmask 777216
    %v482 = vsel %vm481, %v470, %v472
    %v483 = vsel %vm481, %v472, %v474
    %v484 = vsel %vm481, %v476, %v478
    %v485 = vsel %vm481, %v478, %v480
    %v492 = vadd.f32 %v449, %v482
    %v493 = vadd.f32 %v450, %v483
    %v494 = vadd.f32 %v451, %v474
    %v495 = vadd.f32 %v452, %v484
    %v496 = vadd.f32 %v453, %v485
    %v497 = vadd.f32 %v454, %v480
    %s498 = sld [smem:[#allocation2 + $0x400]]
    %v499 = vstv %s498
    %v500 = vmul.f32 %v499, %v175
    %v501 = vmul.f32 %v499, %v176
    %v502 = vmul.f32 %v499, %v177
    %v503 = vmul.f32 %v499, %v178
    %v504 = vmul.f32 %v499, %v179
    %v505 = vmul.f32 %v499, %v180
    %512 = vrot.lane.b32.xlu0 %v500, 94
    %v513 = vpop.permute.xlu0 %512
    %514 = vrot.lane.b32.xlu0 %v501, 94
    %v515 = vpop.permute.xlu0 %514
    %516 = vrot.lane.b32.xlu0 %v502, 94
    %v517 = vpop.permute.xlu0 %516
    %518 = vrot.lane.b32.xlu0 %v503, 94
    %v519 = vpop.permute.xlu0 %518
    %520 = vrot.lane.b32.xlu0 %v504, 94
    %v521 = vpop.permute.xlu0 %520
    %522 = vrot.lane.b32.xlu0 %v505, 94
    %v523 = vpop.permute.xlu0 %522
    %vm524 = vcmask 769024
    %v525 = vsel %vm524, %v513, %v515
    %v526 = vsel %vm524, %v515, %v517
    %v527 = vsel %vm524, %v519, %v521
    %v528 = vsel %vm524, %v521, %v523
    %v535 = vadd.f32 %v492, %v525
    %v536 = vadd.f32 %v493, %v526
    %v537 = vadd.f32 %v494, %v517
    %v538 = vadd.f32 %v495, %v527
    %v539 = vadd.f32 %v496, %v528
    %v540 = vadd.f32 %v497, %v523
    %v541 = vmax.f32 %v535, 0.0
    %v542 = vmax.f32 %v536, 0.0
    %v543 = vmax.f32 %v537, 0.0
    %v544 = vmax.f32 %v538, 0.0
    %v545 = vmax.f32 %v539, 0.0
    %v546 = vmax.f32 %v540, 0.0
    %553 = vrot.lane.b32.xlu0 %v541, 81
    %v554 = vpop.permute.xlu0 %553
    %555 = vrot.lane.b32.xlu0 %v542, 81
    %v556 = vpop.permute.xlu0 %555
    %557 = vrot.lane.b32.xlu0 %v543, 81
    %v558 = vpop.permute.xlu0 %557
    %559 = vrot.lane.b32.xlu0 %v544, 81
    %v560 = vpop.permute.xlu0 %559
    %561 = vrot.lane.b32.xlu0 %v545, 81
    %v562 = vpop.permute.xlu0 %561
    %563 = vrot.lane.b32.xlu0 %v546, 81
    %v564 = vpop.permute.xlu0 %563
    %v565 = vsel %vm170, %v554, %v556
    %v566 = vsel %vm170, %v556, %v558
    %v567 = vsel %vm170, %v560, %v562
    %v568 = vsel %vm170, %v562, %v564
    %v573 = vadd.f32 %v565, %v566
    %574 = vadd.xlane.f32.xlu0 %v573
    %v575 = vpop.xlane.xlu0 %574
    %v576 = vadd.f32 %v567, %v568
    %577 = vadd.xlane.f32.xlu0 %v576
    %v578 = vpop.xlane.xlu0 %577
    %v579 = vrcp.pop 256.0
    %v580 = vmul.f32 %v575, %v579
    %v581 = vmul.f32 %v578, %v579
    %s582 = sld [smem:[#allocation2 + $0x481]]
    %s583 = sld [smem:[#allocation2 + $0x1]]
    %v584 = vstv %s583
    %v585 = vmul.f32 %v584, %v91
    %v586 = vmul.f32 %v584, %v92
    %v587 = vmul.f32 %v584, %v93
    %v588 = vmul.f32 %v584, %v94
    %v589 = vmul.f32 %v584, %v95
    %v590 = vmul.f32 %v584, %v96
    %v591 = vstv %s582
    %v592 = vadd.f32 %v591, %v585
    %v593 = vadd.f32 %v591, %v586
    %v594 = vadd.f32 %v591, %v587
    %v595 = vadd.f32 %v591, %v588
    %v596 = vadd.f32 %v591, %v589
    %v597 = vadd.f32 %v591, %v590
    %s598 = sld [smem:[#allocation2 + $0x81]]
    %v599 = vstv %s598
    %v600 = vmul.f32 %v599, %v64
    %v601 = vmul.f32 %v599, %v65
    %v602 = vmul.f32 %v599, %v66
    %v603 = vmul.f32 %v599, %v67
    %v604 = vmul.f32 %v599, %v68
    %v605 = vmul.f32 %v599, %v69
    %612 = vrot.lane.b32.xlu0 %v600, 127
    %v613 = vpop.permute.xlu0 %612
    %614 = vrot.lane.b32.xlu0 %v601, 127
    %v615 = vpop.permute.xlu0 %614
    %616 = vrot.lane.b32.xlu0 %v602, 127
    %v617 = vpop.permute.xlu0 %616
    %618 = vrot.lane.b32.xlu0 %v603, 127
    %v619 = vpop.permute.xlu0 %618
    %620 = vrot.lane.b32.xlu0 %v604, 127
    %v621 = vpop.permute.xlu0 %620
    %622 = vrot.lane.b32.xlu0 %v605, 127
    %v623 = vpop.permute.xlu0 %622
    %v624 = vsel %vm223, %v613, %v615
    %v625 = vsel %vm223, %v615, %v617
    %v626 = vsel %vm223, %v619, %v621
    %v627 = vsel %vm223, %v621, %v623
    %v634 = vadd.f32 %v592, %v624
    %v635 = vadd.f32 %v593, %v625
    %v636 = vadd.f32 %v594, %v617
    %v637 = vadd.f32 %v595, %v626
    %v638 = vadd.f32 %v596, %v627
    %v639 = vadd.f32 %v597, %v623
    %s640 = sld [smem:[#allocation2 + $0x101]]
    %v641 = vstv %s640
    %v642 = vmul.f32 %v641, %v115
    %v643 = vmul.f32 %v641, %v116
    %v644 = vmul.f32 %v641, %v117
    %v645 = vmul.f32 %v641, %v118
    %v646 = vmul.f32 %v641, %v119
    %v647 = vmul.f32 %v641, %v120
    %654 = vrot.lane.b32.xlu0 %v642, 126
    %v655 = vpop.permute.xlu0 %654
    %656 = vrot.lane.b32.xlu0 %v643, 126
    %v657 = vpop.permute.xlu0 %656
    %658 = vrot.lane.b32.xlu0 %v644, 126
    %v659 = vpop.permute.xlu0 %658
    %660 = vrot.lane.b32.xlu0 %v645, 126
    %v661 = vpop.permute.xlu0 %660
    %662 = vrot.lane.b32.xlu0 %v646, 126
    %v663 = vpop.permute.xlu0 %662
    %664 = vrot.lane.b32.xlu0 %v647, 126
    %v665 = vpop.permute.xlu0 %664
    %v666 = vsel %vm266, %v655, %v657
    %v667 = vsel %vm266, %v657, %v659
    %v668 = vsel %vm266, %v661, %v663
    %v669 = vsel %vm266, %v663, %v665
    %v676 = vadd.f32 %v634, %v666
    %v677 = vadd.f32 %v635, %v667
    %v678 = vadd.f32 %v636, %v659
    %v679 = vadd.f32 %v637, %v668
    %v680 = vadd.f32 %v638, %v669
    %v681 = vadd.f32 %v639, %v665
    %s682 = sld [smem:[#allocation2 + $0x181]]
    %v683 = vstv %s682
    %v684 = vmul.f32 %v683, %v130
    %v685 = vmul.f32 %v683, %v131
    %v686 = vmul.f32 %v683, %v132
    %v687 = vmul.f32 %v683, %v133
    %v688 = vmul.f32 %v683, %v134
    %v689 = vmul.f32 %v683, %v135
    %696 = vrot.lane.b32.xlu0 %v684, 112
    %v697 = vpop.permute.xlu0 %696
    %698 = vrot.lane.b32.xlu0 %v685, 112
    %v699 = vpop.permute.xlu0 %698
    %700 = vrot.lane.b32.xlu0 %v686, 112
    %v701 = vpop.permute.xlu0 %700
    %702 = vrot.lane.b32.xlu0 %v687, 112
    %v703 = vpop.permute.xlu0 %702
    %704 = vrot.lane.b32.xlu0 %v688, 112
    %v705 = vpop.permute.xlu0 %704
    %706 = vrot.lane.b32.xlu0 %v689, 112
    %v707 = vpop.permute.xlu0 %706
    %v708 = vsel %vm309, %v697, %v699
    %v709 = vsel %vm309, %v699, %v701
    %v710 = vsel %vm309, %v703, %v705
    %v711 = vsel %vm309, %v705, %v707
    %v718 = vadd.f32 %v676, %v708
    %v719 = vadd.f32 %v677, %v709
    %v720 = vadd.f32 %v678, %v701
    %v721 = vadd.f32 %v679, %v710
    %v722 = vadd.f32 %v680, %v711
    %v723 = vadd.f32 %v681, %v707
    %s724 = sld [smem:[#allocation2 + $0x201]]
    %v725 = vstv %s724
    %v726 = vmul.f32 %v725, %v64
    %v727 = vmul.f32 %v725, %v65
    %v728 = vmul.f32 %v725, %v66
    %v729 = vmul.f32 %v725, %v67
    %v730 = vmul.f32 %v725, %v68
    %v731 = vmul.f32 %v725, %v69
    %738 = vrot.lane.b32.xlu0 %v726, 111
    %v739 = vpop.permute.xlu0 %738
    %740 = vrot.lane.b32.xlu0 %v727, 111
    %v741 = vpop.permute.xlu0 %740
    %742 = vrot.lane.b32.xlu0 %v728, 111
    %v743 = vpop.permute.xlu0 %742
    %744 = vrot.lane.b32.xlu0 %v729, 111
    %v745 = vpop.permute.xlu0 %744
    %746 = vrot.lane.b32.xlu0 %v730, 111
    %v747 = vpop.permute.xlu0 %746
    %748 = vrot.lane.b32.xlu0 %v731, 111
    %v749 = vpop.permute.xlu0 %748
    %v750 = vsel %vm352, %v739, %v741
    %v751 = vsel %vm352, %v741, %v743
    %v752 = vsel %vm352, %v745, %v747
    %v753 = vsel %vm352, %v747, %v749
    %v760 = vadd.f32 %v718, %v750
    %v761 = vadd.f32 %v719, %v751
    %v762 = vadd.f32 %v720, %v743
    %v763 = vadd.f32 %v721, %v752
    %v764 = vadd.f32 %v722, %v753
    %v765 = vadd.f32 %v723, %v749
    %s766 = sld [smem:[#allocation2 + $0x281]]
    %v767 = vstv %s766
    %v768 = vmul.f32 %v767, %v145
    %v769 = vmul.f32 %v767, %v146
    %v770 = vmul.f32 %v767, %v147
    %v771 = vmul.f32 %v767, %v148
    %v772 = vmul.f32 %v767, %v149
    %v773 = vmul.f32 %v767, %v150
    %780 = vrot.lane.b32.xlu0 %v768, 110
    %v781 = vpop.permute.xlu0 %780
    %782 = vrot.lane.b32.xlu0 %v769, 110
    %v783 = vpop.permute.xlu0 %782
    %784 = vrot.lane.b32.xlu0 %v770, 110
    %v785 = vpop.permute.xlu0 %784
    %786 = vrot.lane.b32.xlu0 %v771, 110
    %v787 = vpop.permute.xlu0 %786
    %788 = vrot.lane.b32.xlu0 %v772, 110
    %v789 = vpop.permute.xlu0 %788
    %790 = vrot.lane.b32.xlu0 %v773, 110
    %v791 = vpop.permute.xlu0 %790
    %v792 = vsel %vm395, %v781, %v783
    %v793 = vsel %vm395, %v783, %v785
    %v794 = vsel %vm395, %v787, %v789
    %v795 = vsel %vm395, %v789, %v791
    %v802 = vadd.f32 %v760, %v792
    %v803 = vadd.f32 %v761, %v793
    %v804 = vadd.f32 %v762, %v785
    %v805 = vadd.f32 %v763, %v794
    %v806 = vadd.f32 %v764, %v795
    %v807 = vadd.f32 %v765, %v791
    %s808 = sld [smem:[#allocation2 + $0x301]]
    %v809 = vstv %s808
    %v810 = vmul.f32 %v809, %v160
    %v811 = vmul.f32 %v809, %v161
    %v812 = vmul.f32 %v809, %v162
    %v813 = vmul.f32 %v809, %v163
    %v814 = vmul.f32 %v809, %v164
    %v815 = vmul.f32 %v809, %v165
    %822 = vrot.lane.b32.xlu0 %v810, 96
    %v823 = vpop.permute.xlu0 %822
    %824 = vrot.lane.b32.xlu0 %v811, 96
    %v825 = vpop.permute.xlu0 %824
    %826 = vrot.lane.b32.xlu0 %v812, 96
    %v827 = vpop.permute.xlu0 %826
    %828 = vrot.lane.b32.xlu0 %v813, 96
    %v829 = vpop.permute.xlu0 %828
    %830 = vrot.lane.b32.xlu0 %v814, 96
    %v831 = vpop.permute.xlu0 %830
    %832 = vrot.lane.b32.xlu0 %v815, 96
    %v833 = vpop.permute.xlu0 %832
    %v834 = vsel %vm438, %v823, %v825
    %v835 = vsel %vm438, %v825, %v827
    %v836 = vsel %vm438, %v829, %v831
    %v837 = vsel %vm438, %v831, %v833
    %v844 = vadd.f32 %v802, %v834
    %v845 = vadd.f32 %v803, %v835
    %v846 = vadd.f32 %v804, %v827
    %v847 = vadd.f32 %v805, %v836
    %v848 = vadd.f32 %v806, %v837
    %v849 = vadd.f32 %v807, %v833
    %s850 = sld [smem:[#allocation2 + $0x381]]
    %v851 = vstv %s850
    %v852 = vmul.f32 %v851, %v64
    %v853 = vmul.f32 %v851, %v65
    %v854 = vmul.f32 %v851, %v66
    %v855 = vmul.f32 %v851, %v67
    %v856 = vmul.f32 %v851, %v68
    %v857 = vmul.f32 %v851, %v69
    %864 = vrot.lane.b32.xlu0 %v852, 95
    %v865 = vpop.permute.xlu0 %864
    %866 = vrot.lane.b32.xlu0 %v853, 95
    %v867 = vpop.permute.xlu0 %866
    %868 = vrot.lane.b32.xlu0 %v854, 95
    %v869 = vpop.permute.xlu0 %868
    %870 = vrot.lane.b32.xlu0 %v855, 95
    %v871 = vpop.permute.xlu0 %870
    %872 = vrot.lane.b32.xlu0 %v856, 95
    %v873 = vpop.permute.xlu0 %872
    %874 = vrot.lane.b32.xlu0 %v857, 95
    %v875 = vpop.permute.xlu0 %874
    %v876 = vsel %vm481, %v865, %v867
    %v877 = vsel %vm481, %v867, %v869
    %v878 = vsel %vm481, %v871, %v873
    %v879 = vsel %vm481, %v873, %v875
    %v886 = vadd.f32 %v844, %v876
    %v887 = vadd.f32 %v845, %v877
    %v888 = vadd.f32 %v846, %v869
    %v889 = vadd.f32 %v847, %v878
    %v890 = vadd.f32 %v848, %v879
    %v891 = vadd.f32 %v849, %v875
    %s892 = sld [smem:[#allocation2 + $0x401]]
    %v893 = vstv %s892
    %v894 = vmul.f32 %v893, %v175
    %v895 = vmul.f32 %v893, %v176
    %v896 = vmul.f32 %v893, %v177
    %v897 = vmul.f32 %v893, %v178
    %v898 = vmul.f32 %v893, %v179
    %v899 = vmul.f32 %v893, %v180
    %906 = vrot.lane.b32.xlu0 %v894, 94
    %v907 = vpop.permute.xlu0 %906
    %908 = vrot.lane.b32.xlu0 %v895, 94
    %v909 = vpop.permute.xlu0 %908
    %910 = vrot.lane.b32.xlu0 %v896, 94
    %v911 = vpop.permute.xlu0 %910
    %912 = vrot.lane.b32.xlu0 %v897, 94
    %v913 = vpop.permute.xlu0 %912
    %914 = vrot.lane.b32.xlu0 %v898, 94
    %v915 = vpop.permute.xlu0 %914
    %916 = vrot.lane.b32.xlu0 %v899, 94
    %v917 = vpop.permute.xlu0 %916
    %v918 = vsel %vm524, %v907, %v909
    %v919 = vsel %vm524, %v909, %v911
    %v920 = vsel %vm524, %v913, %v915
    %v921 = vsel %vm524, %v915, %v917
    %v928 = vadd.f32 %v886, %v918
    %v929 = vadd.f32 %v887, %v919
    %v930 = vadd.f32 %v888, %v911
    %v931 = vadd.f32 %v889, %v920
    %v932 = vadd.f32 %v890, %v921
    %v933 = vadd.f32 %v891, %v917
    %v934 = vmax.f32 %v928, 0.0
    %v935 = vmax.f32 %v929, 0.0
    %v936 = vmax.f32 %v930, 0.0
    %v937 = vmax.f32 %v931, 0.0
    %v938 = vmax.f32 %v932, 0.0
    %v939 = vmax.f32 %v933, 0.0
    %946 = vrot.lane.b32.xlu0 %v934, 81
    %v947 = vpop.permute.xlu0 %946
    %948 = vrot.lane.b32.xlu0 %v935, 81
    %v949 = vpop.permute.xlu0 %948
    %950 = vrot.lane.b32.xlu0 %v936, 81
    %v951 = vpop.permute.xlu0 %950
    %952 = vrot.lane.b32.xlu0 %v937, 81
    %v953 = vpop.permute.xlu0 %952
    %954 = vrot.lane.b32.xlu0 %v938, 81
    %v955 = vpop.permute.xlu0 %954
    %956 = vrot.lane.b32.xlu0 %v939, 81
    %v957 = vpop.permute.xlu0 %956
    %v958 = vsel %vm170, %v947, %v949
    %v959 = vsel %vm170, %v949, %v951
    %v960 = vsel %vm170, %v953, %v955
    %v961 = vsel %vm170, %v955, %v957
    %v966 = vadd.f32 %v958, %v959
    %967 = vadd.xlane.f32.xlu0 %v966
    %v968 = vpop.xlane.xlu0 %967
    %v969 = vadd.f32 %v960, %v961
    %970 = vadd.xlane.f32.xlu0 %v969
    %v971 = vpop.xlane.xlu0 %970
    %v972 = vmul.f32 %v968, %v579
    %v973 = vmul.f32 %v971, %v579
    %s974 = sld [smem:[#allocation2 + $0x482]]
    %s975 = sld [smem:[#allocation2 + $0x2]]
    %v976 = vstv %s975
    %v977 = vmul.f32 %v976, %v91
    %v978 = vmul.f32 %v976, %v92
    %v979 = vmul.f32 %v976, %v93
    %v980 = vmul.f32 %v976, %v94
    %v981 = vmul.f32 %v976, %v95
    %v982 = vmul.f32 %v976, %v96
    %v983 = vstv %s974
    %v984 = vadd.f32 %v983, %v977
    %v985 = vadd.f32 %v983, %v978
    %v986 = vadd.f32 %v983, %v979
    %v987 = vadd.f32 %v983, %v980
    %v988 = vadd.f32 %v983, %v981
    %v989 = vadd.f32 %v983, %v982
    %s990 = sld [smem:[#allocation2 + $0x82]]
    %v991 = vstv %s990
    %v992 = vmul.f32 %v991, %v64
    %v993 = vmul.f32 %v991, %v65
    %v994 = vmul.f32 %v991, %v66
    %v995 = vmul.f32 %v991, %v67
    %v996 = vmul.f32 %v991, %v68
    %v997 = vmul.f32 %v991, %v69
    %1004 = vrot.lane.b32.xlu0 %v992, 127
    %v1005 = vpop.permute.xlu0 %1004
    %1006 = vrot.lane.b32.xlu0 %v993, 127
    %v1007 = vpop.permute.xlu0 %1006
    %1008 = vrot.lane.b32.xlu0 %v994, 127
    %v1009 = vpop.permute.xlu0 %1008
    %1010 = vrot.lane.b32.xlu0 %v995, 127
    %v1011 = vpop.permute.xlu0 %1010
    %1012 = vrot.lane.b32.xlu0 %v996, 127
    %v1013 = vpop.permute.xlu0 %1012
    %1014 = vrot.lane.b32.xlu0 %v997, 127
    %v1015 = vpop.permute.xlu0 %1014
    %v1016 = vsel %vm223, %v1005, %v1007
    %v1017 = vsel %vm223, %v1007, %v1009
    %v1018 = vsel %vm223, %v1011, %v1013
    %v1019 = vsel %vm223, %v1013, %v1015
    %v1026 = vadd.f32 %v984, %v1016
    %v1027 = vadd.f32 %v985, %v1017
    %v1028 = vadd.f32 %v986, %v1009
    %v1029 = vadd.f32 %v987, %v1018
    %v1030 = vadd.f32 %v988, %v1019
    %v1031 = vadd.f32 %v989, %v1015
    %s1032 = sld [smem:[#allocation2 + $0x102]]
    %v1033 = vstv %s1032
    %v1034 = vmul.f32 %v1033, %v115
    %v1035 = vmul.f32 %v1033, %v116
    %v1036 = vmul.f32 %v1033, %v117
    %v1037 = vmul.f32 %v1033, %v118
    %v1038 = vmul.f32 %v1033, %v119
    %v1039 = vmul.f32 %v1033, %v120
    %1046 = vrot.lane.b32.xlu0 %v1034, 126
    %v1047 = vpop.permute.xlu0 %1046
    %1048 = vrot.lane.b32.xlu0 %v1035, 126
    %v1049 = vpop.permute.xlu0 %1048
    %1050 = vrot.lane.b32.xlu0 %v1036, 126
    %v1051 = vpop.permute.xlu0 %1050
    %1052 = vrot.lane.b32.xlu0 %v1037, 126
    %v1053 = vpop.permute.xlu0 %1052
    %1054 = vrot.lane.b32.xlu0 %v1038, 126
    %v1055 = vpop.permute.xlu0 %1054
    %1056 = vrot.lane.b32.xlu0 %v1039, 126
    %v1057 = vpop.permute.xlu0 %1056
    %v1058 = vsel %vm266, %v1047, %v1049
    %v1059 = vsel %vm266, %v1049, %v1051
    %v1060 = vsel %vm266, %v1053, %v1055
    %v1061 = vsel %vm266, %v1055, %v1057
    %v1068 = vadd.f32 %v1026, %v1058
    %v1069 = vadd.f32 %v1027, %v1059
    %v1070 = vadd.f32 %v1028, %v1051
    %v1071 = vadd.f32 %v1029, %v1060
    %v1072 = vadd.f32 %v1030, %v1061
    %v1073 = vadd.f32 %v1031, %v1057
    %s1074 = sld [smem:[#allocation2 + $0x182]]
    %v1075 = vstv %s1074
    %v1076 = vmul.f32 %v1075, %v130
    %v1077 = vmul.f32 %v1075, %v131
    %v1078 = vmul.f32 %v1075, %v132
    %v1079 = vmul.f32 %v1075, %v133
    %v1080 = vmul.f32 %v1075, %v134
    %v1081 = vmul.f32 %v1075, %v135
    %1088 = vrot.lane.b32.xlu0 %v1076, 112
    %v1089 = vpop.permute.xlu0 %1088
    %1090 = vrot.lane.b32.xlu0 %v1077, 112
    %v1091 = vpop.permute.xlu0 %1090
    %1092 = vrot.lane.b32.xlu0 %v1078, 112
    %v1093 = vpop.permute.xlu0 %1092
    %1094 = vrot.lane.b32.xlu0 %v1079, 112
    %v1095 = vpop.permute.xlu0 %1094
    %1096 = vrot.lane.b32.xlu0 %v1080, 112
    %v1097 = vpop.permute.xlu0 %1096
    %1098 = vrot.lane.b32.xlu0 %v1081, 112
    %v1099 = vpop.permute.xlu0 %1098
    %v1100 = vsel %vm309, %v1089, %v1091
    %v1101 = vsel %vm309, %v1091, %v1093
    %v1102 = vsel %vm309, %v1095, %v1097
    %v1103 = vsel %vm309, %v1097, %v1099
    %v1110 = vadd.f32 %v1068, %v1100
    %v1111 = vadd.f32 %v1069, %v1101
    %v1112 = vadd.f32 %v1070, %v1093
    %v1113 = vadd.f32 %v1071, %v1102
    %v1114 = vadd.f32 %v1072, %v1103
    %v1115 = vadd.f32 %v1073, %v1099
    %s1116 = sld [smem:[#allocation2 + $0x202]]
    %v1117 = vstv %s1116
    %v1118 = vmul.f32 %v1117, %v64
    %v1119 = vmul.f32 %v1117, %v65
    %v1120 = vmul.f32 %v1117, %v66
    %v1121 = vmul.f32 %v1117, %v67
    %v1122 = vmul.f32 %v1117, %v68
    %v1123 = vmul.f32 %v1117, %v69
    %1130 = vrot.lane.b32.xlu0 %v1118, 111
    %v1131 = vpop.permute.xlu0 %1130
    %1132 = vrot.lane.b32.xlu0 %v1119, 111
    %v1133 = vpop.permute.xlu0 %1132
    %1134 = vrot.lane.b32.xlu0 %v1120, 111
    %v1135 = vpop.permute.xlu0 %1134
    %1136 = vrot.lane.b32.xlu0 %v1121, 111
    %v1137 = vpop.permute.xlu0 %1136
    %1138 = vrot.lane.b32.xlu0 %v1122, 111
    %v1139 = vpop.permute.xlu0 %1138
    %1140 = vrot.lane.b32.xlu0 %v1123, 111
    %v1141 = vpop.permute.xlu0 %1140
    %v1142 = vsel %vm352, %v1131, %v1133
    %v1143 = vsel %vm352, %v1133, %v1135
    %v1144 = vsel %vm352, %v1137, %v1139
    %v1145 = vsel %vm352, %v1139, %v1141
    %v1152 = vadd.f32 %v1110, %v1142
    %v1153 = vadd.f32 %v1111, %v1143
    %v1154 = vadd.f32 %v1112, %v1135
    %v1155 = vadd.f32 %v1113, %v1144
    %v1156 = vadd.f32 %v1114, %v1145
    %v1157 = vadd.f32 %v1115, %v1141
    %s1158 = sld [smem:[#allocation2 + $0x282]]
    %v1159 = vstv %s1158
    %v1160 = vmul.f32 %v1159, %v145
    %v1161 = vmul.f32 %v1159, %v146
    %v1162 = vmul.f32 %v1159, %v147
    %v1163 = vmul.f32 %v1159, %v148
    %v1164 = vmul.f32 %v1159, %v149
    %v1165 = vmul.f32 %v1159, %v150
    %1172 = vrot.lane.b32.xlu0 %v1160, 110
    %v1173 = vpop.permute.xlu0 %1172
    %1174 = vrot.lane.b32.xlu0 %v1161, 110
    %v1175 = vpop.permute.xlu0 %1174
    %1176 = vrot.lane.b32.xlu0 %v1162, 110
    %v1177 = vpop.permute.xlu0 %1176
    %1178 = vrot.lane.b32.xlu0 %v1163, 110
    %v1179 = vpop.permute.xlu0 %1178
    %1180 = vrot.lane.b32.xlu0 %v1164, 110
    %v1181 = vpop.permute.xlu0 %1180
    %1182 = vrot.lane.b32.xlu0 %v1165, 110
    %v1183 = vpop.permute.xlu0 %1182
    %v1184 = vsel %vm395, %v1173, %v1175
    %v1185 = vsel %vm395, %v1175, %v1177
    %v1186 = vsel %vm395, %v1179, %v1181
    %v1187 = vsel %vm395, %v1181, %v1183
    %v1194 = vadd.f32 %v1152, %v1184
    %v1195 = vadd.f32 %v1153, %v1185
    %v1196 = vadd.f32 %v1154, %v1177
    %v1197 = vadd.f32 %v1155, %v1186
    %v1198 = vadd.f32 %v1156, %v1187
    %v1199 = vadd.f32 %v1157, %v1183
    %s1200 = sld [smem:[#allocation2 + $0x302]]
    %v1201 = vstv %s1200
    %v1202 = vmul.f32 %v1201, %v160
    %v1203 = vmul.f32 %v1201, %v161
    %v1204 = vmul.f32 %v1201, %v162
    %v1205 = vmul.f32 %v1201, %v163
    %v1206 = vmul.f32 %v1201, %v164
    %v1207 = vmul.f32 %v1201, %v165
    %1214 = vrot.lane.b32.xlu0 %v1202, 96
    %v1215 = vpop.permute.xlu0 %1214
    %1216 = vrot.lane.b32.xlu0 %v1203, 96
    %v1217 = vpop.permute.xlu0 %1216
    %1218 = vrot.lane.b32.xlu0 %v1204, 96
    %v1219 = vpop.permute.xlu0 %1218
    %1220 = vrot.lane.b32.xlu0 %v1205, 96
    %v1221 = vpop.permute.xlu0 %1220
    %1222 = vrot.lane.b32.xlu0 %v1206, 96
    %v1223 = vpop.permute.xlu0 %1222
    %1224 = vrot.lane.b32.xlu0 %v1207, 96
    %v1225 = vpop.permute.xlu0 %1224
    %v1226 = vsel %vm438, %v1215, %v1217
    %v1227 = vsel %vm438, %v1217, %v1219
    %v1228 = vsel %vm438, %v1221, %v1223
    %v1229 = vsel %vm438, %v1223, %v1225
    %v1236 = vadd.f32 %v1194, %v1226
    %v1237 = vadd.f32 %v1195, %v1227
    %v1238 = vadd.f32 %v1196, %v1219
    %v1239 = vadd.f32 %v1197, %v1228
    %v1240 = vadd.f32 %v1198, %v1229
    %v1241 = vadd.f32 %v1199, %v1225
    %s1242 = sld [smem:[#allocation2 + $0x382]]
    %v1243 = vstv %s1242
    %v1244 = vmul.f32 %v1243, %v64
    %v1245 = vmul.f32 %v1243, %v65
    %v1246 = vmul.f32 %v1243, %v66
    %v1247 = vmul.f32 %v1243, %v67
    %v1248 = vmul.f32 %v1243, %v68
    %v1249 = vmul.f32 %v1243, %v69
    %1256 = vrot.lane.b32.xlu0 %v1244, 95
    %v1257 = vpop.permute.xlu0 %1256
    %1258 = vrot.lane.b32.xlu0 %v1245, 95
    %v1259 = vpop.permute.xlu0 %1258
    %1260 = vrot.lane.b32.xlu0 %v1246, 95
    %v1261 = vpop.permute.xlu0 %1260
    %1262 = vrot.lane.b32.xlu0 %v1247, 95
    %v1263 = vpop.permute.xlu0 %1262
    %1264 = vrot.lane.b32.xlu0 %v1248, 95
    %v1265 = vpop.permute.xlu0 %1264
    %1266 = vrot.lane.b32.xlu0 %v1249, 95
    %v1267 = vpop.permute.xlu0 %1266
    %v1268 = vsel %vm481, %v1257, %v1259
    %v1269 = vsel %vm481, %v1259, %v1261
    %v1270 = vsel %vm481, %v1263, %v1265
    %v1271 = vsel %vm481, %v1265, %v1267
    %v1278 = vadd.f32 %v1236, %v1268
    %v1279 = vadd.f32 %v1237, %v1269
    %v1280 = vadd.f32 %v1238, %v1261
    %v1281 = vadd.f32 %v1239, %v1270
    %v1282 = vadd.f32 %v1240, %v1271
    %v1283 = vadd.f32 %v1241, %v1267
    %s1284 = sld [smem:[#allocation2 + $0x402]]
    %v1285 = vstv %s1284
    %v1286 = vmul.f32 %v1285, %v175
    %v1287 = vmul.f32 %v1285, %v176
    %v1288 = vmul.f32 %v1285, %v177
    %v1289 = vmul.f32 %v1285, %v178
    %v1290 = vmul.f32 %v1285, %v179
    %v1291 = vmul.f32 %v1285, %v180
    %1298 = vrot.lane.b32.xlu0 %v1286, 94
    %v1299 = vpop.permute.xlu0 %1298
    %1300 = vrot.lane.b32.xlu0 %v1287, 94
    %v1301 = vpop.permute.xlu0 %1300
    %1302 = vrot.lane.b32.xlu0 %v1288, 94
    %v1303 = vpop.permute.xlu0 %1302
    %1304 = vrot.lane.b32.xlu0 %v1289, 94
    %v1305 = vpop.permute.xlu0 %1304
    %1306 = vrot.lane.b32.xlu0 %v1290, 94
    %v1307 = vpop.permute.xlu0 %1306
    %1308 = vrot.lane.b32.xlu0 %v1291, 94
    %v1309 = vpop.permute.xlu0 %1308
    %v1310 = vsel %vm524, %v1299, %v1301
    %v1311 = vsel %vm524, %v1301, %v1303
    %v1312 = vsel %vm524, %v1305, %v1307
    %v1313 = vsel %vm524, %v1307, %v1309
    %v1320 = vadd.f32 %v1278, %v1310
    %v1321 = vadd.f32 %v1279, %v1311
    %v1322 = vadd.f32 %v1280, %v1303
    %v1323 = vadd.f32 %v1281, %v1312
    %v1324 = vadd.f32 %v1282, %v1313
    %v1325 = vadd.f32 %v1283, %v1309
    %v1326 = vmax.f32 %v1320, 0.0
    %v1327 = vmax.f32 %v1321, 0.0
    %v1328 = vmax.f32 %v1322, 0.0
    %v1329 = vmax.f32 %v1323, 0.0
    %v1330 = vmax.f32 %v1324, 0.0
    %v1331 = vmax.f32 %v1325, 0.0
    %1338 = vrot.lane.b32.xlu0 %v1326, 81
    %v1339 = vpop.permute.xlu0 %1338
    %1340 = vrot.lane.b32.xlu0 %v1327, 81
    %v1341 = vpop.permute.xlu0 %1340
    %1342 = vrot.lane.b32.xlu0 %v1328, 81
    %v1343 = vpop.permute.xlu0 %1342
    %1344 = vrot.lane.b32.xlu0 %v1329, 81
    %v1345 = vpop.permute.xlu0 %1344
    %1346 = vrot.lane.b32.xlu0 %v1330, 81
    %v1347 = vpop.permute.xlu0 %1346
    %1348 = vrot.lane.b32.xlu0 %v1331, 81
    %v1349 = vpop.permute.xlu0 %1348
    %v1350 = vsel %vm170, %v1339, %v1341
    %v1351 = vsel %vm170, %v1341, %v1343
    %v1352 = vsel %vm170, %v1345, %v1347
    %v1353 = vsel %vm170, %v1347, %v1349
    %v1358 = vadd.f32 %v1350, %v1351
    %1359 = vadd.xlane.f32.xlu0 %v1358
    %v1360 = vpop.xlane.xlu0 %1359
    %v1361 = vadd.f32 %v1352, %v1353
    %1362 = vadd.xlane.f32.xlu0 %v1361
    %v1363 = vpop.xlane.xlu0 %1362
    %v1364 = vmul.f32 %v1360, %v579
    %v1365 = vmul.f32 %v1363, %v579
    %s1366 = sld [smem:[#allocation2 + $0x483]]
    %s1367 = sld [smem:[#allocation2 + $0x3]]
    %v1368 = vstv %s1367
    %v1369 = vmul.f32 %v1368, %v91
    %v1370 = vmul.f32 %v1368, %v92
    %v1371 = vmul.f32 %v1368, %v93
    %v1372 = vmul.f32 %v1368, %v94
    %v1373 = vmul.f32 %v1368, %v95
    %v1374 = vmul.f32 %v1368, %v96
    %v1375 = vstv %s1366
    %v1376 = vadd.f32 %v1375, %v1369
    %v1377 = vadd.f32 %v1375, %v1370
    %v1378 = vadd.f32 %v1375, %v1371
    %v1379 = vadd.f32 %v1375, %v1372
    %v1380 = vadd.f32 %v1375, %v1373
    %v1381 = vadd.f32 %v1375, %v1374
    %s1382 = sld [smem:[#allocation2 + $0x83]]
    %v1383 = vstv %s1382
    %v1384 = vmul.f32 %v1383, %v64
    %v1385 = vmul.f32 %v1383, %v65
    %v1386 = vmul.f32 %v1383, %v66
    %v1387 = vmul.f32 %v1383, %v67
    %v1388 = vmul.f32 %v1383, %v68
    %v1389 = vmul.f32 %v1383, %v69
    %1396 = vrot.lane.b32.xlu0 %v1384, 127
    %v1397 = vpop.permute.xlu0 %1396
    %1398 = vrot.lane.b32.xlu0 %v1385, 127
    %v1399 = vpop.permute.xlu0 %1398
    %1400 = vrot.lane.b32.xlu0 %v1386, 127
    %v1401 = vpop.permute.xlu0 %1400
    %1402 = vrot.lane.b32.xlu0 %v1387, 127
    %v1403 = vpop.permute.xlu0 %1402
    %1404 = vrot.lane.b32.xlu0 %v1388, 127
    %v1405 = vpop.permute.xlu0 %1404
    %1406 = vrot.lane.b32.xlu0 %v1389, 127
    %v1407 = vpop.permute.xlu0 %1406
    %v1408 = vsel %vm223, %v1397, %v1399
    %v1409 = vsel %vm223, %v1399, %v1401
    %v1410 = vsel %vm223, %v1403, %v1405
    %v1411 = vsel %vm223, %v1405, %v1407
    %v1418 = vadd.f32 %v1376, %v1408
    %v1419 = vadd.f32 %v1377, %v1409
    %v1420 = vadd.f32 %v1378, %v1401
    %v1421 = vadd.f32 %v1379, %v1410
    %v1422 = vadd.f32 %v1380, %v1411
    %v1423 = vadd.f32 %v1381, %v1407
    %s1424 = sld [smem:[#allocation2 + $0x103]]
    %v1425 = vstv %s1424
    %v1426 = vmul.f32 %v1425, %v115
    %v1427 = vmul.f32 %v1425, %v116
    %v1428 = vmul.f32 %v1425, %v117
    %v1429 = vmul.f32 %v1425, %v118
    %v1430 = vmul.f32 %v1425, %v119
    %v1431 = vmul.f32 %v1425, %v120
    %1438 = vrot.lane.b32.xlu0 %v1426, 126
    %v1439 = vpop.permute.xlu0 %1438
    %1440 = vrot.lane.b32.xlu0 %v1427, 126
    %v1441 = vpop.permute.xlu0 %1440
    %1442 = vrot.lane.b32.xlu0 %v1428, 126
    %v1443 = vpop.permute.xlu0 %1442
    %1444 = vrot.lane.b32.xlu0 %v1429, 126
    %v1445 = vpop.permute.xlu0 %1444
    %1446 = vrot.lane.b32.xlu0 %v1430, 126
    %v1447 = vpop.permute.xlu0 %1446
    %1448 = vrot.lane.b32.xlu0 %v1431, 126
    %v1449 = vpop.permute.xlu0 %1448
    %v1450 = vsel %vm266, %v1439, %v1441
    %v1451 = vsel %vm266, %v1441, %v1443
    %v1452 = vsel %vm266, %v1445, %v1447
    %v1453 = vsel %vm266, %v1447, %v1449
    %v1460 = vadd.f32 %v1418, %v1450
    %v1461 = vadd.f32 %v1419, %v1451
    %v1462 = vadd.f32 %v1420, %v1443
    %v1463 = vadd.f32 %v1421, %v1452
    %v1464 = vadd.f32 %v1422, %v1453
    %v1465 = vadd.f32 %v1423, %v1449
    %s1466 = sld [smem:[#allocation2 + $0x183]]
    %v1467 = vstv %s1466
    %v1468 = vmul.f32 %v1467, %v130
    %v1469 = vmul.f32 %v1467, %v131
    %v1470 = vmul.f32 %v1467, %v132
    %v1471 = vmul.f32 %v1467, %v133
    %v1472 = vmul.f32 %v1467, %v134
    %v1473 = vmul.f32 %v1467, %v135
    %1480 = vrot.lane.b32.xlu0 %v1468, 112
    %v1481 = vpop.permute.xlu0 %1480
    %1482 = vrot.lane.b32.xlu0 %v1469, 112
    %v1483 = vpop.permute.xlu0 %1482
    %1484 = vrot.lane.b32.xlu0 %v1470, 112
    %v1485 = vpop.permute.xlu0 %1484
    %1486 = vrot.lane.b32.xlu0 %v1471, 112
    %v1487 = vpop.permute.xlu0 %1486
    %1488 = vrot.lane.b32.xlu0 %v1472, 112
    %v1489 = vpop.permute.xlu0 %1488
    %1490 = vrot.lane.b32.xlu0 %v1473, 112
    %v1491 = vpop.permute.xlu0 %1490
    %v1492 = vsel %vm309, %v1481, %v1483
    %v1493 = vsel %vm309, %v1483, %v1485
    %v1494 = vsel %vm309, %v1487, %v1489
    %v1495 = vsel %vm309, %v1489, %v1491
    %v1502 = vadd.f32 %v1460, %v1492
    %v1503 = vadd.f32 %v1461, %v1493
    %v1504 = vadd.f32 %v1462, %v1485
    %v1505 = vadd.f32 %v1463, %v1494
    %v1506 = vadd.f32 %v1464, %v1495
    %v1507 = vadd.f32 %v1465, %v1491
    %s1508 = sld [smem:[#allocation2 + $0x203]]
    %v1509 = vstv %s1508
    %v1510 = vmul.f32 %v1509, %v64
    %v1511 = vmul.f32 %v1509, %v65
    %v1512 = vmul.f32 %v1509, %v66
    %v1513 = vmul.f32 %v1509, %v67
    %v1514 = vmul.f32 %v1509, %v68
    %v1515 = vmul.f32 %v1509, %v69
    %1522 = vrot.lane.b32.xlu0 %v1510, 111
    %v1523 = vpop.permute.xlu0 %1522
    %1524 = vrot.lane.b32.xlu0 %v1511, 111
    %v1525 = vpop.permute.xlu0 %1524
    %1526 = vrot.lane.b32.xlu0 %v1512, 111
    %v1527 = vpop.permute.xlu0 %1526
    %1528 = vrot.lane.b32.xlu0 %v1513, 111
    %v1529 = vpop.permute.xlu0 %1528
    %1530 = vrot.lane.b32.xlu0 %v1514, 111
    %v1531 = vpop.permute.xlu0 %1530
    %1532 = vrot.lane.b32.xlu0 %v1515, 111
    %v1533 = vpop.permute.xlu0 %1532
    %v1534 = vsel %vm352, %v1523, %v1525
    %v1535 = vsel %vm352, %v1525, %v1527
    %v1536 = vsel %vm352, %v1529, %v1531
    %v1537 = vsel %vm352, %v1531, %v1533
    %v1544 = vadd.f32 %v1502, %v1534
    %v1545 = vadd.f32 %v1503, %v1535
    %v1546 = vadd.f32 %v1504, %v1527
    %v1547 = vadd.f32 %v1505, %v1536
    %v1548 = vadd.f32 %v1506, %v1537
    %v1549 = vadd.f32 %v1507, %v1533
    %s1550 = sld [smem:[#allocation2 + $0x283]]
    %v1551 = vstv %s1550
    %v1552 = vmul.f32 %v1551, %v145
    %v1553 = vmul.f32 %v1551, %v146
    %v1554 = vmul.f32 %v1551, %v147
    %v1555 = vmul.f32 %v1551, %v148
    %v1556 = vmul.f32 %v1551, %v149
    %v1557 = vmul.f32 %v1551, %v150
    %1564 = vrot.lane.b32.xlu0 %v1552, 110
    %v1565 = vpop.permute.xlu0 %1564
    %1566 = vrot.lane.b32.xlu0 %v1553, 110
    %v1567 = vpop.permute.xlu0 %1566
    %1568 = vrot.lane.b32.xlu0 %v1554, 110
    %v1569 = vpop.permute.xlu0 %1568
    %1570 = vrot.lane.b32.xlu0 %v1555, 110
    %v1571 = vpop.permute.xlu0 %1570
    %1572 = vrot.lane.b32.xlu0 %v1556, 110
    %v1573 = vpop.permute.xlu0 %1572
    %1574 = vrot.lane.b32.xlu0 %v1557, 110
    %v1575 = vpop.permute.xlu0 %1574
    %v1576 = vsel %vm395, %v1565, %v1567
    %v1577 = vsel %vm395, %v1567, %v1569
    %v1578 = vsel %vm395, %v1571, %v1573
    %v1579 = vsel %vm395, %v1573, %v1575
    %v1586 = vadd.f32 %v1544, %v1576
    %v1587 = vadd.f32 %v1545, %v1577
    %v1588 = vadd.f32 %v1546, %v1569
    %v1589 = vadd.f32 %v1547, %v1578
    %v1590 = vadd.f32 %v1548, %v1579
    %v1591 = vadd.f32 %v1549, %v1575
    %s1592 = sld [smem:[#allocation2 + $0x303]]
    %v1593 = vstv %s1592
    %v1594 = vmul.f32 %v1593, %v160
    %v1595 = vmul.f32 %v1593, %v161
    %v1596 = vmul.f32 %v1593, %v162
    %v1597 = vmul.f32 %v1593, %v163
    %v1598 = vmul.f32 %v1593, %v164
    %v1599 = vmul.f32 %v1593, %v165
    %1606 = vrot.lane.b32.xlu0 %v1594, 96
    %v1607 = vpop.permute.xlu0 %1606
    %1608 = vrot.lane.b32.xlu0 %v1595, 96
    %v1609 = vpop.permute.xlu0 %1608
    %1610 = vrot.lane.b32.xlu0 %v1596, 96
    %v1611 = vpop.permute.xlu0 %1610
    %1612 = vrot.lane.b32.xlu0 %v1597, 96
    %v1613 = vpop.permute.xlu0 %1612
    %1614 = vrot.lane.b32.xlu0 %v1598, 96
    %v1615 = vpop.permute.xlu0 %1614
    %1616 = vrot.lane.b32.xlu0 %v1599, 96
    %v1617 = vpop.permute.xlu0 %1616
    %v1618 = vsel %vm438, %v1607, %v1609
    %v1619 = vsel %vm438, %v1609, %v1611
    %v1620 = vsel %vm438, %v1613, %v1615
    %v1621 = vsel %vm438, %v1615, %v1617
    %v1628 = vadd.f32 %v1586, %v1618
    %v1629 = vadd.f32 %v1587, %v1619
    %v1630 = vadd.f32 %v1588, %v1611
    %v1631 = vadd.f32 %v1589, %v1620
    %v1632 = vadd.f32 %v1590, %v1621
    %v1633 = vadd.f32 %v1591, %v1617
    %s1634 = sld [smem:[#allocation2 + $0x383]]
    %v1635 = vstv %s1634
    %v1636 = vmul.f32 %v1635, %v64
    %v1637 = vmul.f32 %v1635, %v65
    %v1638 = vmul.f32 %v1635, %v66
    %v1639 = vmul.f32 %v1635, %v67
    %v1640 = vmul.f32 %v1635, %v68
    %v1641 = vmul.f32 %v1635, %v69
    %1648 = vrot.lane.b32.xlu0 %v1636, 95
    %v1649 = vpop.permute.xlu0 %1648
    %1650 = vrot.lane.b32.xlu0 %v1637, 95
    %v1651 = vpop.permute.xlu0 %1650
    %1652 = vrot.lane.b32.xlu0 %v1638, 95
    %v1653 = vpop.permute.xlu0 %1652
    %1654 = vrot.lane.b32.xlu0 %v1639, 95
    %v1655 = vpop.permute.xlu0 %1654
    %1656 = vrot.lane.b32.xlu0 %v1640, 95
    %v1657 = vpop.permute.xlu0 %1656
    %1658 = vrot.lane.b32.xlu0 %v1641, 95
    %v1659 = vpop.permute.xlu0 %1658
    %v1660 = vsel %vm481, %v1649, %v1651
    %v1661 = vsel %vm481, %v1651, %v1653
    %v1662 = vsel %vm481, %v1655, %v1657
    %v1663 = vsel %vm481, %v1657, %v1659
    %v1670 = vadd.f32 %v1628, %v1660
    %v1671 = vadd.f32 %v1629, %v1661
    %v1672 = vadd.f32 %v1630, %v1653
    %v1673 = vadd.f32 %v1631, %v1662
    %v1674 = vadd.f32 %v1632, %v1663
    %v1675 = vadd.f32 %v1633, %v1659
    %s1676 = sld [smem:[#allocation2 + $0x403]]
    %v1677 = vstv %s1676
    %v1678 = vmul.f32 %v1677, %v175
    %v1679 = vmul.f32 %v1677, %v176
    %v1680 = vmul.f32 %v1677, %v177
    %v1681 = vmul.f32 %v1677, %v178
    %v1682 = vmul.f32 %v1677, %v179
    %v1683 = vmul.f32 %v1677, %v180
    %1690 = vrot.lane.b32.xlu0 %v1678, 94
    %v1691 = vpop.permute.xlu0 %1690
    %1692 = vrot.lane.b32.xlu0 %v1679, 94
    %v1693 = vpop.permute.xlu0 %1692
    %1694 = vrot.lane.b32.xlu0 %v1680, 94
    %v1695 = vpop.permute.xlu0 %1694
    %1696 = vrot.lane.b32.xlu0 %v1681, 94
    %v1697 = vpop.permute.xlu0 %1696
    %1698 = vrot.lane.b32.xlu0 %v1682, 94
    %v1699 = vpop.permute.xlu0 %1698
    %1700 = vrot.lane.b32.xlu0 %v1683, 94
    %v1701 = vpop.permute.xlu0 %1700
    %v1702 = vsel %vm524, %v1691, %v1693
    %v1703 = vsel %vm524, %v1693, %v1695
    %v1704 = vsel %vm524, %v1697, %v1699
    %v1705 = vsel %vm524, %v1699, %v1701
    %v1712 = vadd.f32 %v1670, %v1702
    %v1713 = vadd.f32 %v1671, %v1703
    %v1714 = vadd.f32 %v1672, %v1695
    %v1715 = vadd.f32 %v1673, %v1704
    %v1716 = vadd.f32 %v1674, %v1705
    %v1717 = vadd.f32 %v1675, %v1701
    %v1718 = vmax.f32 %v1712, 0.0
    %v1719 = vmax.f32 %v1713, 0.0
    %v1720 = vmax.f32 %v1714, 0.0
    %v1721 = vmax.f32 %v1715, 0.0
    %v1722 = vmax.f32 %v1716, 0.0
    %v1723 = vmax.f32 %v1717, 0.0
    %1730 = vrot.lane.b32.xlu0 %v1718, 81
    %v1731 = vpop.permute.xlu0 %1730
    %1732 = vrot.lane.b32.xlu0 %v1719, 81
    %v1733 = vpop.permute.xlu0 %1732
    %1734 = vrot.lane.b32.xlu0 %v1720, 81
    %v1735 = vpop.permute.xlu0 %1734
    %1736 = vrot.lane.b32.xlu0 %v1721, 81
    %v1737 = vpop.permute.xlu0 %1736
    %1738 = vrot.lane.b32.xlu0 %v1722, 81
    %v1739 = vpop.permute.xlu0 %1738
    %1740 = vrot.lane.b32.xlu0 %v1723, 81
    %v1741 = vpop.permute.xlu0 %1740
    %v1742 = vsel %vm170, %v1731, %v1733
    %v1743 = vsel %vm170, %v1733, %v1735
    %v1744 = vsel %vm170, %v1737, %v1739
    %v1745 = vsel %vm170, %v1739, %v1741
    %v1750 = vadd.f32 %v1742, %v1743
    %1751 = vadd.xlane.f32.xlu0 %v1750
    %v1752 = vpop.xlane.xlu0 %1751
    %v1753 = vadd.f32 %v1744, %v1745
    %1754 = vadd.xlane.f32.xlu0 %v1753
    %v1755 = vpop.xlane.xlu0 %1754
    %v1756 = vmul.f32 %v1752, %v579
    %v1757 = vmul.f32 %v1755, %v579
    %s1758 = sld [smem:[#allocation2 + $0x484]]
    %s1759 = sld [smem:[#allocation2 + $0x4]]
    %v1760 = vstv %s1759
    %v1761 = vmul.f32 %v1760, %v91
    %v1762 = vmul.f32 %v1760, %v92
    %v1763 = vmul.f32 %v1760, %v93
    %v1764 = vmul.f32 %v1760, %v94
    %v1765 = vmul.f32 %v1760, %v95
    %v1766 = vmul.f32 %v1760, %v96
    %v1767 = vstv %s1758
    %v1768 = vadd.f32 %v1767, %v1761
    %v1769 = vadd.f32 %v1767, %v1762
    %v1770 = vadd.f32 %v1767, %v1763
    %v1771 = vadd.f32 %v1767, %v1764
    %v1772 = vadd.f32 %v1767, %v1765
    %v1773 = vadd.f32 %v1767, %v1766
    %s1774 = sld [smem:[#allocation2 + $0x84]]
    %v1775 = vstv %s1774
    %v1776 = vmul.f32 %v1775, %v64
    %v1777 = vmul.f32 %v1775, %v65
    %v1778 = vmul.f32 %v1775, %v66
    %v1779 = vmul.f32 %v1775, %v67
    %v1780 = vmul.f32 %v1775, %v68
    %v1781 = vmul.f32 %v1775, %v69
    %1788 = vrot.lane.b32.xlu0 %v1776, 127
    %v1789 = vpop.permute.xlu0 %1788
    %1790 = vrot.lane.b32.xlu0 %v1777, 127
    %v1791 = vpop.permute.xlu0 %1790
    %1792 = vrot.lane.b32.xlu0 %v1778, 127
    %v1793 = vpop.permute.xlu0 %1792
    %1794 = vrot.lane.b32.xlu0 %v1779, 127
    %v1795 = vpop.permute.xlu0 %1794
    %1796 = vrot.lane.b32.xlu0 %v1780, 127
    %v1797 = vpop.permute.xlu0 %1796
    %1798 = vrot.lane.b32.xlu0 %v1781, 127
    %v1799 = vpop.permute.xlu0 %1798
    %v1800 = vsel %vm223, %v1789, %v1791
    %v1801 = vsel %vm223, %v1791, %v1793
    %v1802 = vsel %vm223, %v1795, %v1797
    %v1803 = vsel %vm223, %v1797, %v1799
    %v1810 = vadd.f32 %v1768, %v1800
    %v1811 = vadd.f32 %v1769, %v1801
    %v1812 = vadd.f32 %v1770, %v1793
    %v1813 = vadd.f32 %v1771, %v1802
    %v1814 = vadd.f32 %v1772, %v1803
    %v1815 = vadd.f32 %v1773, %v1799
    %s1816 = sld [smem:[#allocation2 + $0x104]]
    %v1817 = vstv %s1816
    %v1818 = vmul.f32 %v1817, %v115
    %v1819 = vmul.f32 %v1817, %v116
    %v1820 = vmul.f32 %v1817, %v117
    %v1821 = vmul.f32 %v1817, %v118
    %v1822 = vmul.f32 %v1817, %v119
    %v1823 = vmul.f32 %v1817, %v120
    %1830 = vrot.lane.b32.xlu0 %v1818, 126
    %v1831 = vpop.permute.xlu0 %1830
    %1832 = vrot.lane.b32.xlu0 %v1819, 126
    %v1833 = vpop.permute.xlu0 %1832
    %1834 = vrot.lane.b32.xlu0 %v1820, 126
    %v1835 = vpop.permute.xlu0 %1834
    %1836 = vrot.lane.b32.xlu0 %v1821, 126
    %v1837 = vpop.permute.xlu0 %1836
    %1838 = vrot.lane.b32.xlu0 %v1822, 126
    %v1839 = vpop.permute.xlu0 %1838
    %1840 = vrot.lane.b32.xlu0 %v1823, 126
    %v1841 = vpop.permute.xlu0 %1840
    %v1842 = vsel %vm266, %v1831, %v1833
    %v1843 = vsel %vm266, %v1833, %v1835
    %v1844 = vsel %vm266, %v1837, %v1839
    %v1845 = vsel %vm266, %v1839, %v1841
    %v1852 = vadd.f32 %v1810, %v1842
    %v1853 = vadd.f32 %v1811, %v1843
    %v1854 = vadd.f32 %v1812, %v1835
    %v1855 = vadd.f32 %v1813, %v1844
    %v1856 = vadd.f32 %v1814, %v1845
    %v1857 = vadd.f32 %v1815, %v1841
    %s1858 = sld [smem:[#allocation2 + $0x184]]
    %v1859 = vstv %s1858
    %v1860 = vmul.f32 %v1859, %v130
    %v1861 = vmul.f32 %v1859, %v131
    %v1862 = vmul.f32 %v1859, %v132
    %v1863 = vmul.f32 %v1859, %v133
    %v1864 = vmul.f32 %v1859, %v134
    %v1865 = vmul.f32 %v1859, %v135
    %1872 = vrot.lane.b32.xlu0 %v1860, 112
    %v1873 = vpop.permute.xlu0 %1872
    %1874 = vrot.lane.b32.xlu0 %v1861, 112
    %v1875 = vpop.permute.xlu0 %1874
    %1876 = vrot.lane.b32.xlu0 %v1862, 112
    %v1877 = vpop.permute.xlu0 %1876
    %1878 = vrot.lane.b32.xlu0 %v1863, 112
    %v1879 = vpop.permute.xlu0 %1878
    %1880 = vrot.lane.b32.xlu0 %v1864, 112
    %v1881 = vpop.permute.xlu0 %1880
    %1882 = vrot.lane.b32.xlu0 %v1865, 112
    %v1883 = vpop.permute.xlu0 %1882
    %v1884 = vsel %vm309, %v1873, %v1875
    %v1885 = vsel %vm309, %v1875, %v1877
    %v1886 = vsel %vm309, %v1879, %v1881
    %v1887 = vsel %vm309, %v1881, %v1883
    %v1894 = vadd.f32 %v1852, %v1884
    %v1895 = vadd.f32 %v1853, %v1885
    %v1896 = vadd.f32 %v1854, %v1877
    %v1897 = vadd.f32 %v1855, %v1886
    %v1898 = vadd.f32 %v1856, %v1887
    %v1899 = vadd.f32 %v1857, %v1883
    %s1900 = sld [smem:[#allocation2 + $0x204]]
    %v1901 = vstv %s1900
    %v1902 = vmul.f32 %v1901, %v64
    %v1903 = vmul.f32 %v1901, %v65
    %v1904 = vmul.f32 %v1901, %v66
    %v1905 = vmul.f32 %v1901, %v67
    %v1906 = vmul.f32 %v1901, %v68
    %v1907 = vmul.f32 %v1901, %v69
    %1914 = vrot.lane.b32.xlu0 %v1902, 111
    %v1915 = vpop.permute.xlu0 %1914
    %1916 = vrot.lane.b32.xlu0 %v1903, 111
    %v1917 = vpop.permute.xlu0 %1916
    %1918 = vrot.lane.b32.xlu0 %v1904, 111
    %v1919 = vpop.permute.xlu0 %1918
    %1920 = vrot.lane.b32.xlu0 %v1905, 111
    %v1921 = vpop.permute.xlu0 %1920
    %1922 = vrot.lane.b32.xlu0 %v1906, 111
    %v1923 = vpop.permute.xlu0 %1922
    %1924 = vrot.lane.b32.xlu0 %v1907, 111
    %v1925 = vpop.permute.xlu0 %1924
    %v1926 = vsel %vm352, %v1915, %v1917
    %v1927 = vsel %vm352, %v1917, %v1919
    %v1928 = vsel %vm352, %v1921, %v1923
    %v1929 = vsel %vm352, %v1923, %v1925
    %v1936 = vadd.f32 %v1894, %v1926
    %v1937 = vadd.f32 %v1895, %v1927
    %v1938 = vadd.f32 %v1896, %v1919
    %v1939 = vadd.f32 %v1897, %v1928
    %v1940 = vadd.f32 %v1898, %v1929
    %v1941 = vadd.f32 %v1899, %v1925
    %s1942 = sld [smem:[#allocation2 + $0x284]]
    %v1943 = vstv %s1942
    %v1944 = vmul.f32 %v1943, %v145
    %v1945 = vmul.f32 %v1943, %v146
    %v1946 = vmul.f32 %v1943, %v147
    %v1947 = vmul.f32 %v1943, %v148
    %v1948 = vmul.f32 %v1943, %v149
    %v1949 = vmul.f32 %v1943, %v150
    %1956 = vrot.lane.b32.xlu0 %v1944, 110
    %v1957 = vpop.permute.xlu0 %1956
    %1958 = vrot.lane.b32.xlu0 %v1945, 110
    %v1959 = vpop.permute.xlu0 %1958
    %1960 = vrot.lane.b32.xlu0 %v1946, 110
    %v1961 = vpop.permute.xlu0 %1960
    %1962 = vrot.lane.b32.xlu0 %v1947, 110
    %v1963 = vpop.permute.xlu0 %1962
    %1964 = vrot.lane.b32.xlu0 %v1948, 110
    %v1965 = vpop.permute.xlu0 %1964
    %1966 = vrot.lane.b32.xlu0 %v1949, 110
    %v1967 = vpop.permute.xlu0 %1966
    %v1968 = vsel %vm395, %v1957, %v1959
    %v1969 = vsel %vm395, %v1959, %v1961
    %v1970 = vsel %vm395, %v1963, %v1965
    %v1971 = vsel %vm395, %v1965, %v1967
    %v1978 = vadd.f32 %v1936, %v1968
    %v1979 = vadd.f32 %v1937, %v1969
    %v1980 = vadd.f32 %v1938, %v1961
    %v1981 = vadd.f32 %v1939, %v1970
    %v1982 = vadd.f32 %v1940, %v1971
    %v1983 = vadd.f32 %v1941, %v1967
    %s1984 = sld [smem:[#allocation2 + $0x304]]
    %v1985 = vstv %s1984
    %v1986 = vmul.f32 %v1985, %v160
    %v1987 = vmul.f32 %v1985, %v161
    %v1988 = vmul.f32 %v1985, %v162
    %v1989 = vmul.f32 %v1985, %v163
    %v1990 = vmul.f32 %v1985, %v164
    %v1991 = vmul.f32 %v1985, %v165
    %1998 = vrot.lane.b32.xlu0 %v1986, 96
    %v1999 = vpop.permute.xlu0 %1998
    %2000 = vrot.lane.b32.xlu0 %v1987, 96
    %v2001 = vpop.permute.xlu0 %2000
    %2002 = vrot.lane.b32.xlu0 %v1988, 96
    %v2003 = vpop.permute.xlu0 %2002
    %2004 = vrot.lane.b32.xlu0 %v1989, 96
    %v2005 = vpop.permute.xlu0 %2004
    %2006 = vrot.lane.b32.xlu0 %v1990, 96
    %v2007 = vpop.permute.xlu0 %2006
    %2008 = vrot.lane.b32.xlu0 %v1991, 96
    %v2009 = vpop.permute.xlu0 %2008
    %v2010 = vsel %vm438, %v1999, %v2001
    %v2011 = vsel %vm438, %v2001, %v2003
    %v2012 = vsel %vm438, %v2005, %v2007
    %v2013 = vsel %vm438, %v2007, %v2009
    %v2020 = vadd.f32 %v1978, %v2010
    %v2021 = vadd.f32 %v1979, %v2011
    %v2022 = vadd.f32 %v1980, %v2003
    %v2023 = vadd.f32 %v1981, %v2012
    %v2024 = vadd.f32 %v1982, %v2013
    %v2025 = vadd.f32 %v1983, %v2009
    %s2026 = sld [smem:[#allocation2 + $0x384]]
    %v2027 = vstv %s2026
    %v2028 = vmul.f32 %v2027, %v64
    %v2029 = vmul.f32 %v2027, %v65
    %v2030 = vmul.f32 %v2027, %v66
    %v2031 = vmul.f32 %v2027, %v67
    %v2032 = vmul.f32 %v2027, %v68
    %v2033 = vmul.f32 %v2027, %v69
    %2040 = vrot.lane.b32.xlu0 %v2028, 95
    %v2041 = vpop.permute.xlu0 %2040
    %2042 = vrot.lane.b32.xlu0 %v2029, 95
    %v2043 = vpop.permute.xlu0 %2042
    %2044 = vrot.lane.b32.xlu0 %v2030, 95
    %v2045 = vpop.permute.xlu0 %2044
    %2046 = vrot.lane.b32.xlu0 %v2031, 95
    %v2047 = vpop.permute.xlu0 %2046
    %2048 = vrot.lane.b32.xlu0 %v2032, 95
    %v2049 = vpop.permute.xlu0 %2048
    %2050 = vrot.lane.b32.xlu0 %v2033, 95
    %v2051 = vpop.permute.xlu0 %2050
    %v2052 = vsel %vm481, %v2041, %v2043
    %v2053 = vsel %vm481, %v2043, %v2045
    %v2054 = vsel %vm481, %v2047, %v2049
    %v2055 = vsel %vm481, %v2049, %v2051
    %v2062 = vadd.f32 %v2020, %v2052
    %v2063 = vadd.f32 %v2021, %v2053
    %v2064 = vadd.f32 %v2022, %v2045
    %v2065 = vadd.f32 %v2023, %v2054
    %v2066 = vadd.f32 %v2024, %v2055
    %v2067 = vadd.f32 %v2025, %v2051
    %s2068 = sld [smem:[#allocation2 + $0x404]]
    %v2069 = vstv %s2068
    %v2070 = vmul.f32 %v2069, %v175
    %v2071 = vmul.f32 %v2069, %v176
    %v2072 = vmul.f32 %v2069, %v177
    %v2073 = vmul.f32 %v2069, %v178
    %v2074 = vmul.f32 %v2069, %v179
    %v2075 = vmul.f32 %v2069, %v180
    %2082 = vrot.lane.b32.xlu0 %v2070, 94
    %v2083 = vpop.permute.xlu0 %2082
    %2084 = vrot.lane.b32.xlu0 %v2071, 94
    %v2085 = vpop.permute.xlu0 %2084
    %2086 = vrot.lane.b32.xlu0 %v2072, 94
    %v2087 = vpop.permute.xlu0 %2086
    %2088 = vrot.lane.b32.xlu0 %v2073, 94
    %v2089 = vpop.permute.xlu0 %2088
    %2090 = vrot.lane.b32.xlu0 %v2074, 94
    %v2091 = vpop.permute.xlu0 %2090
    %2092 = vrot.lane.b32.xlu0 %v2075, 94
    %v2093 = vpop.permute.xlu0 %2092
    %v2094 = vsel %vm524, %v2083, %v2085
    %v2095 = vsel %vm524, %v2085, %v2087
    %v2096 = vsel %vm524, %v2089, %v2091
    %v2097 = vsel %vm524, %v2091, %v2093
    %v2104 = vadd.f32 %v2062, %v2094
    %v2105 = vadd.f32 %v2063, %v2095
    %v2106 = vadd.f32 %v2064, %v2087
    %v2107 = vadd.f32 %v2065, %v2096
    %v2108 = vadd.f32 %v2066, %v2097
    %v2109 = vadd.f32 %v2067, %v2093
    %v2110 = vmax.f32 %v2104, 0.0
    %v2111 = vmax.f32 %v2105, 0.0
    %v2112 = vmax.f32 %v2106, 0.0
    %v2113 = vmax.f32 %v2107, 0.0
    %v2114 = vmax.f32 %v2108, 0.0
    %v2115 = vmax.f32 %v2109, 0.0
    %2122 = vrot.lane.b32.xlu0 %v2110, 81
    %v2123 = vpop.permute.xlu0 %2122
    %2124 = vrot.lane.b32.xlu0 %v2111, 81
    %v2125 = vpop.permute.xlu0 %2124
    %2126 = vrot.lane.b32.xlu0 %v2112, 81
    %v2127 = vpop.permute.xlu0 %2126
    %2128 = vrot.lane.b32.xlu0 %v2113, 81
    %v2129 = vpop.permute.xlu0 %2128
    %2130 = vrot.lane.b32.xlu0 %v2114, 81
    %v2131 = vpop.permute.xlu0 %2130
    %2132 = vrot.lane.b32.xlu0 %v2115, 81
    %v2133 = vpop.permute.xlu0 %2132
    %v2134 = vsel %vm170, %v2123, %v2125
    %v2135 = vsel %vm170, %v2125, %v2127
    %v2136 = vsel %vm170, %v2129, %v2131
    %v2137 = vsel %vm170, %v2131, %v2133
    %v2142 = vadd.f32 %v2134, %v2135
    %2143 = vadd.xlane.f32.xlu0 %v2142
    %v2144 = vpop.xlane.xlu0 %2143
    %v2145 = vadd.f32 %v2136, %v2137
    %2146 = vadd.xlane.f32.xlu0 %v2145
    %v2147 = vpop.xlane.xlu0 %2146
    %v2148 = vmul.f32 %v2144, %v579
    %v2149 = vmul.f32 %v2147, %v579
    %s2150 = sld [smem:[#allocation2 + $0x485]]
    %s2151 = sld [smem:[#allocation2 + $0x5]]
    %v2152 = vstv %s2151
    %v2153 = vmul.f32 %v2152, %v91
    %v2154 = vmul.f32 %v2152, %v92
    %v2155 = vmul.f32 %v2152, %v93
    %v2156 = vmul.f32 %v2152, %v94
    %v2157 = vmul.f32 %v2152, %v95
    %v2158 = vmul.f32 %v2152, %v96
    %v2159 = vstv %s2150
    %v2160 = vadd.f32 %v2159, %v2153
    %v2161 = vadd.f32 %v2159, %v2154
    %v2162 = vadd.f32 %v2159, %v2155
    %v2163 = vadd.f32 %v2159, %v2156
    %v2164 = vadd.f32 %v2159, %v2157
    %v2165 = vadd.f32 %v2159, %v2158
    %s2166 = sld [smem:[#allocation2 + $0x85]]
    %v2167 = vstv %s2166
    %v2168 = vmul.f32 %v2167, %v64
    %v2169 = vmul.f32 %v2167, %v65
    %v2170 = vmul.f32 %v2167, %v66
    %v2171 = vmul.f32 %v2167, %v67
    %v2172 = vmul.f32 %v2167, %v68
    %v2173 = vmul.f32 %v2167, %v69
    %2180 = vrot.lane.b32.xlu0 %v2168, 127
    %v2181 = vpop.permute.xlu0 %2180
    %2182 = vrot.lane.b32.xlu0 %v2169, 127
    %v2183 = vpop.permute.xlu0 %2182
    %2184 = vrot.lane.b32.xlu0 %v2170, 127
    %v2185 = vpop.permute.xlu0 %2184
    %2186 = vrot.lane.b32.xlu0 %v2171, 127
    %v2187 = vpop.permute.xlu0 %2186
    %2188 = vrot.lane.b32.xlu0 %v2172, 127
    %v2189 = vpop.permute.xlu0 %2188
    %2190 = vrot.lane.b32.xlu0 %v2173, 127
    %v2191 = vpop.permute.xlu0 %2190
    %v2192 = vsel %vm223, %v2181, %v2183
    %v2193 = vsel %vm223, %v2183, %v2185
    %v2194 = vsel %vm223, %v2187, %v2189
    %v2195 = vsel %vm223, %v2189, %v2191
    %v2202 = vadd.f32 %v2160, %v2192
    %v2203 = vadd.f32 %v2161, %v2193
    %v2204 = vadd.f32 %v2162, %v2185
    %v2205 = vadd.f32 %v2163, %v2194
    %v2206 = vadd.f32 %v2164, %v2195
    %v2207 = vadd.f32 %v2165, %v2191
    %s2208 = sld [smem:[#allocation2 + $0x105]]
    %v2209 = vstv %s2208
    %v2210 = vmul.f32 %v2209, %v115
    %v2211 = vmul.f32 %v2209, %v116
    %v2212 = vmul.f32 %v2209, %v117
    %v2213 = vmul.f32 %v2209, %v118
    %v2214 = vmul.f32 %v2209, %v119
    %v2215 = vmul.f32 %v2209, %v120
    %2222 = vrot.lane.b32.xlu0 %v2210, 126
    %v2223 = vpop.permute.xlu0 %2222
    %2224 = vrot.lane.b32.xlu0 %v2211, 126
    %v2225 = vpop.permute.xlu0 %2224
    %2226 = vrot.lane.b32.xlu0 %v2212, 126
    %v2227 = vpop.permute.xlu0 %2226
    %2228 = vrot.lane.b32.xlu0 %v2213, 126
    %v2229 = vpop.permute.xlu0 %2228
    %2230 = vrot.lane.b32.xlu0 %v2214, 126
    %v2231 = vpop.permute.xlu0 %2230
    %2232 = vrot.lane.b32.xlu0 %v2215, 126
    %v2233 = vpop.permute.xlu0 %2232
    %v2234 = vsel %vm266, %v2223, %v2225
    %v2235 = vsel %vm266, %v2225, %v2227
    %v2236 = vsel %vm266, %v2229, %v2231
    %v2237 = vsel %vm266, %v2231, %v2233
    %v2244 = vadd.f32 %v2202, %v2234
    %v2245 = vadd.f32 %v2203, %v2235
    %v2246 = vadd.f32 %v2204, %v2227
    %v2247 = vadd.f32 %v2205, %v2236
    %v2248 = vadd.f32 %v2206, %v2237
    %v2249 = vadd.f32 %v2207, %v2233
    %s2250 = sld [smem:[#allocation2 + $0x185]]
    %v2251 = vstv %s2250
    %v2252 = vmul.f32 %v2251, %v130
    %v2253 = vmul.f32 %v2251, %v131
    %v2254 = vmul.f32 %v2251, %v132
    %v2255 = vmul.f32 %v2251, %v133
    %v2256 = vmul.f32 %v2251, %v134
    %v2257 = vmul.f32 %v2251, %v135
    %2264 = vrot.lane.b32.xlu0 %v2252, 112
    %v2265 = vpop.permute.xlu0 %2264
    %2266 = vrot.lane.b32.xlu0 %v2253, 112
    %v2267 = vpop.permute.xlu0 %2266
    %2268 = vrot.lane.b32.xlu0 %v2254, 112
    %v2269 = vpop.permute.xlu0 %2268
    %2270 = vrot.lane.b32.xlu0 %v2255, 112
    %v2271 = vpop.permute.xlu0 %2270
    %2272 = vrot.lane.b32.xlu0 %v2256, 112
    %v2273 = vpop.permute.xlu0 %2272
    %2274 = vrot.lane.b32.xlu0 %v2257, 112
    %v2275 = vpop.permute.xlu0 %2274
    %v2276 = vsel %vm309, %v2265, %v2267
    %v2277 = vsel %vm309, %v2267, %v2269
    %v2278 = vsel %vm309, %v2271, %v2273
    %v2279 = vsel %vm309, %v2273, %v2275
    %v2286 = vadd.f32 %v2244, %v2276
    %v2287 = vadd.f32 %v2245, %v2277
    %v2288 = vadd.f32 %v2246, %v2269
    %v2289 = vadd.f32 %v2247, %v2278
    %v2290 = vadd.f32 %v2248, %v2279
    %v2291 = vadd.f32 %v2249, %v2275
    %s2292 = sld [smem:[#allocation2 + $0x205]]
    %v2293 = vstv %s2292
    %v2294 = vmul.f32 %v2293, %v64
    %v2295 = vmul.f32 %v2293, %v65
    %v2296 = vmul.f32 %v2293, %v66
    %v2297 = vmul.f32 %v2293, %v67
    %v2298 = vmul.f32 %v2293, %v68
    %v2299 = vmul.f32 %v2293, %v69
    %2306 = vrot.lane.b32.xlu0 %v2294, 111
    %v2307 = vpop.permute.xlu0 %2306
    %2308 = vrot.lane.b32.xlu0 %v2295, 111
    %v2309 = vpop.permute.xlu0 %2308
    %2310 = vrot.lane.b32.xlu0 %v2296, 111
    %v2311 = vpop.permute.xlu0 %2310
    %2312 = vrot.lane.b32.xlu0 %v2297, 111
    %v2313 = vpop.permute.xlu0 %2312
    %2314 = vrot.lane.b32.xlu0 %v2298, 111
    %v2315 = vpop.permute.xlu0 %2314
    %2316 = vrot.lane.b32.xlu0 %v2299, 111
    %v2317 = vpop.permute.xlu0 %2316
    %v2318 = vsel %vm352, %v2307, %v2309
    %v2319 = vsel %vm352, %v2309, %v2311
    %v2320 = vsel %vm352, %v2313, %v2315
    %v2321 = vsel %vm352, %v2315, %v2317
    %v2328 = vadd.f32 %v2286, %v2318
    %v2329 = vadd.f32 %v2287, %v2319
    %v2330 = vadd.f32 %v2288, %v2311
    %v2331 = vadd.f32 %v2289, %v2320
    %v2332 = vadd.f32 %v2290, %v2321
    %v2333 = vadd.f32 %v2291, %v2317
    %s2334 = sld [smem:[#allocation2 + $0x285]]
    %v2335 = vstv %s2334
    %v2336 = vmul.f32 %v2335, %v145
    %v2337 = vmul.f32 %v2335, %v146
    %v2338 = vmul.f32 %v2335, %v147
    %v2339 = vmul.f32 %v2335, %v148
    %v2340 = vmul.f32 %v2335, %v149
    %v2341 = vmul.f32 %v2335, %v150
    %2348 = vrot.lane.b32.xlu0 %v2336, 110
    %v2349 = vpop.permute.xlu0 %2348
    %2350 = vrot.lane.b32.xlu0 %v2337, 110
    %v2351 = vpop.permute.xlu0 %2350
    %2352 = vrot.lane.b32.xlu0 %v2338, 110
    %v2353 = vpop.permute.xlu0 %2352
    %2354 = vrot.lane.b32.xlu0 %v2339, 110
    %v2355 = vpop.permute.xlu0 %2354
    %2356 = vrot.lane.b32.xlu0 %v2340, 110
    %v2357 = vpop.permute.xlu0 %2356
    %2358 = vrot.lane.b32.xlu0 %v2341, 110
    %v2359 = vpop.permute.xlu0 %2358
    %v2360 = vsel %vm395, %v2349, %v2351
    %v2361 = vsel %vm395, %v2351, %v2353
    %v2362 = vsel %vm395, %v2355, %v2357
    %v2363 = vsel %vm395, %v2357, %v2359
    %v2370 = vadd.f32 %v2328, %v2360
    %v2371 = vadd.f32 %v2329, %v2361
    %v2372 = vadd.f32 %v2330, %v2353
    %v2373 = vadd.f32 %v2331, %v2362
    %v2374 = vadd.f32 %v2332, %v2363
    %v2375 = vadd.f32 %v2333, %v2359
    %s2376 = sld [smem:[#allocation2 + $0x305]]
    %v2377 = vstv %s2376
    %v2378 = vmul.f32 %v2377, %v160
    %v2379 = vmul.f32 %v2377, %v161
    %v2380 = vmul.f32 %v2377, %v162
    %v2381 = vmul.f32 %v2377, %v163
    %v2382 = vmul.f32 %v2377, %v164
    %v2383 = vmul.f32 %v2377, %v165
    %2390 = vrot.lane.b32.xlu0 %v2378, 96
    %v2391 = vpop.permute.xlu0 %2390
    %2392 = vrot.lane.b32.xlu0 %v2379, 96
    %v2393 = vpop.permute.xlu0 %2392
    %2394 = vrot.lane.b32.xlu0 %v2380, 96
    %v2395 = vpop.permute.xlu0 %2394
    %2396 = vrot.lane.b32.xlu0 %v2381, 96
    %v2397 = vpop.permute.xlu0 %2396
    %2398 = vrot.lane.b32.xlu0 %v2382, 96
    %v2399 = vpop.permute.xlu0 %2398
    %2400 = vrot.lane.b32.xlu0 %v2383, 96
    %v2401 = vpop.permute.xlu0 %2400
    %v2402 = vsel %vm438, %v2391, %v2393
    %v2403 = vsel %vm438, %v2393, %v2395
    %v2404 = vsel %vm438, %v2397, %v2399
    %v2405 = vsel %vm438, %v2399, %v2401
    %v2412 = vadd.f32 %v2370, %v2402
    %v2413 = vadd.f32 %v2371, %v2403
    %v2414 = vadd.f32 %v2372, %v2395
    %v2415 = vadd.f32 %v2373, %v2404
    %v2416 = vadd.f32 %v2374, %v2405
    %v2417 = vadd.f32 %v2375, %v2401
    %s2418 = sld [smem:[#allocation2 + $0x385]]
    %v2419 = vstv %s2418
    %v2420 = vmul.f32 %v2419, %v64
    %v2421 = vmul.f32 %v2419, %v65
    %v2422 = vmul.f32 %v2419, %v66
    %v2423 = vmul.f32 %v2419, %v67
    %v2424 = vmul.f32 %v2419, %v68
    %v2425 = vmul.f32 %v2419, %v69
    %2432 = vrot.lane.b32.xlu0 %v2420, 95
    %v2433 = vpop.permute.xlu0 %2432
    %2434 = vrot.lane.b32.xlu0 %v2421, 95
    %v2435 = vpop.permute.xlu0 %2434
    %2436 = vrot.lane.b32.xlu0 %v2422, 95
    %v2437 = vpop.permute.xlu0 %2436
    %2438 = vrot.lane.b32.xlu0 %v2423, 95
    %v2439 = vpop.permute.xlu0 %2438
    %2440 = vrot.lane.b32.xlu0 %v2424, 95
    %v2441 = vpop.permute.xlu0 %2440
    %2442 = vrot.lane.b32.xlu0 %v2425, 95
    %v2443 = vpop.permute.xlu0 %2442
    %v2444 = vsel %vm481, %v2433, %v2435
    %v2445 = vsel %vm481, %v2435, %v2437
    %v2446 = vsel %vm481, %v2439, %v2441
    %v2447 = vsel %vm481, %v2441, %v2443
    %v2454 = vadd.f32 %v2412, %v2444
    %v2455 = vadd.f32 %v2413, %v2445
    %v2456 = vadd.f32 %v2414, %v2437
    %v2457 = vadd.f32 %v2415, %v2446
    %v2458 = vadd.f32 %v2416, %v2447
    %v2459 = vadd.f32 %v2417, %v2443
    %s2460 = sld [smem:[#allocation2 + $0x405]]
    %v2461 = vstv %s2460
    %v2462 = vmul.f32 %v2461, %v175
    %v2463 = vmul.f32 %v2461, %v176
    %v2464 = vmul.f32 %v2461, %v177
    %v2465 = vmul.f32 %v2461, %v178
    %v2466 = vmul.f32 %v2461, %v179
    %v2467 = vmul.f32 %v2461, %v180
    %2474 = vrot.lane.b32.xlu0 %v2462, 94
    %v2475 = vpop.permute.xlu0 %2474
    %2476 = vrot.lane.b32.xlu0 %v2463, 94
    %v2477 = vpop.permute.xlu0 %2476
    %2478 = vrot.lane.b32.xlu0 %v2464, 94
    %v2479 = vpop.permute.xlu0 %2478
    %2480 = vrot.lane.b32.xlu0 %v2465, 94
    %v2481 = vpop.permute.xlu0 %2480
    %2482 = vrot.lane.b32.xlu0 %v2466, 94
    %v2483 = vpop.permute.xlu0 %2482
    %2484 = vrot.lane.b32.xlu0 %v2467, 94
    %v2485 = vpop.permute.xlu0 %2484
    %v2486 = vsel %vm524, %v2475, %v2477
    %v2487 = vsel %vm524, %v2477, %v2479
    %v2488 = vsel %vm524, %v2481, %v2483
    %v2489 = vsel %vm524, %v2483, %v2485
    %v2496 = vadd.f32 %v2454, %v2486
    %v2497 = vadd.f32 %v2455, %v2487
    %v2498 = vadd.f32 %v2456, %v2479
    %v2499 = vadd.f32 %v2457, %v2488
    %v2500 = vadd.f32 %v2458, %v2489
    %v2501 = vadd.f32 %v2459, %v2485
    %v2502 = vmax.f32 %v2496, 0.0
    %v2503 = vmax.f32 %v2497, 0.0
    %v2504 = vmax.f32 %v2498, 0.0
    %v2505 = vmax.f32 %v2499, 0.0
    %v2506 = vmax.f32 %v2500, 0.0
    %v2507 = vmax.f32 %v2501, 0.0
    %2514 = vrot.lane.b32.xlu0 %v2502, 81
    %v2515 = vpop.permute.xlu0 %2514
    %2516 = vrot.lane.b32.xlu0 %v2503, 81
    %v2517 = vpop.permute.xlu0 %2516
    %2518 = vrot.lane.b32.xlu0 %v2504, 81
    %v2519 = vpop.permute.xlu0 %2518
    %2520 = vrot.lane.b32.xlu0 %v2505, 81
    %v2521 = vpop.permute.xlu0 %2520
    %2522 = vrot.lane.b32.xlu0 %v2506, 81
    %v2523 = vpop.permute.xlu0 %2522
    %2524 = vrot.lane.b32.xlu0 %v2507, 81
    %v2525 = vpop.permute.xlu0 %2524
    %v2526 = vsel %vm170, %v2515, %v2517
    %v2527 = vsel %vm170, %v2517, %v2519
    %v2528 = vsel %vm170, %v2521, %v2523
    %v2529 = vsel %vm170, %v2523, %v2525
    %v2534 = vadd.f32 %v2526, %v2527
    %2535 = vadd.xlane.f32.xlu0 %v2534
    %v2536 = vpop.xlane.xlu0 %2535
    %v2537 = vadd.f32 %v2528, %v2529
    %2538 = vadd.xlane.f32.xlu0 %v2537
    %v2539 = vpop.xlane.xlu0 %2538
    %v2540 = vmul.f32 %v2536, %v579
    %v2541 = vmul.f32 %v2539, %v579
    %s2542 = sld [smem:[#allocation2 + $0x486]]
    %s2543 = sld [smem:[#allocation2 + $0x6]]
    %v2544 = vstv %s2543
    %v2545 = vmul.f32 %v2544, %v91
    %v2546 = vmul.f32 %v2544, %v92
    %v2547 = vmul.f32 %v2544, %v93
    %v2548 = vmul.f32 %v2544, %v94
    %v2549 = vmul.f32 %v2544, %v95
    %v2550 = vmul.f32 %v2544, %v96
    %v2551 = vstv %s2542
    %v2552 = vadd.f32 %v2551, %v2545
    %v2553 = vadd.f32 %v2551, %v2546
    %v2554 = vadd.f32 %v2551, %v2547
    %v2555 = vadd.f32 %v2551, %v2548
    %v2556 = vadd.f32 %v2551, %v2549
    %v2557 = vadd.f32 %v2551, %v2550
    %s2558 = sld [smem:[#allocation2 + $0x86]]
    %v2559 = vstv %s2558
    %v2560 = vmul.f32 %v2559, %v64
    %v2561 = vmul.f32 %v2559, %v65
    %v2562 = vmul.f32 %v2559, %v66
    %v2563 = vmul.f32 %v2559, %v67
    %v2564 = vmul.f32 %v2559, %v68
    %v2565 = vmul.f32 %v2559, %v69
    %2572 = vrot.lane.b32.xlu0 %v2560, 127
    %v2573 = vpop.permute.xlu0 %2572
    %2574 = vrot.lane.b32.xlu0 %v2561, 127
    %v2575 = vpop.permute.xlu0 %2574
    %2576 = vrot.lane.b32.xlu0 %v2562, 127
    %v2577 = vpop.permute.xlu0 %2576
    %2578 = vrot.lane.b32.xlu0 %v2563, 127
    %v2579 = vpop.permute.xlu0 %2578
    %2580 = vrot.lane.b32.xlu0 %v2564, 127
    %v2581 = vpop.permute.xlu0 %2580
    %2582 = vrot.lane.b32.xlu0 %v2565, 127
    %v2583 = vpop.permute.xlu0 %2582
    %v2584 = vsel %vm223, %v2573, %v2575
    %v2585 = vsel %vm223, %v2575, %v2577
    %v2586 = vsel %vm223, %v2579, %v2581
    %v2587 = vsel %vm223, %v2581, %v2583
    %v2594 = vadd.f32 %v2552, %v2584
    %v2595 = vadd.f32 %v2553, %v2585
    %v2596 = vadd.f32 %v2554, %v2577
    %v2597 = vadd.f32 %v2555, %v2586
    %v2598 = vadd.f32 %v2556, %v2587
    %v2599 = vadd.f32 %v2557, %v2583
    %s2600 = sld [smem:[#allocation2 + $0x106]]
    %v2601 = vstv %s2600
    %v2602 = vmul.f32 %v2601, %v115
    %v2603 = vmul.f32 %v2601, %v116
    %v2604 = vmul.f32 %v2601, %v117
    %v2605 = vmul.f32 %v2601, %v118
    %v2606 = vmul.f32 %v2601, %v119
    %v2607 = vmul.f32 %v2601, %v120
    %2614 = vrot.lane.b32.xlu0 %v2602, 126
    %v2615 = vpop.permute.xlu0 %2614
    %2616 = vrot.lane.b32.xlu0 %v2603, 126
    %v2617 = vpop.permute.xlu0 %2616
    %2618 = vrot.lane.b32.xlu0 %v2604, 126
    %v2619 = vpop.permute.xlu0 %2618
    %2620 = vrot.lane.b32.xlu0 %v2605, 126
    %v2621 = vpop.permute.xlu0 %2620
    %2622 = vrot.lane.b32.xlu0 %v2606, 126
    %v2623 = vpop.permute.xlu0 %2622
    %2624 = vrot.lane.b32.xlu0 %v2607, 126
    %v2625 = vpop.permute.xlu0 %2624
    %v2626 = vsel %vm266, %v2615, %v2617
    %v2627 = vsel %vm266, %v2617, %v2619
    %v2628 = vsel %vm266, %v2621, %v2623
    %v2629 = vsel %vm266, %v2623, %v2625
    %v2636 = vadd.f32 %v2594, %v2626
    %v2637 = vadd.f32 %v2595, %v2627
    %v2638 = vadd.f32 %v2596, %v2619
    %v2639 = vadd.f32 %v2597, %v2628
    %v2640 = vadd.f32 %v2598, %v2629
    %v2641 = vadd.f32 %v2599, %v2625
    %s2642 = sld [smem:[#allocation2 + $0x186]]
    %v2643 = vstv %s2642
    %v2644 = vmul.f32 %v2643, %v130
    %v2645 = vmul.f32 %v2643, %v131
    %v2646 = vmul.f32 %v2643, %v132
    %v2647 = vmul.f32 %v2643, %v133
    %v2648 = vmul.f32 %v2643, %v134
    %v2649 = vmul.f32 %v2643, %v135
    %2656 = vrot.lane.b32.xlu0 %v2644, 112
    %v2657 = vpop.permute.xlu0 %2656
    %2658 = vrot.lane.b32.xlu0 %v2645, 112
    %v2659 = vpop.permute.xlu0 %2658
    %2660 = vrot.lane.b32.xlu0 %v2646, 112
    %v2661 = vpop.permute.xlu0 %2660
    %2662 = vrot.lane.b32.xlu0 %v2647, 112
    %v2663 = vpop.permute.xlu0 %2662
    %2664 = vrot.lane.b32.xlu0 %v2648, 112
    %v2665 = vpop.permute.xlu0 %2664
    %2666 = vrot.lane.b32.xlu0 %v2649, 112
    %v2667 = vpop.permute.xlu0 %2666
    %v2668 = vsel %vm309, %v2657, %v2659
    %v2669 = vsel %vm309, %v2659, %v2661
    %v2670 = vsel %vm309, %v2663, %v2665
    %v2671 = vsel %vm309, %v2665, %v2667
    %v2678 = vadd.f32 %v2636, %v2668
    %v2679 = vadd.f32 %v2637, %v2669
    %v2680 = vadd.f32 %v2638, %v2661
    %v2681 = vadd.f32 %v2639, %v2670
    %v2682 = vadd.f32 %v2640, %v2671
    %v2683 = vadd.f32 %v2641, %v2667
    %s2684 = sld [smem:[#allocation2 + $0x206]]
    %v2685 = vstv %s2684
    %v2686 = vmul.f32 %v2685, %v64
    %v2687 = vmul.f32 %v2685, %v65
    %v2688 = vmul.f32 %v2685, %v66
    %v2689 = vmul.f32 %v2685, %v67
    %v2690 = vmul.f32 %v2685, %v68
    %v2691 = vmul.f32 %v2685, %v69
    %2698 = vrot.lane.b32.xlu0 %v2686, 111
    %v2699 = vpop.permute.xlu0 %2698
    %2700 = vrot.lane.b32.xlu0 %v2687, 111
    %v2701 = vpop.permute.xlu0 %2700
    %2702 = vrot.lane.b32.xlu0 %v2688, 111
    %v2703 = vpop.permute.xlu0 %2702
    %2704 = vrot.lane.b32.xlu0 %v2689, 111
    %v2705 = vpop.permute.xlu0 %2704
    %2706 = vrot.lane.b32.xlu0 %v2690, 111
    %v2707 = vpop.permute.xlu0 %2706
    %2708 = vrot.lane.b32.xlu0 %v2691, 111
    %v2709 = vpop.permute.xlu0 %2708
    %v2710 = vsel %vm352, %v2699, %v2701
    %v2711 = vsel %vm352, %v2701, %v2703
    %v2712 = vsel %vm352, %v2705, %v2707
    %v2713 = vsel %vm352, %v2707, %v2709
    %v2720 = vadd.f32 %v2678, %v2710
    %v2721 = vadd.f32 %v2679, %v2711
    %v2722 = vadd.f32 %v2680, %v2703
    %v2723 = vadd.f32 %v2681, %v2712
    %v2724 = vadd.f32 %v2682, %v2713
    %v2725 = vadd.f32 %v2683, %v2709
    %s2726 = sld [smem:[#allocation2 + $0x286]]
    %v2727 = vstv %s2726
    %v2728 = vmul.f32 %v2727, %v145
    %v2729 = vmul.f32 %v2727, %v146
    %v2730 = vmul.f32 %v2727, %v147
    %v2731 = vmul.f32 %v2727, %v148
    %v2732 = vmul.f32 %v2727, %v149
    %v2733 = vmul.f32 %v2727, %v150
    %2740 = vrot.lane.b32.xlu0 %v2728, 110
    %v2741 = vpop.permute.xlu0 %2740
    %2742 = vrot.lane.b32.xlu0 %v2729, 110
    %v2743 = vpop.permute.xlu0 %2742
    %2744 = vrot.lane.b32.xlu0 %v2730, 110
    %v2745 = vpop.permute.xlu0 %2744
    %2746 = vrot.lane.b32.xlu0 %v2731, 110
    %v2747 = vpop.permute.xlu0 %2746
    %2748 = vrot.lane.b32.xlu0 %v2732, 110
    %v2749 = vpop.permute.xlu0 %2748
    %2750 = vrot.lane.b32.xlu0 %v2733, 110
    %v2751 = vpop.permute.xlu0 %2750
    %v2752 = vsel %vm395, %v2741, %v2743
    %v2753 = vsel %vm395, %v2743, %v2745
    %v2754 = vsel %vm395, %v2747, %v2749
    %v2755 = vsel %vm395, %v2749, %v2751
    %v2762 = vadd.f32 %v2720, %v2752
    %v2763 = vadd.f32 %v2721, %v2753
    %v2764 = vadd.f32 %v2722, %v2745
    %v2765 = vadd.f32 %v2723, %v2754
    %v2766 = vadd.f32 %v2724, %v2755
    %v2767 = vadd.f32 %v2725, %v2751
    %s2768 = sld [smem:[#allocation2 + $0x306]]
    %v2769 = vstv %s2768
    %v2770 = vmul.f32 %v2769, %v160
    %v2771 = vmul.f32 %v2769, %v161
    %v2772 = vmul.f32 %v2769, %v162
    %v2773 = vmul.f32 %v2769, %v163
    %v2774 = vmul.f32 %v2769, %v164
    %v2775 = vmul.f32 %v2769, %v165
    %2782 = vrot.lane.b32.xlu0 %v2770, 96
    %v2783 = vpop.permute.xlu0 %2782
    %2784 = vrot.lane.b32.xlu0 %v2771, 96
    %v2785 = vpop.permute.xlu0 %2784
    %2786 = vrot.lane.b32.xlu0 %v2772, 96
    %v2787 = vpop.permute.xlu0 %2786
    %2788 = vrot.lane.b32.xlu0 %v2773, 96
    %v2789 = vpop.permute.xlu0 %2788
    %2790 = vrot.lane.b32.xlu0 %v2774, 96
    %v2791 = vpop.permute.xlu0 %2790
    %2792 = vrot.lane.b32.xlu0 %v2775, 96
    %v2793 = vpop.permute.xlu0 %2792
    %v2794 = vsel %vm438, %v2783, %v2785
    %v2795 = vsel %vm438, %v2785, %v2787
    %v2796 = vsel %vm438, %v2789, %v2791
    %v2797 = vsel %vm438, %v2791, %v2793
    %v2804 = vadd.f32 %v2762, %v2794
    %v2805 = vadd.f32 %v2763, %v2795
    %v2806 = vadd.f32 %v2764, %v2787
    %v2807 = vadd.f32 %v2765, %v2796
    %v2808 = vadd.f32 %v2766, %v2797
    %v2809 = vadd.f32 %v2767, %v2793
    %s2810 = sld [smem:[#allocation2 + $0x386]]
    %v2811 = vstv %s2810
    %v2812 = vmul.f32 %v2811, %v64
    %v2813 = vmul.f32 %v2811, %v65
    %v2814 = vmul.f32 %v2811, %v66
    %v2815 = vmul.f32 %v2811, %v67
    %v2816 = vmul.f32 %v2811, %v68
    %v2817 = vmul.f32 %v2811, %v69
    %2824 = vrot.lane.b32.xlu0 %v2812, 95
    %v2825 = vpop.permute.xlu0 %2824
    %2826 = vrot.lane.b32.xlu0 %v2813, 95
    %v2827 = vpop.permute.xlu0 %2826
    %2828 = vrot.lane.b32.xlu0 %v2814, 95
    %v2829 = vpop.permute.xlu0 %2828
    %2830 = vrot.lane.b32.xlu0 %v2815, 95
    %v2831 = vpop.permute.xlu0 %2830
    %2832 = vrot.lane.b32.xlu0 %v2816, 95
    %v2833 = vpop.permute.xlu0 %2832
    %2834 = vrot.lane.b32.xlu0 %v2817, 95
    %v2835 = vpop.permute.xlu0 %2834
    %v2836 = vsel %vm481, %v2825, %v2827
    %v2837 = vsel %vm481, %v2827, %v2829
    %v2838 = vsel %vm481, %v2831, %v2833
    %v2839 = vsel %vm481, %v2833, %v2835
    %v2846 = vadd.f32 %v2804, %v2836
    %v2847 = vadd.f32 %v2805, %v2837
    %v2848 = vadd.f32 %v2806, %v2829
    %v2849 = vadd.f32 %v2807, %v2838
    %v2850 = vadd.f32 %v2808, %v2839
    %v2851 = vadd.f32 %v2809, %v2835
    %s2852 = sld [smem:[#allocation2 + $0x406]]
    %v2853 = vstv %s2852
    %v2854 = vmul.f32 %v2853, %v175
    %v2855 = vmul.f32 %v2853, %v176
    %v2856 = vmul.f32 %v2853, %v177
    %v2857 = vmul.f32 %v2853, %v178
    %v2858 = vmul.f32 %v2853, %v179
    %v2859 = vmul.f32 %v2853, %v180
    %2866 = vrot.lane.b32.xlu0 %v2854, 94
    %v2867 = vpop.permute.xlu0 %2866
    %2868 = vrot.lane.b32.xlu0 %v2855, 94
    %v2869 = vpop.permute.xlu0 %2868
    %2870 = vrot.lane.b32.xlu0 %v2856, 94
    %v2871 = vpop.permute.xlu0 %2870
    %2872 = vrot.lane.b32.xlu0 %v2857, 94
    %v2873 = vpop.permute.xlu0 %2872
    %2874 = vrot.lane.b32.xlu0 %v2858, 94
    %v2875 = vpop.permute.xlu0 %2874
    %2876 = vrot.lane.b32.xlu0 %v2859, 94
    %v2877 = vpop.permute.xlu0 %2876
    %v2878 = vsel %vm524, %v2867, %v2869
    %v2879 = vsel %vm524, %v2869, %v2871
    %v2880 = vsel %vm524, %v2873, %v2875
    %v2881 = vsel %vm524, %v2875, %v2877
    %v2888 = vadd.f32 %v2846, %v2878
    %v2889 = vadd.f32 %v2847, %v2879
    %v2890 = vadd.f32 %v2848, %v2871
    %v2891 = vadd.f32 %v2849, %v2880
    %v2892 = vadd.f32 %v2850, %v2881
    %v2893 = vadd.f32 %v2851, %v2877
    %v2894 = vmax.f32 %v2888, 0.0
    %v2895 = vmax.f32 %v2889, 0.0
    %v2896 = vmax.f32 %v2890, 0.0
    %v2897 = vmax.f32 %v2891, 0.0
    %v2898 = vmax.f32 %v2892, 0.0
    %v2899 = vmax.f32 %v2893, 0.0
    %2906 = vrot.lane.b32.xlu0 %v2894, 81
    %v2907 = vpop.permute.xlu0 %2906
    %2908 = vrot.lane.b32.xlu0 %v2895, 81
    %v2909 = vpop.permute.xlu0 %2908
    %2910 = vrot.lane.b32.xlu0 %v2896, 81
    %v2911 = vpop.permute.xlu0 %2910
    %2912 = vrot.lane.b32.xlu0 %v2897, 81
    %v2913 = vpop.permute.xlu0 %2912
    %2914 = vrot.lane.b32.xlu0 %v2898, 81
    %v2915 = vpop.permute.xlu0 %2914
    %2916 = vrot.lane.b32.xlu0 %v2899, 81
    %v2917 = vpop.permute.xlu0 %2916
    %v2918 = vsel %vm170, %v2907, %v2909
    %v2919 = vsel %vm170, %v2909, %v2911
    %v2920 = vsel %vm170, %v2913, %v2915
    %v2921 = vsel %vm170, %v2915, %v2917
    %v2926 = vadd.f32 %v2918, %v2919
    %2927 = vadd.xlane.f32.xlu0 %v2926
    %v2928 = vpop.xlane.xlu0 %2927
    %v2929 = vadd.f32 %v2920, %v2921
    %2930 = vadd.xlane.f32.xlu0 %v2929
    %v2931 = vpop.xlane.xlu0 %2930
    %v2932 = vmul.f32 %v2928, %v579
    %v2933 = vmul.f32 %v2931, %v579
    %s2934 = sld [smem:[#allocation2 + $0x487]]
    %s2935 = sld [smem:[#allocation2 + $0x7]]
    %v2936 = vstv %s2935
    %v2937 = vmul.f32 %v2936, %v91
    %v2938 = vmul.f32 %v2936, %v92
    %v2939 = vmul.f32 %v2936, %v93
    %v2940 = vmul.f32 %v2936, %v94
    %v2941 = vmul.f32 %v2936, %v95
    %v2942 = vmul.f32 %v2936, %v96
    %v2943 = vstv %s2934
    %v2944 = vadd.f32 %v2943, %v2937
    %v2945 = vadd.f32 %v2943, %v2938
    %v2946 = vadd.f32 %v2943, %v2939
    %v2947 = vadd.f32 %v2943, %v2940
    %v2948 = vadd.f32 %v2943, %v2941
    %v2949 = vadd.f32 %v2943, %v2942
    %s2950 = sld [smem:[#allocation2 + $0x87]]
    %v2951 = vstv %s2950
    %v2952 = vmul.f32 %v2951, %v64
    %v2953 = vmul.f32 %v2951, %v65
    %v2954 = vmul.f32 %v2951, %v66
    %v2955 = vmul.f32 %v2951, %v67
    %v2956 = vmul.f32 %v2951, %v68
    %v2957 = vmul.f32 %v2951, %v69
    %2964 = vrot.lane.b32.xlu0 %v2952, 127
    %v2965 = vpop.permute.xlu0 %2964
    %2966 = vrot.lane.b32.xlu0 %v2953, 127
    %v2967 = vpop.permute.xlu0 %2966
    %2968 = vrot.lane.b32.xlu0 %v2954, 127
    %v2969 = vpop.permute.xlu0 %2968
    %2970 = vrot.lane.b32.xlu0 %v2955, 127
    %v2971 = vpop.permute.xlu0 %2970
    %2972 = vrot.lane.b32.xlu0 %v2956, 127
    %v2973 = vpop.permute.xlu0 %2972
    %2974 = vrot.lane.b32.xlu0 %v2957, 127
    %v2975 = vpop.permute.xlu0 %2974
    %v2976 = vsel %vm223, %v2965, %v2967
    %v2977 = vsel %vm223, %v2967, %v2969
    %v2978 = vsel %vm223, %v2971, %v2973
    %v2979 = vsel %vm223, %v2973, %v2975
    %v2986 = vadd.f32 %v2944, %v2976
    %v2987 = vadd.f32 %v2945, %v2977
    %v2988 = vadd.f32 %v2946, %v2969
    %v2989 = vadd.f32 %v2947, %v2978
    %v2990 = vadd.f32 %v2948, %v2979
    %v2991 = vadd.f32 %v2949, %v2975
    %s2992 = sld [smem:[#allocation2 + $0x107]]
    %v2993 = vstv %s2992
    %v2994 = vmul.f32 %v2993, %v115
    %v2995 = vmul.f32 %v2993, %v116
    %v2996 = vmul.f32 %v2993, %v117
    %v2997 = vmul.f32 %v2993, %v118
    %v2998 = vmul.f32 %v2993, %v119
    %v2999 = vmul.f32 %v2993, %v120
    %3006 = vrot.lane.b32.xlu0 %v2994, 126
    %v3007 = vpop.permute.xlu0 %3006
    %3008 = vrot.lane.b32.xlu0 %v2995, 126
    %v3009 = vpop.permute.xlu0 %3008
    %3010 = vrot.lane.b32.xlu0 %v2996, 126
    %v3011 = vpop.permute.xlu0 %3010
    %3012 = vrot.lane.b32.xlu0 %v2997, 126
    %v3013 = vpop.permute.xlu0 %3012
    %3014 = vrot.lane.b32.xlu0 %v2998, 126
    %v3015 = vpop.permute.xlu0 %3014
    %3016 = vrot.lane.b32.xlu0 %v2999, 126
    %v3017 = vpop.permute.xlu0 %3016
    %v3018 = vsel %vm266, %v3007, %v3009
    %v3019 = vsel %vm266, %v3009, %v3011
    %v3020 = vsel %vm266, %v3013, %v3015
    %v3021 = vsel %vm266, %v3015, %v3017
    %v3028 = vadd.f32 %v2986, %v3018
    %v3029 = vadd.f32 %v2987, %v3019
    %v3030 = vadd.f32 %v2988, %v3011
    %v3031 = vadd.f32 %v2989, %v3020
    %v3032 = vadd.f32 %v2990, %v3021
    %v3033 = vadd.f32 %v2991, %v3017
    %s3034 = sld [smem:[#allocation2 + $0x187]]
    %v3035 = vstv %s3034
    %v3036 = vmul.f32 %v3035, %v130
    %v3037 = vmul.f32 %v3035, %v131
    %v3038 = vmul.f32 %v3035, %v132
    %v3039 = vmul.f32 %v3035, %v133
    %v3040 = vmul.f32 %v3035, %v134
    %v3041 = vmul.f32 %v3035, %v135
    %3048 = vrot.lane.b32.xlu0 %v3036, 112
    %v3049 = vpop.permute.xlu0 %3048
    %3050 = vrot.lane.b32.xlu0 %v3037, 112
    %v3051 = vpop.permute.xlu0 %3050
    %3052 = vrot.lane.b32.xlu0 %v3038, 112
    %v3053 = vpop.permute.xlu0 %3052
    %3054 = vrot.lane.b32.xlu0 %v3039, 112
    %v3055 = vpop.permute.xlu0 %3054
    %3056 = vrot.lane.b32.xlu0 %v3040, 112
    %v3057 = vpop.permute.xlu0 %3056
    %3058 = vrot.lane.b32.xlu0 %v3041, 112
    %v3059 = vpop.permute.xlu0 %3058
    %v3060 = vsel %vm309, %v3049, %v3051
    %v3061 = vsel %vm309, %v3051, %v3053
    %v3062 = vsel %vm309, %v3055, %v3057
    %v3063 = vsel %vm309, %v3057, %v3059
    %v3070 = vadd.f32 %v3028, %v3060
    %v3071 = vadd.f32 %v3029, %v3061
    %v3072 = vadd.f32 %v3030, %v3053
    %v3073 = vadd.f32 %v3031, %v3062
    %v3074 = vadd.f32 %v3032, %v3063
    %v3075 = vadd.f32 %v3033, %v3059
    %s3076 = sld [smem:[#allocation2 + $0x207]]
    %v3077 = vstv %s3076
    %v3078 = vmul.f32 %v3077, %v64
    %v3079 = vmul.f32 %v3077, %v65
    %v3080 = vmul.f32 %v3077, %v66
    %v3081 = vmul.f32 %v3077, %v67
    %v3082 = vmul.f32 %v3077, %v68
    %v3083 = vmul.f32 %v3077, %v69
    %3090 = vrot.lane.b32.xlu0 %v3078, 111
    %v3091 = vpop.permute.xlu0 %3090
    %3092 = vrot.lane.b32.xlu0 %v3079, 111
    %v3093 = vpop.permute.xlu0 %3092
    %3094 = vrot.lane.b32.xlu0 %v3080, 111
    %v3095 = vpop.permute.xlu0 %3094
    %3096 = vrot.lane.b32.xlu0 %v3081, 111
    %v3097 = vpop.permute.xlu0 %3096
    %3098 = vrot.lane.b32.xlu0 %v3082, 111
    %v3099 = vpop.permute.xlu0 %3098
    %3100 = vrot.lane.b32.xlu0 %v3083, 111
    %v3101 = vpop.permute.xlu0 %3100
    %v3102 = vsel %vm352, %v3091, %v3093
    %v3103 = vsel %vm352, %v3093, %v3095
    %v3104 = vsel %vm352, %v3097, %v3099
    %v3105 = vsel %vm352, %v3099, %v3101
    %v3112 = vadd.f32 %v3070, %v3102
    %v3113 = vadd.f32 %v3071, %v3103
    %v3114 = vadd.f32 %v3072, %v3095
    %v3115 = vadd.f32 %v3073, %v3104
    %v3116 = vadd.f32 %v3074, %v3105
    %v3117 = vadd.f32 %v3075, %v3101
    %s3118 = sld [smem:[#allocation2 + $0x287]]
    %v3119 = vstv %s3118
    %v3120 = vmul.f32 %v3119, %v145
    %v3121 = vmul.f32 %v3119, %v146
    %v3122 = vmul.f32 %v3119, %v147
    %v3123 = vmul.f32 %v3119, %v148
    %v3124 = vmul.f32 %v3119, %v149
    %v3125 = vmul.f32 %v3119, %v150
    %3132 = vrot.lane.b32.xlu0 %v3120, 110
    %v3133 = vpop.permute.xlu0 %3132
    %3134 = vrot.lane.b32.xlu0 %v3121, 110
    %v3135 = vpop.permute.xlu0 %3134
    %3136 = vrot.lane.b32.xlu0 %v3122, 110
    %v3137 = vpop.permute.xlu0 %3136
    %3138 = vrot.lane.b32.xlu0 %v3123, 110
    %v3139 = vpop.permute.xlu0 %3138
    %3140 = vrot.lane.b32.xlu0 %v3124, 110
    %v3141 = vpop.permute.xlu0 %3140
    %3142 = vrot.lane.b32.xlu0 %v3125, 110
    %v3143 = vpop.permute.xlu0 %3142
    %v3144 = vsel %vm395, %v3133, %v3135
    %v3145 = vsel %vm395, %v3135, %v3137
    %v3146 = vsel %vm395, %v3139, %v3141
    %v3147 = vsel %vm395, %v3141, %v3143
    %v3154 = vadd.f32 %v3112, %v3144
    %v3155 = vadd.f32 %v3113, %v3145
    %v3156 = vadd.f32 %v3114, %v3137
    %v3157 = vadd.f32 %v3115, %v3146
    %v3158 = vadd.f32 %v3116, %v3147
    %v3159 = vadd.f32 %v3117, %v3143
    %s3160 = sld [smem:[#allocation2 + $0x307]]
    %v3161 = vstv %s3160
    %v3162 = vmul.f32 %v3161, %v160
    %v3163 = vmul.f32 %v3161, %v161
    %v3164 = vmul.f32 %v3161, %v162
    %v3165 = vmul.f32 %v3161, %v163
    %v3166 = vmul.f32 %v3161, %v164
    %v3167 = vmul.f32 %v3161, %v165
    %3174 = vrot.lane.b32.xlu0 %v3162, 96
    %v3175 = vpop.permute.xlu0 %3174
    %3176 = vrot.lane.b32.xlu0 %v3163, 96
    %v3177 = vpop.permute.xlu0 %3176
    %3178 = vrot.lane.b32.xlu0 %v3164, 96
    %v3179 = vpop.permute.xlu0 %3178
    %3180 = vrot.lane.b32.xlu0 %v3165, 96
    %v3181 = vpop.permute.xlu0 %3180
    %3182 = vrot.lane.b32.xlu0 %v3166, 96
    %v3183 = vpop.permute.xlu0 %3182
    %3184 = vrot.lane.b32.xlu0 %v3167, 96
    %v3185 = vpop.permute.xlu0 %3184
    %v3186 = vsel %vm438, %v3175, %v3177
    %v3187 = vsel %vm438, %v3177, %v3179
    %v3188 = vsel %vm438, %v3181, %v3183
    %v3189 = vsel %vm438, %v3183, %v3185
    %v3196 = vadd.f32 %v3154, %v3186
    %v3197 = vadd.f32 %v3155, %v3187
    %v3198 = vadd.f32 %v3156, %v3179
    %v3199 = vadd.f32 %v3157, %v3188
    %v3200 = vadd.f32 %v3158, %v3189
    %v3201 = vadd.f32 %v3159, %v3185
    %s3202 = sld [smem:[#allocation2 + $0x387]]
    %v3203 = vstv %s3202
    %v3204 = vmul.f32 %v3203, %v64
    %v3205 = vmul.f32 %v3203, %v65
    %v3206 = vmul.f32 %v3203, %v66
    %v3207 = vmul.f32 %v3203, %v67
    %v3208 = vmul.f32 %v3203, %v68
    %v3209 = vmul.f32 %v3203, %v69
    %3216 = vrot.lane.b32.xlu0 %v3204, 95
    %v3217 = vpop.permute.xlu0 %3216
    %3218 = vrot.lane.b32.xlu0 %v3205, 95
    %v3219 = vpop.permute.xlu0 %3218
    %3220 = vrot.lane.b32.xlu0 %v3206, 95
    %v3221 = vpop.permute.xlu0 %3220
    %3222 = vrot.lane.b32.xlu0 %v3207, 95
    %v3223 = vpop.permute.xlu0 %3222
    %3224 = vrot.lane.b32.xlu0 %v3208, 95
    %v3225 = vpop.permute.xlu0 %3224
    %3226 = vrot.lane.b32.xlu0 %v3209, 95
    %v3227 = vpop.permute.xlu0 %3226
    %v3228 = vsel %vm481, %v3217, %v3219
    %v3229 = vsel %vm481, %v3219, %v3221
    %v3230 = vsel %vm481, %v3223, %v3225
    %v3231 = vsel %vm481, %v3225, %v3227
    %v3238 = vadd.f32 %v3196, %v3228
    %v3239 = vadd.f32 %v3197, %v3229
    %v3240 = vadd.f32 %v3198, %v3221
    %v3241 = vadd.f32 %v3199, %v3230
    %v3242 = vadd.f32 %v3200, %v3231
    %v3243 = vadd.f32 %v3201, %v3227
    %s3244 = sld [smem:[#allocation2 + $0x407]]
    %v3245 = vstv %s3244
    %v3246 = vmul.f32 %v3245, %v175
    %v3247 = vmul.f32 %v3245, %v176
    %v3248 = vmul.f32 %v3245, %v177
    %v3249 = vmul.f32 %v3245, %v178
    %v3250 = vmul.f32 %v3245, %v179
    %v3251 = vmul.f32 %v3245, %v180
    %3258 = vrot.lane.b32.xlu0 %v3246, 94
    %v3259 = vpop.permute.xlu0 %3258
    %3260 = vrot.lane.b32.xlu0 %v3247, 94
    %v3261 = vpop.permute.xlu0 %3260
    %3262 = vrot.lane.b32.xlu0 %v3248, 94
    %v3263 = vpop.permute.xlu0 %3262
    %3264 = vrot.lane.b32.xlu0 %v3249, 94
    %v3265 = vpop.permute.xlu0 %3264
    %3266 = vrot.lane.b32.xlu0 %v3250, 94
    %v3267 = vpop.permute.xlu0 %3266
    %3268 = vrot.lane.b32.xlu0 %v3251, 94
    %v3269 = vpop.permute.xlu0 %3268
    %v3270 = vsel %vm524, %v3259, %v3261
    %v3271 = vsel %vm524, %v3261, %v3263
    %v3272 = vsel %vm524, %v3265, %v3267
    %v3273 = vsel %vm524, %v3267, %v3269
    %v3280 = vadd.f32 %v3238, %v3270
    %v3281 = vadd.f32 %v3239, %v3271
    %v3282 = vadd.f32 %v3240, %v3263
    %v3283 = vadd.f32 %v3241, %v3272
    %v3284 = vadd.f32 %v3242, %v3273
    %v3285 = vadd.f32 %v3243, %v3269
    %v3286 = vmax.f32 %v3280, 0.0
    %v3287 = vmax.f32 %v3281, 0.0
    %v3288 = vmax.f32 %v3282, 0.0
    %v3289 = vmax.f32 %v3283, 0.0
    %v3290 = vmax.f32 %v3284, 0.0
    %v3291 = vmax.f32 %v3285, 0.0
    %3298 = vrot.lane.b32.xlu0 %v3286, 81
    %v3299 = vpop.permute.xlu0 %3298
    %3300 = vrot.lane.b32.xlu0 %v3287, 81
    %v3301 = vpop.permute.xlu0 %3300
    %3302 = vrot.lane.b32.xlu0 %v3288, 81
    %v3303 = vpop.permute.xlu0 %3302
    %3304 = vrot.lane.b32.xlu0 %v3289, 81
    %v3305 = vpop.permute.xlu0 %3304
    %3306 = vrot.lane.b32.xlu0 %v3290, 81
    %v3307 = vpop.permute.xlu0 %3306
    %3308 = vrot.lane.b32.xlu0 %v3291, 81
    %v3309 = vpop.permute.xlu0 %3308
    %v3310 = vsel %vm170, %v3299, %v3301
    %v3311 = vsel %vm170, %v3301, %v3303
    %v3312 = vsel %vm170, %v3305, %v3307
    %v3313 = vsel %vm170, %v3307, %v3309
    %v3318 = vadd.f32 %v3310, %v3311
    %3319 = vadd.xlane.f32.xlu0 %v3318
    %v3320 = vpop.xlane.xlu0 %3319
    %v3321 = vadd.f32 %v3312, %v3313
    %3322 = vadd.xlane.f32.xlu0 %v3321
    %v3323 = vpop.xlane.xlu0 %3322
    %v3324 = vmul.f32 %v3320, %v579
    %v3325 = vmul.f32 %v3323, %v579
    %vm3326 = vcmask 7168
    %v3327 = vsel %vm3326, %v580, %v972
    %v3328 = vsel %vm3326, %v581, %v973
    %vm3329 = vcmask 15360
    %v3330 = vsel %vm3329, %v3327, %v1364
    %v3331 = vsel %vm3329, %v3328, %v1365
    %vm3332 = vcmask 23552
    %v3333 = vsel %vm3332, %v3330, %v1756
    %v3334 = vsel %vm3332, %v3331, %v1757
    %vm3335 = vcmask 31744
    %v3336 = vsel %vm3335, %v3333, %v2148
    %v3337 = vsel %vm3335, %v3334, %v2149
    %vm3338 = vcmask 39936
    %v3339 = vsel %vm3338, %v3336, %v2540
    %v3340 = vsel %vm3338, %v3337, %v2541
    %vm3341 = vcmask 48128
    %v3342 = vsel %vm3341, %v3339, %v2932
    %v3343 = vsel %vm3341, %v3340, %v2933
    %vm3344 = vcmask 56320
    %v3345 = vsel %vm3344, %v3342, %v3324
    %v3346 = vsel %vm3344, %v3343, %v3325
    %v3347 = vld [vmem:[%s4] sm:$0xff]
    %v3348 = vld [vmem:[%s5] sm:$0x1]
    %v3350 = vlaneseq
    %v3351 = vshrl.u32 %v3350, 7
    %v3352 = vsub.s32 0, %v3351
    %v3353 = vrot.slane %v3348, %v3352
    %vm3355 = vcmask 64512
    %v3357 = vsel %vm3355, %v3345, 0
    %v3360 = vsel %vm3355, %v3346, 0
    %3362 = vmatprep.subr.mxu0 0.0
    %3363 = vmatpush1.msra.mxu0 %v3347
    %3364 = vmatprep.subr.mxu0 0.0
    %3365 = vmatpush1.msra.mxu0 0.0
    %3366 = vmatprep.subr.mxu0 0.0
    %3367 = vmatpush1.msra.mxu0 0.0
    %3368 = vmatprep.subr.mxu0 0.0
    %3369 = vmatpush1.msra.mxu0 0.0
    %3370 = vmatprep.subr.mxu0 0.0
    %3371 = vmatpush1.msra.mxu0 0.0
    %3372 = vmatprep.subr.mxu0 0.0
    %3373 = vmatpush1.msra.mxu0 0.0
    %3374 = vmatprep.subr.mxu0 0.0
    %3375 = vmatpush1.msra.mxu0 0.0
    %3376 = vmatprep.subr.mxu0 0.0
    %3377 = vmatpush1.msra.mxu0 0.0
    %3378 = vmatprep.subr.mxu0 0.0
    %3379 = vmatpush1.msra.mxu0 0.0
    %3380 = vmatprep.subr.mxu0 0.0
    %3381 = vmatpush1.msra.mxu0 0.0
    %3382 = vmatprep.subr.mxu0 0.0
    %3383 = vmatpush1.msra.mxu0 0.0
    %3384 = vmatprep.subr.mxu0 0.0
    %3385 = vmatpush1.msra.mxu0 0.0
    %3386 = vmatprep.subr.mxu0 0.0
    %3387 = vmatpush1.msra.mxu0 0.0
    %3388 = vmatprep.subr.mxu0 0.0
    %3389 = vmatpush1.msra.mxu0 0.0
    %3390 = vmatprep.subr.mxu0 0.0
    %3391 = vmatpush1.msra.mxu0 0.0
    %3392 = vmatprep.subr.mxu0 0.0
    %3393 = vmatpush1.msra.mxu0 0.0
    %3394 = vmatprep.subr.mxu0 0.0
    %3395 = vmatpush1.msra.mxu0 0.0
    %3396 = vmatprep.subr.mxu0 0.0
    %3397 = vmatpush1.msra.mxu0 0.0
    %3398 = vmatprep.subr.mxu0 0.0
    %3399 = vmatpush1.msra.mxu0 0.0
    %3400 = vmatprep.subr.mxu0 0.0
    %3401 = vmatpush1.msra.mxu0 0.0
    %3402 = vmatprep.subr.mxu0 0.0
    %3403 = vmatpush1.msra.mxu0 0.0
    %3404 = vmatprep.subr.mxu0 0.0
    %3405 = vmatpush1.msra.mxu0 0.0
    %3406 = vmatprep.subr.mxu0 0.0
    %3407 = vmatpush1.msra.mxu0 0.0
    %3408 = vmatprep.subr.mxu0 0.0
    %3409 = vmatpush1.msra.mxu0 0.0
    %3410 = vmatprep.subr.mxu0 0.0
    %3411 = vmatpush1.msra.mxu0 0.0
    %3412 = vmatprep.subr.mxu0 0.0
    %3413 = vmatpush1.msra.mxu0 0.0
    %3414 = vmatprep.subr.mxu0 0.0
    %3415 = vmatpush1.msra.mxu0 0.0
    %3416 = vmatprep.subr.mxu0 0.0
    %3417 = vmatpush1.msra.mxu0 0.0
    %3418 = vmatprep.subr.mxu0 0.0
    %3419 = vmatpush1.msra.mxu0 0.0
    %3420 = vmatprep.subr.mxu0 0.0
    %3421 = vmatpush1.msra.mxu0 0.0
    %3422 = vmatprep.subr.mxu0 0.0
    %3423 = vmatpush1.msra.mxu0 0.0
    %3424 = vmatprep.subr.mxu0 0.0
    %3425 = vmatpush1.msra.mxu0 0.0
    %3426 = vmatprep.mubr.f32.mxu0 0.0
    %3427 = vmatmul.mubr.f32.gmra.mrb[0].mxu0 %v3357
    %v3428 = vpop.f32.mrb[0].mxu0
    %v3429 = vadd.f32 %v3353, %v3428
    %v3430 = vpop.f32.mrb[0].mxu0
    %3431 = vmatprep.mubr.f32.mxu0 0.0
    %3432 = vmatmul.mubr.f32.gmra.mrb[0].mxu0 %v3360
    %v3433 = vpop.f32.mrb[0].mxu0
    %v3434 = vadd.f32 %v3353, %v3433
    %v3435 = vpop.f32.mrb[0].mxu0
    %3436 = vdwg.mxu0
    %v3437 = vld [vmem:[%s6] sm:$0xff]
    %v3438 = vld [vmem:[%s6 + $0x8] sm:$0xff]
    %v3439 = vld [vmem:[%s6 + $0x10] sm:$0xff]
    %v3440 = vld [vmem:[%s6 + $0x18] sm:$0xff]
    %v3441 = vld [vmem:[%s6 + $0x20] sm:$0xff]
    %v3442 = vld [vmem:[%s6 + $0x28] sm:$0xff]
    %v3443 = vld [vmem:[%s6 + $0x30] sm:$0xff]
    %v3444 = vld [vmem:[%s6 + $0x38] sm:$0xff]
    %v3445 = vld [vmem:[%s6 + $0x40] sm:$0xff]
    %v3446 = vld [vmem:[%s6 + $0x48] sm:$0xff]
    %v3447 = vld [vmem:[%s6 + $0x50] sm:$0xff]
    %v3448 = vld [vmem:[%s6 + $0x58] sm:$0xff]
    %v3449 = vld [vmem:[%s6 + $0x60] sm:$0xff]
    %v3450 = vld [vmem:[%s6 + $0x68] sm:$0xff]
    %v3451 = vld [vmem:[%s6 + $0x70] sm:$0xff]
    %v3452 = vld [vmem:[%s6 + $0x78] sm:$0xff]
    %v3453 = vld [vmem:[%s6 + $0x80] sm:$0xff]
    %v3454 = vld [vmem:[%s6 + $0x88] sm:$0xff]
    %v3455 = vld [vmem:[%s6 + $0x90] sm:$0xff]
    %v3456 = vld [vmem:[%s6 + $0x98] sm:$0xff]
    %v3457 = vld [vmem:[%s6 + $0xa0] sm:$0xff]
    %v3458 = vld [vmem:[%s6 + $0xa8] sm:$0xff]
    %v3459 = vld [vmem:[%s6 + $0xb0] sm:$0xff]
    %v3460 = vld [vmem:[%s6 + $0xb8] sm:$0xff]
    %v3461 = vld [vmem:[%s6 + $0xc0] sm:$0xff]
    %v3462 = vld [vmem:[%s6 + $0xc8] sm:$0xff]
    %v3463 = vld [vmem:[%s6 + $0xd0] sm:$0xff]
    %v3464 = vld [vmem:[%s6 + $0xd8] sm:$0xff]
    %v3465 = vld [vmem:[%s6 + $0xe0] sm:$0xff]
    %v3466 = vld [vmem:[%s6 + $0xe8] sm:$0xff]
    %v3467 = vld [vmem:[%s6 + $0xf0] sm:$0xff]
    %v3468 = vld [vmem:[%s6 + $0xf8] sm:$0xff]
    %v3469 = vld [vmem:[%s7] sm:$0x1]
    %v3471 = vlaneseq
    %v3472 = vshrl.u32 %v3471, 7
    %v3473 = vsub.s32 0, %v3472
    %v3474 = vrot.slane %v3469, %v3473
    %3482 = vrot.lane.b32.xlu0 %v64, 64
    %v3483 = vpop.permute.xlu0 %3482
    %3484 = vrot.lane.b32.xlu0 %v65, 64
    %v3485 = vpop.permute.xlu0 %3484
    %3486 = vrot.lane.b32.xlu0 %v66, 64
    %v3487 = vpop.permute.xlu0 %3486
    %3488 = vrot.lane.b32.xlu0 %v67, 64
    %v3489 = vpop.permute.xlu0 %3488
    %3490 = vrot.lane.b32.xlu0 %v68, 64
    %v3491 = vpop.permute.xlu0 %3490
    %3492 = vrot.lane.b32.xlu0 %v69, 64
    %v3493 = vpop.permute.xlu0 %3492
    %vm3494 = vcmask 523264
    %v3495 = vsel %vm3494, %v3483, %v3485
    %v3496 = vsel %vm3494, %v3485, %v3487
    %v3497 = vsel %vm3494, %v3489, %v3491
    %v3498 = vsel %vm3494, %v3491, %v3493
    %3503 = vmatprep.subr.mxu0 0.0
    %3504 = vmatpush1.msra.mxu0 %v3437
    %3505 = vmatprep.subr.mxu0 0.0
    %3506 = vmatpush1.msra.mxu0 %v3438
    %3507 = vmatprep.subr.mxu0 0.0
    %3508 = vmatpush1.msra.mxu0 %v3439
    %3509 = vmatprep.subr.mxu0 0.0
    %3510 = vmatpush1.msra.mxu0 %v3440
    %3511 = vmatprep.subr.mxu0 0.0
    %3512 = vmatpush1.msra.mxu0 %v3441
    %3513 = vmatprep.subr.mxu0 0.0
    %3514 = vmatpush1.msra.mxu0 %v3442
    %3515 = vmatprep.subr.mxu0 0.0
    %3516 = vmatpush1.msra.mxu0 %v3443
    %3517 = vmatprep.subr.mxu0 0.0
    %3518 = vmatpush1.msra.mxu0 %v3444
    %3519 = vmatprep.subr.mxu0 0.0
    %3520 = vmatpush1.msra.mxu0 %v3445
    %3521 = vmatprep.subr.mxu0 0.0
    %3522 = vmatpush1.msra.mxu0 %v3446
    %3523 = vmatprep.subr.mxu0 0.0
    %3524 = vmatpush1.msra.mxu0 %v3447
    %3525 = vmatprep.subr.mxu0 0.0
    %3526 = vmatpush1.msra.mxu0 %v3448
    %3527 = vmatprep.subr.mxu0 0.0
    %3528 = vmatpush1.msra.mxu0 %v3449
    %3529 = vmatprep.subr.mxu0 0.0
    %3530 = vmatpush1.msra.mxu0 %v3450
    %3531 = vmatprep.subr.mxu0 0.0
    %3532 = vmatpush1.msra.mxu0 %v3451
    %3533 = vmatprep.subr.mxu0 0.0
    %3534 = vmatpush1.msra.mxu0 %v3452
    %3535 = vmatprep.subr.mxu0 0.0
    %3536 = vmatpush1.msra.mxu0 %v3453
    %3537 = vmatprep.subr.mxu0 0.0
    %3538 = vmatpush1.msra.mxu0 %v3454
    %3539 = vmatprep.subr.mxu0 0.0
    %3540 = vmatpush1.msra.mxu0 %v3455
    %3541 = vmatprep.subr.mxu0 0.0
    %3542 = vmatpush1.msra.mxu0 %v3456
    %3543 = vmatprep.subr.mxu0 0.0
    %3544 = vmatpush1.msra.mxu0 %v3457
    %3545 = vmatprep.subr.mxu0 0.0
    %3546 = vmatpush1.msra.mxu0 %v3458
    %3547 = vmatprep.subr.mxu0 0.0
    %3548 = vmatpush1.msra.mxu0 %v3459
    %3549 = vmatprep.subr.mxu0 0.0
    %3550 = vmatpush1.msra.mxu0 %v3460
    %3551 = vmatprep.subr.mxu0 0.0
    %3552 = vmatpush1.msra.mxu0 %v3461
    %3553 = vmatprep.subr.mxu0 0.0
    %3554 = vmatpush1.msra.mxu0 %v3462
    %3555 = vmatprep.subr.mxu0 0.0
    %3556 = vmatpush1.msra.mxu0 %v3463
    %3557 = vmatprep.subr.mxu0 0.0
    %3558 = vmatpush1.msra.mxu0 %v3464
    %3559 = vmatprep.subr.mxu0 0.0
    %3560 = vmatpush1.msra.mxu0 %v3465
    %3561 = vmatprep.subr.mxu0 0.0
    %3562 = vmatpush1.msra.mxu0 %v3466
    %3563 = vmatprep.subr.mxu0 0.0
    %3564 = vmatpush1.msra.mxu0 %v3467
    %3565 = vmatprep.subr.mxu0 0.0
    %3566 = vmatpush1.msra.mxu0 %v3468
    %3567 = vmatprep.mubr.f32.mxu0 %v3496
    %3568 = vmatmul.mubr.f32.gmra.mrb[0].mxu0 %v3495
    %v3569 = vpop.f32.mrb[0].mxu0
    %v3570 = vadd.f32 %v3474, %v3569
    %v3571 = vpop.f32.mrb[0].mxu0
    %3572 = vmatprep.mubr.f32.mxu0 %v3498
    %3573 = vmatmul.mubr.f32.gmra.mrb[0].mxu0 %v3497
    %v3574 = vpop.f32.mrb[0].mxu0
    %v3575 = vadd.f32 %v3474, %v3574
    %v3576 = vpop.f32.mrb[0].mxu0
    %3577 = vdwg.mxu0
    %v3578 = vtanh.pop %v3570
    %v3579 = vtanh.pop %v3575
    %v3580 = vld [vmem:[%s3] sm:$0xff]
    %v3581 = vld [vmem:[%s3 + $0x8] sm:$0xff]
    %3584 = vrot.lane.b32.xlu0 %v3578, 32
    %v3585 = vpop.permute.xlu0 %3584
    %3586 = vrot.lane.b32.xlu0 %v3579, 32
    %v3587 = vpop.permute.xlu0 %3586
    %3592 = vrot.lane.b32.xlu0 %v3580, 64
    %v3593 = vpop.permute.xlu0 %3592
    %3594 = vrot.lane.b32.xlu0 %v3581, 64
    %v3595 = vpop.permute.xlu0 %3594
    %vm3598 = vcmask 261120
    %v3599 = vsel %vm3598, %v3429, %v3585
    %v3600 = vsel %vm3598, %v3434, %v3587
    %v3601 = vsel %vm3494, %v3599, %v3593
    %v3602 = vsel %vm3494, %v3600, %v3595
    %v3603 = vld [vmem:[#allocation5] sm:$0xff]
    %v3604 = vld [vmem:[#allocation5 + $0x8] sm:$0xff]
    %v3605 = vld [vmem:[#allocation5 + $0x10] sm:$0xff]
    %v3606 = vld [vmem:[#allocation5 + $0x18] sm:$0xff]
    %v3607 = vld [vmem:[#allocation5 + $0x20] sm:$0xff]
    %v3608 = vld [vmem:[#allocation5 + $0x28] sm:$0xff]
    %v3609 = vld [vmem:[#allocation5 + $0x30] sm:$0xff]
    %v3610 = vld [vmem:[#allocation5 + $0x38] sm:$0xff]
    %v3611 = vld [vmem:[#allocation5 + $0x40] sm:$0xff]
    %v3612 = vld [vmem:[#allocation5 + $0x48] sm:$0xff]
    %v3613 = vld [vmem:[#allocation5 + $0x50] sm:$0xff]
    %v3614 = vld [vmem:[#allocation5 + $0x58] sm:$0xff]
    %v3615 = vld [vmem:[#allocation5 + $0x60] sm:$0xff]
    %v3616 = vld [vmem:[#allocation5 + $0x68] sm:$0xff]
    %v3617 = vld [vmem:[#allocation5 + $0x70] sm:$0xff]
    %v3618 = vld [vmem:[#allocation5 + $0x78] sm:$0xff]
    %v3619 = vld [vmem:[%s9] sm:$0x1]
    %v3621 = vlaneseq
    %v3622 = vshrl.u32 %v3621, 7
    %v3623 = vsub.s32 0, %v3622
    %v3624 = vrot.slane %v3619, %v3623
    %3626 = vmatprep.subr.mxu0 0.0
    %3627 = vmatpush1.msra.mxu0 %v3603
    %3628 = vmatprep.subr.mxu0 0.0
    %3629 = vmatpush1.msra.mxu0 %v3604
    %3630 = vmatprep.subr.mxu0 0.0
    %3631 = vmatpush1.msra.mxu0 %v3605
    %3632 = vmatprep.subr.mxu0 0.0
    %3633 = vmatpush1.msra.mxu0 %v3606
    %3634 = vmatprep.subr.mxu0 0.0
    %3635 = vmatpush1.msra.mxu0 %v3607
    %3636 = vmatprep.subr.mxu0 0.0
    %3637 = vmatpush1.msra.mxu0 %v3608
    %3638 = vmatprep.subr.mxu0 0.0
    %3639 = vmatpush1.msra.mxu0 %v3609
    %3640 = vmatprep.subr.mxu0 0.0
    %3641 = vmatpush1.msra.mxu0 %v3610
    %3642 = vmatprep.subr.mxu0 0.0
    %3643 = vmatpush1.msra.mxu0 %v3611
    %3644 = vmatprep.subr.mxu0 0.0
    %3645 = vmatpush1.msra.mxu0 %v3612
    %3646 = vmatprep.subr.mxu0 0.0
    %3647 = vmatpush1.msra.mxu0 %v3613
    %3648 = vmatprep.subr.mxu0 0.0
    %3649 = vmatpush1.msra.mxu0 %v3614
    %3650 = vmatprep.subr.mxu0 0.0
    %3651 = vmatpush1.msra.mxu0 %v3615
    %3652 = vmatprep.subr.mxu0 0.0
    %3653 = vmatpush1.msra.mxu0 %v3616
    %3654 = vmatprep.subr.mxu0 0.0
    %3655 = vmatpush1.msra.mxu0 %v3617
    %3656 = vmatprep.subr.mxu0 0.0
    %3657 = vmatpush1.msra.mxu0 %v3618
    %3658 = vmatprep.subr.mxu0 0.0
    %3659 = vmatpush1.msra.mxu0 0.0
    %3660 = vmatprep.subr.mxu0 0.0
    %3661 = vmatpush1.msra.mxu0 0.0
    %3662 = vmatprep.subr.mxu0 0.0
    %3663 = vmatpush1.msra.mxu0 0.0
    %3664 = vmatprep.subr.mxu0 0.0
    %3665 = vmatpush1.msra.mxu0 0.0
    %3666 = vmatprep.subr.mxu0 0.0
    %3667 = vmatpush1.msra.mxu0 0.0
    %3668 = vmatprep.subr.mxu0 0.0
    %3669 = vmatpush1.msra.mxu0 0.0
    %3670 = vmatprep.subr.mxu0 0.0
    %3671 = vmatpush1.msra.mxu0 0.0
    %3672 = vmatprep.subr.mxu0 0.0
    %3673 = vmatpush1.msra.mxu0 0.0
    %3674 = vmatprep.subr.mxu0 0.0
    %3675 = vmatpush1.msra.mxu0 0.0
    %3676 = vmatprep.subr.mxu0 0.0
    %3677 = vmatpush1.msra.mxu0 0.0
    %3678 = vmatprep.subr.mxu0 0.0
    %3679 = vmatpush1.msra.mxu0 0.0
    %3680 = vmatprep.subr.mxu0 0.0
    %3681 = vmatpush1.msra.mxu0 0.0
    %3682 = vmatprep.subr.mxu0 0.0
    %3683 = vmatpush1.msra.mxu0 0.0
    %3684 = vmatprep.subr.mxu0 0.0
    %3685 = vmatpush1.msra.mxu0 0.0
    %3686 = vmatprep.subr.mxu0 0.0
    %3687 = vmatpush1.msra.mxu0 0.0
    %3688 = vmatprep.subr.mxu0 0.0
    %3689 = vmatpush1.msra.mxu0 0.0
    %3690 = vmatprep.mubr.f32.mxu0 0.0
    %3691 = vmatmul.mubr.f32.gmra.mrb[0].mxu0 %v3601
    %v3692 = vpop.f32.mrb[0].mxu0
    %v3693 = vadd.f32 %v3624, %v3692
    %v3694 = vpop.f32.mrb[0].mxu0
    %3695 = vmatprep.mubr.f32.mxu0 0.0
    %3696 = vmatmul.mubr.f32.gmra.mrb[0].mxu0 %v3602
    %v3697 = vpop.f32.mrb[0].mxu0
    %v3698 = vadd.f32 %v3624, %v3697
    %v3699 = vpop.f32.mrb[0].mxu0
    %3700 = vdwg.mxu0
    %v3701 = vxor.u32 %v3693, 2147483648
    %v3702 = vxor.u32 %v3698, 2147483648
    %v3703 = vmul.f32 %v3701, 1.442695
    %v3704 = vpow.pop %v3703
    %v3705 = vmul.f32 %v3702, 1.442695
    %v3706 = vpow.pop %v3705
    %v3707 = vadd.f32 %v3704, 1.0
    %v3708 = vadd.f32 %v3706, 1.0
    %v3709 = vrcp.pop %v3707
    %v3710 = vmul.f32 1.0, %v3709
    %v3711 = vrcp.pop %v3708
    %v3712 = vmul.f32 1.0, %v3711
    %v3713 = vmul.f32 %v3710, %v3601
    %v3714 = vmul.f32 %v3712, %v3602
    %3715 = vst [vmem:[%s10] sm:$0xff] %v3713
    %3716 = vst [vmem:[%s10 + $0x8] sm:$0xff] %v3714
    // Predicated region
    $region50: #{_forward_jit.2} parent=1 // pred_check
      _
    $region51: #{_forward_jit.2} parent=1 // pred_check_branch
      %3718 = sbr.rel (0) target = $region53
    $region52: #{_forward_jit.2} parent=1 // pred_region
      _
    $region53: #{_forward_jit.2} parent=1 // pred_fallthru
      _
    // Predicated region
    $region54: #{_forward_jit.2} parent=1 // pred_check
      _
    $region55: #{_forward_jit.2} parent=1 // pred_check_branch
      %3720 = sbr.rel (0) target = $region57
    $region56: #{_forward_jit.2} parent=1 // pred_region
      _
    $region57: #{_forward_jit.2} parent=1 // pred_fallthru
      _
    %3721 = vsyncpa [#allocation3], 1
    %3722 = vsyncpa [#allocation4], 1

</llo_original>
